<compile_context>
chip_gen: v5e
topology: v5e:2x2
jax: 0.10.0
libtpu: 0.0.40
codegen_flags: <defaults>
</compile_context>

<pallas_src>
import jax
import jax.numpy as jnp
from jax.experimental import pallas as pl
from jax.experimental.pallas import tpu as pltpu

EPS = 1e-5  # nn.BatchNorm2d default


# ---------------------------------------------------------------------------
# Kernels
# ---------------------------------------------------------------------------
def _conv3x3_im2col_stats(xin, w_ref, y_ref, stats_ref, pad_ref, patch_ref):
    """'same' 3x3 conv of one (H, W, Cin) tile + per-channel sum / sum-sq.

    xin:       (H, W, Cin) f32 value (pre-activation already applied).
    w_ref:     (9*Cin, Cout) VMEM ref in compute dtype.
    y_ref:     (1, H, W, Cout) output ref (raw f32 conv output).
    stats_ref: (1, 2, Cout) output ref: [sum, sum_of_squares] over the tile.
    pad_ref:   (H+2, W+2, Cin) VMEM scratch, compute dtype (zero halo).
    patch_ref: (H*W, 9*Cin) VMEM scratch, compute dtype (im2col patch).
    """
    H, W, Cin = xin.shape

    # Zero-pad into VMEM scratch (1-pixel halo) -- no HBM round trip.
    pad_ref[...] = jnp.zeros_like(pad_ref)
    pad_ref[1:H + 1, 1:W + 1, :] = xin.astype(pad_ref.dtype)
    xp = pad_ref[...]

    # Build the im2col patch once; column order (kh, kw, cin) matches the
    # reshape of an HWIO weight to (9*Cin, Cout).
    for kh in range(3):
        for kw in range(3):
            j = (kh * 3 + kw) * Cin
            patch_ref[:, j:j + Cin] = (
                xp[kh:kh + H, kw:kw + W, :].reshape(H * W, Cin))

    # Single MXU matmul, contraction dim 9*Cin, f32 accumulation.
    y = jnp.dot(patch_ref[...], w_ref[...],
                preferred_element_type=jnp.float32)            # (H*W, Cout)
    Cout = y.shape[-1]
    y_ref[...] = y.reshape(1, H, W, Cout)

    # One-pass partial BN statistics for this tile (sum, sum of squares).
    stats_ref[:, 0:1, :] = jnp.sum(y, axis=0, keepdims=True).reshape(1, 1, Cout)
    stats_ref[:, 1:2, :] = jnp.sum(y * y, axis=0, keepdims=True).reshape(1, 1, Cout)


def conv1_stats_kernel(x_ref, w_ref, y_ref, stats_ref, pad_ref, patch_ref):
    """y = conv1(x) (raw) + per-tile bn1 statistics."""
    _conv3x3_im2col_stats(x_ref[0].astype(jnp.float32),
                          w_ref, y_ref, stats_ref, pad_ref, patch_ref)


def conv2_stats_kernel(y1_ref, w_ref, scale_ref, shift_ref,
                       y_ref, stats_ref, pad_ref, patch_ref):
    """h = relu(bn1_affine(y1)); y = conv2(h) (raw) + per-tile bn2 stats."""
    h = jnp.maximum(y1_ref[0] * scale_ref[...] + shift_ref[...], 0.0)
    _conv3x3_im2col_stats(h, w_ref, y_ref, stats_ref, pad_ref, patch_ref)


def affine_add_relu_kernel(y2_ref, idn_ref, scale_ref, shift_ref, out_ref):
    """out = relu(bn2_affine(y2) + identity)."""
    o = y2_ref[...] * scale_ref[...] + shift_ref[...] + idn_ref[...]
    out_ref[...] = jnp.maximum(o, 0.0)


# ---------------------------------------------------------------------------
# Wrapper
# ---------------------------------------------------------------------------
def _finalize_bn(stats, gamma, beta, count):
    """Fold partial (sum, sum_sq) stats + affine params into scale/shift."""
    total = jnp.sum(stats[:, 0, :], axis=0)           # (C,)
    total_sq = jnp.sum(stats[:, 1, :], axis=0)        # (C,)
    mean = total / count
    var = total_sq / count - mean * mean              # biased variance
    inv = jax.lax.rsqrt(var + EPS)
    scale = gamma * inv
    shift = beta - mean * scale
    return (scale.reshape(1, -1).astype(jnp.float32),
            shift.reshape(1, -1).astype(jnp.float32))


def basic_block_forward(x_nchw, params, compute_dtype=jnp.float32):
    """BasicBlock forward. x_nchw: (N, C, H, W) f32. Returns (N, C, H, W) f32."""
    w1, g1, b1, w2, g2, b2 = params
    N, C, H, W = x_nchw.shape
    x = jnp.transpose(x_nchw, (0, 2, 3, 1)).astype(jnp.float32)     # NHWC

    # HWIO -> (9*Cin, Cout) matmul weights, cast to the MXU compute dtype.
    w1m = w1.reshape(9 * C, C).astype(compute_dtype)
    w2m = w2.reshape(9 * C, C).astype(compute_dtype)

    cparams = pltpu.CompilerParams(
        dimension_semantics=("parallel",),          # batch tiles are independent
        vmem_limit_bytes=32 * 1024 * 1024,          # per-block footprint << 32 MiB
    )

    tile_spec = pl.BlockSpec((1, H, W, C), lambda n: (n, 0, 0, 0))
    w_spec = pl.BlockSpec((9 * C, C), lambda n: (0, 0))
    vec_spec = pl.BlockSpec((1, C), lambda n: (0, 0))
    stats_spec = pl.BlockSpec((1, 2, C), lambda n: (n, 0, 0))
    conv_scratch = [
        pltpu.VMEM((H + 2, W + 2, C), compute_dtype),   # zero-padded tile
        pltpu.VMEM((H * W, 9 * C), compute_dtype),      # im2col patch
    ]
    conv_out_shape = (jax.ShapeDtypeStruct((N, H, W, C), jnp.float32),
                      jax.ShapeDtypeStruct((N, 2, C), jnp.float32))

    # ---- kernel 1: conv1 + bn1 partial stats (gridded over N) ----
    y1, stats1 = pl.pallas_call(
        conv1_stats_kernel,
        out_shape=conv_out_shape,
        grid=(N,),
        in_specs=[tile_spec, w_spec],
        out_specs=(tile_spec, stats_spec),
        scratch_shapes=conv_scratch,
        compiler_params=cparams,
    )(x, w1m)

    scale1, shift1 = _finalize_bn(stats1, g1, b1, N * H * W)   # tiny C-sized ops

    # ---- kernel 2: bn1 affine + relu + conv2 + bn2 partial stats ----
    y2, stats2 = pl.pallas_call(
        conv2_stats_kernel,
        out_shape=conv_out_shape,
        grid=(N,),
        in_specs=[tile_spec, w_spec, vec_spec, vec_spec],
        out_specs=(tile_spec, stats_spec),
        scratch_shapes=conv_scratch,
        compiler_params=cparams,
    )(y1, w2m, scale1, shift1)

    scale2, shift2 = _finalize_bn(stats2, g2, b2, N * H * W)

    # ---- kernel 3: bn2 affine + identity add + relu ----
    out = pl.pallas_call(
        affine_add_relu_kernel,
        out_shape=jax.ShapeDtypeStruct((N, H, W, C), jnp.float32),
        grid=(N,),
        in_specs=[tile_spec, tile_spec, vec_spec, vec_spec],
        out_specs=tile_spec,
        compiler_params=cparams,
    )(y2, x, scale2, shift2)

    return jnp.transpose(out, (0, 3, 1, 2))   # back to NCHW


# ---------------------------------------------------------------------------
# Pure-JAX reference (mirrors the PyTorch forward with training-mode BN)
# ---------------------------------------------------------------------------
def reference_forward(x_nchw, params, compute_dtype=jnp.float32):
    w1, g1, b1, w2, g2, b2 = params
    xn = jnp.transpose(x_nchw, (0, 2, 3, 1)).astype(jnp.float32)

    def conv(h, w):
        return jax.lax.conv_general_dilated(
            h.astype(compute_dtype), w.astype(compute_dtype),
            window_strides=(1, 1), padding="SAME",
            dimension_numbers=("NHWC", "HWIO", "NHWC"),
            preferred_element_type=jnp.float32)

    def bn(h, g, b):
        m = jnp.mean(h, axis=(0, 1, 2))
        v = jnp.mean((h - m) ** 2, axis=(0, 1, 2))
        return (h - m) * jax.lax.rsqrt(v + EPS) * g + b

    h = jnp.maximum(bn(conv(xn, w1), g1, b1), 0.0)
    o = bn(conv(h, w2), g2, b2) + xn
    o = jnp.maximum(o, 0.0)
    return jnp.transpose(o, (0, 3, 1, 2))


if __name__ == "__main__":
    # Small shapes consistent with the module (inplanes == planes, stride=1).
    N, C, H, W = 2, 4, 16, 16

    key = jax.random.PRNGKey(0)
    kx, k1, k2, k3, k4, k5, k6 = jax.random.split(key, 7)

    x = jax.random.normal(kx, (N, C, H, W), jnp.float32)
    # conv3x3 weights in HWIO layout (PyTorch would be OIHW (planes, inplanes, 3, 3)).
    w1 = jax.random.normal(k1, (3, 3, C, C), jnp.float32) * 0.1
    w2 = jax.random.normal(k2, (3, 3, C, C), jnp.float32) * 0.1
    # BatchNorm affine params (PyTorch init is gamma=1, beta=0; perturb deterministically).
    g1 = 1.0 + 0.1 * jax.random.normal(k3, (C,), jnp.float32)
    b1 = 0.1 * jax.random.normal(k4, (C,), jnp.float32)
    g2 = 1.0 + 0.1 * jax.random.normal(k5, (C,), jnp.float32)
    b2 = 0.1 * jax.random.normal(k6, (C,), jnp.float32)
    params = (w1, g1, b1, w2, g2, b2)

    fwd = jax.jit(basic_block_forward, static_argnames=("compute_dtype",))

    # f32 matmul path: matches PyTorch f32 semantics tightly.
    out = jax.block_until_ready(fwd(x, params, compute_dtype=jnp.float32))
    ref = reference_forward(x, params, jnp.float32)
    assert out.shape == (N, C, H, W)
    assert jnp.allclose(out, ref, atol=1e-4, rtol=1e-4), (
        f"f32 max abs err {jnp.max(jnp.abs(out - ref))}")

    # bf16 matmul path (per perf review): loose sanity check vs f32 reference.
    out_bf16 = jax.block_until_ready(fwd(x, params, compute_dtype=jnp.bfloat16))
    assert jnp.all(jnp.isfinite(out_bf16))
    assert jnp.allclose(out_bf16, ref, atol=1e-1, rtol=1e-1), (
        f"bf16 max abs err {jnp.max(jnp.abs(out_bf16 - ref))}")

    print("KERNEL_OK")
</pallas_src>

<mosaic_0001>
module attributes {stable_mosaic.version = 11 : i64} {
  func.func @conv1_stats_kernel(%arg0: i32, %arg1: memref<1x16x16x4xf32, #tpu.memory_space<vmem>>, %arg2: memref<36x4xf32, #tpu.memory_space<vmem>>, %arg3: memref<1x16x16x4xf32, #tpu.memory_space<vmem>>, %arg4: memref<1x2x4xf32, #tpu.memory_space<vmem>>, %arg5: memref<18x18x4xf32, #tpu.memory_space<vmem>>, %arg6: memref<256x36xf32, #tpu.memory_space<vmem>>) attributes {dimension_semantics = [#tpu.dimension_semantics<parallel>], iteration_bounds = array<i64: 2>, scalar_prefetch = 0 : i64, scratch_operands = 2 : i64, tpu.core_type = #tpu.core_type<tc>, window_params = [{transform_indices = @transform_0, window_bounds = array<i64: 1, 16, 16, 4>}, {pipeline_mode = #tpu.pipeline_mode<synchronous>, transform_indices = @transform_1, window_bounds = array<i64: 36, 4>}, {transform_indices = @transform_2, window_bounds = array<i64: 1, 16, 16, 4>}, {transform_indices = @transform_3, window_bounds = array<i64: 1, 2, 4>}]} {
    %c0 = arith.constant 0 : index
    %c0_0 = arith.constant 0 : index
    %c0_1 = arith.constant 0 : index
    %c0_2 = arith.constant 0 : index
    %0 = vector.load %arg1[%c0, %c0_0, %c0_1, %c0_2] : memref<1x16x16x4xf32, #tpu.memory_space<vmem>>, vector<1x16x16x4xf32>
    %1 = vector.shape_cast %0 : vector<1x16x16x4xf32> to vector<16x16x4xf32>
    %cst = arith.constant 0.000000e+00 : f32
    %2 = vector.broadcast %cst : f32 to vector<18x18x4xf32>
    %c0_3 = arith.constant 0 : index
    %c0_4 = arith.constant 0 : index
    %c0_5 = arith.constant 0 : index
    %3 = vector.load %arg5[%c0_3, %c0_4, %c0_5] : memref<18x18x4xf32, #tpu.memory_space<vmem>>, vector<18x18x4xf32>
    tpu.vector_store %arg5[%c0_3, %c0_4, %c0_5], %2 {strides = array<i32>} : memref<18x18x4xf32, #tpu.memory_space<vmem>>, vector<18x18x4xf32>,
    %c1 = arith.constant 1 : index
    %c1_6 = arith.constant 1 : index
    %c0_7 = arith.constant 0 : index
    %4 = vector.load %arg5[%c1, %c1_6, %c0_7] : memref<18x18x4xf32, #tpu.memory_space<vmem>>, vector<16x16x4xf32>
    tpu.vector_store %arg5[%c1, %c1_6, %c0_7], %1 {strides = array<i32>} : memref<18x18x4xf32, #tpu.memory_space<vmem>>, vector<16x16x4xf32>,
    %c0_8 = arith.constant 0 : index
    %c0_9 = arith.constant 0 : index
    %c0_10 = arith.constant 0 : index
    %5 = vector.load %arg5[%c0_8, %c0_9, %c0_10] : memref<18x18x4xf32, #tpu.memory_space<vmem>>, vector<18x18x4xf32>
    %6 = vector.extract_strided_slice %5 {offsets = [0, 0, 0], sizes = [16, 16, 4], strides = [1, 1, 1]} : vector<18x18x4xf32> to vector<16x16x4xf32>
    %7 = vector.shape_cast %6 : vector<16x16x4xf32> to vector<256x4xf32>
    %c0_11 = arith.constant 0 : index
    %c0_12 = arith.constant 0 : index
    %8 = vector.load %arg6[%c0_11, %c0_12] : memref<256x36xf32, #tpu.memory_space<vmem>>, vector<256x4xf32>
    tpu.vector_store %arg6[%c0_11, %c0_12], %7 {strides = array<i32>} : memref<256x36xf32, #tpu.memory_space<vmem>>, vector<256x4xf32>,
    %9 = vector.extract_strided_slice %5 {offsets = [0, 1, 0], sizes = [16, 16, 4], strides = [1, 1, 1]} : vector<18x18x4xf32> to vector<16x16x4xf32>
    %10 = vector.shape_cast %9 : vector<16x16x4xf32> to vector<256x4xf32>
    %c0_13 = arith.constant 0 : index
    %c4 = arith.constant 4 : index
    %11 = vector.load %arg6[%c0_13, %c4] : memref<256x36xf32, #tpu.memory_space<vmem>>, vector<256x4xf32>
    tpu.vector_store %arg6[%c0_13, %c4], %10 {strides = array<i32>} : memref<256x36xf32, #tpu.memory_space<vmem>>, vector<256x4xf32>,
    %12 = vector.extract_strided_slice %5 {offsets = [0, 2, 0], sizes = [16, 16, 4], strides = [1, 1, 1]} : vector<18x18x4xf32> to vector<16x16x4xf32>
    %13 = vector.shape_cast %12 : vector<16x16x4xf32> to vector<256x4xf32>
    %c0_14 = arith.constant 0 : index
    %c8 = arith.constant 8 : index
    %14 = vector.load %arg6[%c0_14, %c8] : memref<256x36xf32, #tpu.memory_space<vmem>>, vector<256x4xf32>
    tpu.vector_store %arg6[%c0_14, %c8], %13 {strides = array<i32>} : memref<256x36xf32, #tpu.memory_space<vmem>>, vector<256x4xf32>,
    %15 = vector.extract_strided_slice %5 {offsets = [1, 0, 0], sizes = [16, 16, 4], strides = [1, 1, 1]} : vector<18x18x4xf32> to vector<16x16x4xf32>
    %16 = vector.shape_cast %15 : vector<16x16x4xf32> to vector<256x4xf32>
    %c0_15 = arith.constant 0 : index
    %c12 = arith.constant 12 : index
    %17 = vector.load %arg6[%c0_15, %c12] : memref<256x36xf32, #tpu.memory_space<vmem>>, vector<256x4xf32>
    tpu.vector_store %arg6[%c0_15, %c12], %16 {strides = array<i32>} : memref<256x36xf32, #tpu.memory_space<vmem>>, vector<256x4xf32>,
    %18 = vector.extract_strided_slice %5 {offsets = [1, 1, 0], sizes = [16, 16, 4], strides = [1, 1, 1]} : vector<18x18x4xf32> to vector<16x16x4xf32>
    %19 = vector.shape_cast %18 : vector<16x16x4xf32> to vector<256x4xf32>
    %c0_16 = arith.constant 0 : index
    %c16 = arith.constant 16 : index
    %20 = vector.load %arg6[%c0_16, %c16] : memref<256x36xf32, #tpu.memory_space<vmem>>, vector<256x4xf32>
    tpu.vector_store %arg6[%c0_16, %c16], %19 {strides = array<i32>} : memref<256x36xf32, #tpu.memory_space<vmem>>, vector<256x4xf32>,
    %21 = vector.extract_strided_slice %5 {offsets = [1, 2, 0], sizes = [16, 16, 4], strides = [1, 1, 1]} : vector<18x18x4xf32> to vector<16x16x4xf32>
    %22 = vector.shape_cast %21 : vector<16x16x4xf32> to vector<256x4xf32>
    %c0_17 = arith.constant 0 : index
    %c20 = arith.constant 20 : index
    %23 = vector.load %arg6[%c0_17, %c20] : memref<256x36xf32, #tpu.memory_space<vmem>>, vector<256x4xf32>
    tpu.vector_store %arg6[%c0_17, %c20], %22 {strides = array<i32>} : memref<256x36xf32, #tpu.memory_space<vmem>>, vector<256x4xf32>,
    %24 = vector.extract_strided_slice %5 {offsets = [2, 0, 0], sizes = [16, 16, 4], strides = [1, 1, 1]} : vector<18x18x4xf32> to vector<16x16x4xf32>
    %25 = vector.shape_cast %24 : vector<16x16x4xf32> to vector<256x4xf32>
    %c0_18 = arith.constant 0 : index
    %c24 = arith.constant 24 : index
    %26 = vector.load %arg6[%c0_18, %c24] : memref<256x36xf32, #tpu.memory_space<vmem>>, vector<256x4xf32>
    tpu.vector_store %arg6[%c0_18, %c24], %25 {strides = array<i32>} : memref<256x36xf32, #tpu.memory_space<vmem>>, vector<256x4xf32>,
    %27 = vector.extract_strided_slice %5 {offsets = [2, 1, 0], sizes = [16, 16, 4], strides = [1, 1, 1]} : vector<18x18x4xf32> to vector<16x16x4xf32>
    %28 = vector.shape_cast %27 : vector<16x16x4xf32> to vector<256x4xf32>
    %c0_19 = arith.constant 0 : index
    %c28 = arith.constant 28 : index
    %29 = vector.load %arg6[%c0_19, %c28] : memref<256x36xf32, #tpu.memory_space<vmem>>, vector<256x4xf32>
    tpu.vector_store %arg6[%c0_19, %c28], %28 {strides = array<i32>} : memref<256x36xf32, #tpu.memory_space<vmem>>, vector<256x4xf32>,
    %30 = vector.extract_strided_slice %5 {offsets = [2, 2, 0], sizes = [16, 16, 4], strides = [1, 1, 1]} : vector<18x18x4xf32> to vector<16x16x4xf32>
    %31 = vector.shape_cast %30 : vector<16x16x4xf32> to vector<256x4xf32>
    %c0_20 = arith.constant 0 : index
    %c32 = arith.constant 32 : index
    %32 = vector.load %arg6[%c0_20, %c32] : memref<256x36xf32, #tpu.memory_space<vmem>>, vector<256x4xf32>
    tpu.vector_store %arg6[%c0_20, %c32], %31 {strides = array<i32>} : memref<256x36xf32, #tpu.memory_space<vmem>>, vector<256x4xf32>,
    %c0_21 = arith.constant 0 : index
    %c0_22 = arith.constant 0 : index
    %33 = vector.load %arg6[%c0_21, %c0_22] : memref<256x36xf32, #tpu.memory_space<vmem>>, vector<256x36xf32>
    %c0_23 = arith.constant 0 : index
    %c0_24 = arith.constant 0 : index
    %34 = vector.load %arg2[%c0_23, %c0_24] : memref<36x4xf32, #tpu.memory_space<vmem>>, vector<36x4xf32>
    %cst_25 = arith.constant dense<0.000000e+00> : vector<256x4xf32>
    %35 = tpu.matmul %33, %34, %cst_25 {dimension_numbers = #tpu.dot_dimension_numbers<[1], [0], [0], [1], [0, 0, 1, 1], [], []>} : vector<256x36xf32>, vector<36x4xf32>, vector<256x4xf32> -> vector<256x4xf32>
    %36 = vector.shape_cast %35 : vector<256x4xf32> to vector<1x16x16x4xf32>
    %c0_26 = arith.constant 0 : index
    %c0_27 = arith.constant 0 : index
    %c0_28 = arith.constant 0 : index
    %c0_29 = arith.constant 0 : index
    %37 = vector.load %arg3[%c0_26, %c0_27, %c0_28, %c0_29] : memref<1x16x16x4xf32, #tpu.memory_space<vmem>>, vector<1x16x16x4xf32>
    tpu.vector_store %arg3[%c0_26, %c0_27, %c0_28, %c0_29], %36 {strides = array<i32>} : memref<1x16x16x4xf32, #tpu.memory_space<vmem>>, vector<1x16x16x4xf32>,
    %cst_30 = arith.constant dense<0.000000e+00> : vector<4xf32>
    %38 = vector.multi_reduction <add>, %35, %cst_30 [0] : vector<256x4xf32> to vector<4xf32>
    %39 = vector.shape_cast %38 : vector<4xf32> to vector<1x4xf32>
    %40 = vector.shape_cast %39 : vector<1x4xf32> to vector<1x1x4xf32>
    %c0_31 = arith.constant 0 : index
    %c0_32 = arith.constant 0 : index
    %c0_33 = arith.constant 0 : index
    %41 = vector.load %arg4[%c0_31, %c0_32, %c0_33] : memref<1x2x4xf32, #tpu.memory_space<vmem>>, vector<1x1x4xf32>
    tpu.vector_store %arg4[%c0_31, %c0_32, %c0_33], %40 {strides = array<i32>} : memref<1x2x4xf32, #tpu.memory_space<vmem>>, vector<1x1x4xf32>,
    %42 = arith.mulf %35, %35 : vector<256x4xf32>
    %cst_34 = arith.constant dense<0.000000e+00> : vector<4xf32>
    %43 = vector.multi_reduction <add>, %42, %cst_34 [0] : vector<256x4xf32> to vector<4xf32>
    %44 = vector.shape_cast %43 : vector<4xf32> to vector<1x4xf32>
    %45 = vector.shape_cast %44 : vector<1x4xf32> to vector<1x1x4xf32>
    %c0_35 = arith.constant 0 : index
    %c1_36 = arith.constant 1 : index
    %c0_37 = arith.constant 0 : index
    %46 = vector.load %arg4[%c0_35, %c1_36, %c0_37] : memref<1x2x4xf32, #tpu.memory_space<vmem>>, vector<1x1x4xf32>
    tpu.vector_store %arg4[%c0_35, %c1_36, %c0_37], %45 {strides = array<i32>} : memref<1x2x4xf32, #tpu.memory_space<vmem>>, vector<1x1x4xf32>,
    return
  }
  func.func @transform_0(%arg0: i32) -> (i32, i32, i32, i32) {
    %c0_i32 = arith.constant 0 : i32
    %c0_i32_0 = arith.constant 0 : i32
    %c0_i32_1 = arith.constant 0 : i32
    %c0_i32_2 = arith.constant 0 : i32
    return %arg0, %c0_i32, %c0_i32_0, %c0_i32_1 : i32, i32, i32, i32
  }
  func.func @transform_1(%arg0: i32) -> (i32, i32) {
    %c0_i32 = arith.constant 0 : i32
    %c0_i32_0 = arith.constant 0 : i32
    %c0_i32_1 = arith.constant 0 : i32
    return %c0_i32, %c0_i32_0 : i32, i32
  }
  func.func @transform_2(%arg0: i32) -> (i32, i32, i32, i32) {
    %c0_i32 = arith.constant 0 : i32
    %c0_i32_0 = arith.constant 0 : i32
    %c0_i32_1 = arith.constant 0 : i32
    %c0_i32_2 = arith.constant 0 : i32
    return %arg0, %c0_i32, %c0_i32_0, %c0_i32_1 : i32, i32, i32, i32
  }
  func.func @transform_3(%arg0: i32) -> (i32, i32, i32) {
    %c0_i32 = arith.constant 0 : i32
    %c0_i32_0 = arith.constant 0 : i32
    %c0_i32_1 = arith.constant 0 : i32
    return %arg0, %c0_i32, %c0_i32_0 : i32, i32, i32
  }
}

module attributes {stable_mosaic.version = 11 : i64} {
  func.func @conv2_stats_kernel(%arg0: i32, %arg1: memref<1x16x16x4xf32, #tpu.memory_space<vmem>>, %arg2: memref<36x4xf32, #tpu.memory_space<vmem>>, %arg3: memref<1x4xf32, #tpu.memory_space<vmem>>, %arg4: memref<1x4xf32, #tpu.memory_space<vmem>>, %arg5: memref<1x16x16x4xf32, #tpu.memory_space<vmem>>, %arg6: memref<1x2x4xf32, #tpu.memory_space<vmem>>, %arg7: memref<18x18x4xf32, #tpu.memory_space<vmem>>, %arg8: memref<256x36xf32, #tpu.memory_space<vmem>>) attributes {dimension_semantics = [#tpu.dimension_semantics<parallel>], iteration_bounds = array<i64: 2>, scalar_prefetch = 0 : i64, scratch_operands = 2 : i64, tpu.core_type = #tpu.core_type<tc>, window_params = [{transform_indices = @transform_0, window_bounds = array<i64: 1, 16, 16, 4>}, {pipeline_mode = #tpu.pipeline_mode<synchronous>, transform_indices = @transform_1, window_bounds = array<i64: 36, 4>}, {pipeline_mode = #tpu.pipeline_mode<synchronous>, transform_indices = @transform_2, window_bounds = array<i64: 1, 4>}, {pipeline_mode = #tpu.pipeline_mode<synchronous>, transform_indices = @transform_3, window_bounds = array<i64: 1, 4>}, {transform_indices = @transform_4, window_bounds = array<i64: 1, 16, 16, 4>}, {transform_indices = @transform_5, window_bounds = array<i64: 1, 2, 4>}]} {
    %c0 = arith.constant 0 : index
    %c0_0 = arith.constant 0 : index
    %c0_1 = arith.constant 0 : index
    %c0_2 = arith.constant 0 : index
    %0 = vector.load %arg1[%c0, %c0_0, %c0_1, %c0_2] : memref<1x16x16x4xf32, #tpu.memory_space<vmem>>, vector<1x16x16x4xf32>
    %1 = vector.shape_cast %0 : vector<1x16x16x4xf32> to vector<16x16x4xf32>
    %c0_3 = arith.constant 0 : index
    %c0_4 = arith.constant 0 : index
    %2 = vector.load %arg3[%c0_3, %c0_4] : memref<1x4xf32, #tpu.memory_space<vmem>>, vector<1x4xf32>
    %3 = vector.shape_cast %2 : vector<1x4xf32> to vector<1x1x4xf32>
    %4 = vector.broadcast %3 : vector<1x1x4xf32> to vector<16x16x4xf32>
    %5 = arith.mulf %1, %4 : vector<16x16x4xf32>
    %c0_5 = arith.constant 0 : index
    %c0_6 = arith.constant 0 : index
    %6 = vector.load %arg4[%c0_5, %c0_6] : memref<1x4xf32, #tpu.memory_space<vmem>>, vector<1x4xf32>
    %7 = vector.shape_cast %6 : vector<1x4xf32> to vector<1x1x4xf32>
    %8 = vector.broadcast %7 : vector<1x1x4xf32> to vector<16x16x4xf32>
    %9 = arith.addf %5, %8 : vector<16x16x4xf32>
    %cst = arith.constant 0.000000e+00 : f32
    %10 = vector.broadcast %cst : f32 to vector<16x16x4xf32>
    %11 = arith.maximumf %9, %10 : vector<16x16x4xf32>
    %cst_7 = arith.constant 0.000000e+00 : f32
    %12 = vector.broadcast %cst_7 : f32 to vector<18x18x4xf32>
    %c0_8 = arith.constant 0 : index
    %c0_9 = arith.constant 0 : index
    %c0_10 = arith.constant 0 : index
    %13 = vector.load %arg7[%c0_8, %c0_9, %c0_10] : memref<18x18x4xf32, #tpu.memory_space<vmem>>, vector<18x18x4xf32>
    tpu.vector_store %arg7[%c0_8, %c0_9, %c0_10], %12 {strides = array<i32>} : memref<18x18x4xf32, #tpu.memory_space<vmem>>, vector<18x18x4xf32>,
    %c1 = arith.constant 1 : index
    %c1_11 = arith.constant 1 : index
    %c0_12 = arith.constant 0 : index
    %14 = vector.load %arg7[%c1, %c1_11, %c0_12] : memref<18x18x4xf32, #tpu.memory_space<vmem>>, vector<16x16x4xf32>
    tpu.vector_store %arg7[%c1, %c1_11, %c0_12], %11 {strides = array<i32>} : memref<18x18x4xf32, #tpu.memory_space<vmem>>, vector<16x16x4xf32>,
    %c0_13 = arith.constant 0 : index
    %c0_14 = arith.constant 0 : index
    %c0_15 = arith.constant 0 : index
    %15 = vector.load %arg7[%c0_13, %c0_14, %c0_15] : memref<18x18x4xf32, #tpu.memory_space<vmem>>, vector<18x18x4xf32>
    %16 = vector.extract_strided_slice %15 {offsets = [0, 0, 0], sizes = [16, 16, 4], strides = [1, 1, 1]} : vector<18x18x4xf32> to vector<16x16x4xf32>
    %17 = vector.shape_cast %16 : vector<16x16x4xf32> to vector<256x4xf32>
    %c0_16 = arith.constant 0 : index
    %c0_17 = arith.constant 0 : index
    %18 = vector.load %arg8[%c0_16, %c0_17] : memref<256x36xf32, #tpu.memory_space<vmem>>, vector<256x4xf32>
    tpu.vector_store %arg8[%c0_16, %c0_17], %17 {strides = array<i32>} : memref<256x36xf32, #tpu.memory_space<vmem>>, vector<256x4xf32>,
    %19 = vector.extract_strided_slice %15 {offsets = [0, 1, 0], sizes = [16, 16, 4], strides = [1, 1, 1]} : vector<18x18x4xf32> to vector<16x16x4xf32>
    %20 = vector.shape_cast %19 : vector<16x16x4xf32> to vector<256x4xf32>
    %c0_18 = arith.constant 0 : index
    %c4 = arith.constant 4 : index
    %21 = vector.load %arg8[%c0_18, %c4] : memref<256x36xf32, #tpu.memory_space<vmem>>, vector<256x4xf32>
    tpu.vector_store %arg8[%c0_18, %c4], %20 {strides = array<i32>} : memref<256x36xf32, #tpu.memory_space<vmem>>, vector<256x4xf32>,
    %22 = vector.extract_strided_slice %15 {offsets = [0, 2, 0], sizes = [16, 16, 4], strides = [1, 1, 1]} : vector<18x18x4xf32> to vector<16x16x4xf32>
    %23 = vector.shape_cast %22 : vector<16x16x4xf32> to vector<256x4xf32>
    %c0_19 = arith.constant 0 : index
    %c8 = arith.constant 8 : index
    %24 = vector.load %arg8[%c0_19, %c8] : memref<256x36xf32, #tpu.memory_space<vmem>>, vector<256x4xf32>
    tpu.vector_store %arg8[%c0_19, %c8], %23 {strides = array<i32>} : memref<256x36xf32, #tpu.memory_space<vmem>>, vector<256x4xf32>,
    %25 = vector.extract_strided_slice %15 {offsets = [1, 0, 0], sizes = [16, 16, 4], strides = [1, 1, 1]} : vector<18x18x4xf32> to vector<16x16x4xf32>
    %26 = vector.shape_cast %25 : vector<16x16x4xf32> to vector<256x4xf32>
    %c0_20 = arith.constant 0 : index
    %c12 = arith.constant 12 : index
    %27 = vector.load %arg8[%c0_20, %c12] : memref<256x36xf32, #tpu.memory_space<vmem>>, vector<256x4xf32>
    tpu.vector_store %arg8[%c0_20, %c12], %26 {strides = array<i32>} : memref<256x36xf32, #tpu.memory_space<vmem>>, vector<256x4xf32>,
    %28 = vector.extract_strided_slice %15 {offsets = [1, 1, 0], sizes = [16, 16, 4], strides = [1, 1, 1]} : vector<18x18x4xf32> to vector<16x16x4xf32>
    %29 = vector.shape_cast %28 : vector<16x16x4xf32> to vector<256x4xf32>
    %c0_21 = arith.constant 0 : index
    %c16 = arith.constant 16 : index
    %30 = vector.load %arg8[%c0_21, %c16] : memref<256x36xf32, #tpu.memory_space<vmem>>, vector<256x4xf32>
    tpu.vector_store %arg8[%c0_21, %c16], %29 {strides = array<i32>} : memref<256x36xf32, #tpu.memory_space<vmem>>, vector<256x4xf32>,
    %31 = vector.extract_strided_slice %15 {offsets = [1, 2, 0], sizes = [16, 16, 4], strides = [1, 1, 1]} : vector<18x18x4xf32> to vector<16x16x4xf32>
    %32 = vector.shape_cast %31 : vector<16x16x4xf32> to vector<256x4xf32>
    %c0_22 = arith.constant 0 : index
    %c20 = arith.constant 20 : index
    %33 = vector.load %arg8[%c0_22, %c20] : memref<256x36xf32, #tpu.memory_space<vmem>>, vector<256x4xf32>
    tpu.vector_store %arg8[%c0_22, %c20], %32 {strides = array<i32>} : memref<256x36xf32, #tpu.memory_space<vmem>>, vector<256x4xf32>,
    %34 = vector.extract_strided_slice %15 {offsets = [2, 0, 0], sizes = [16, 16, 4], strides = [1, 1, 1]} : vector<18x18x4xf32> to vector<16x16x4xf32>
    %35 = vector.shape_cast %34 : vector<16x16x4xf32> to vector<256x4xf32>
    %c0_23 = arith.constant 0 : index
    %c24 = arith.constant 24 : index
    %36 = vector.load %arg8[%c0_23, %c24] : memref<256x36xf32, #tpu.memory_space<vmem>>, vector<256x4xf32>
    tpu.vector_store %arg8[%c0_23, %c24], %35 {strides = array<i32>} : memref<256x36xf32, #tpu.memory_space<vmem>>, vector<256x4xf32>,
    %37 = vector.extract_strided_slice %15 {offsets = [2, 1, 0], sizes = [16, 16, 4], strides = [1, 1, 1]} : vector<18x18x4xf32> to vector<16x16x4xf32>
    %38 = vector.shape_cast %37 : vector<16x16x4xf32> to vector<256x4xf32>
    %c0_24 = arith.constant 0 : index
    %c28 = arith.constant 28 : index
    %39 = vector.load %arg8[%c0_24, %c28] : memref<256x36xf32, #tpu.memory_space<vmem>>, vector<256x4xf32>
    tpu.vector_store %arg8[%c0_24, %c28], %38 {strides = array<i32>} : memref<256x36xf32, #tpu.memory_space<vmem>>, vector<256x4xf32>,
    %40 = vector.extract_strided_slice %15 {offsets = [2, 2, 0], sizes = [16, 16, 4], strides = [1, 1, 1]} : vector<18x18x4xf32> to vector<16x16x4xf32>
    %41 = vector.shape_cast %40 : vector<16x16x4xf32> to vector<256x4xf32>
    %c0_25 = arith.constant 0 : index
    %c32 = arith.constant 32 : index
    %42 = vector.load %arg8[%c0_25, %c32] : memref<256x36xf32, #tpu.memory_space<vmem>>, vector<256x4xf32>
    tpu.vector_store %arg8[%c0_25, %c32], %41 {strides = array<i32>} : memref<256x36xf32, #tpu.memory_space<vmem>>, vector<256x4xf32>,
    %c0_26 = arith.constant 0 : index
    %c0_27 = arith.constant 0 : index
    %43 = vector.load %arg8[%c0_26, %c0_27] : memref<256x36xf32, #tpu.memory_space<vmem>>, vector<256x36xf32>
    %c0_28 = arith.constant 0 : index
    %c0_29 = arith.constant 0 : index
    %44 = vector.load %arg2[%c0_28, %c0_29] : memref<36x4xf32, #tpu.memory_space<vmem>>, vector<36x4xf32>
    %cst_30 = arith.constant dense<0.000000e+00> : vector<256x4xf32>
    %45 = tpu.matmul %43, %44, %cst_30 {dimension_numbers = #tpu.dot_dimension_numbers<[1], [0], [0], [1], [0, 0, 1, 1], [], []>} : vector<256x36xf32>, vector<36x4xf32>, vector<256x4xf32> -> vector<256x4xf32>
    %46 = vector.shape_cast %45 : vector<256x4xf32> to vector<1x16x16x4xf32>
    %c0_31 = arith.constant 0 : index
    %c0_32 = arith.constant 0 : index
    %c0_33 = arith.constant 0 : index
    %c0_34 = arith.constant 0 : index
    %47 = vector.load %arg5[%c0_31, %c0_32, %c0_33, %c0_34] : memref<1x16x16x4xf32, #tpu.memory_space<vmem>>, vector<1x16x16x4xf32>
    tpu.vector_store %arg5[%c0_31, %c0_32, %c0_33, %c0_34], %46 {strides = array<i32>} : memref<1x16x16x4xf32, #tpu.memory_space<vmem>>, vector<1x16x16x4xf32>,
    %cst_35 = arith.constant dense<0.000000e+00> : vector<4xf32>
    %48 = vector.multi_reduction <add>, %45, %cst_35 [0] : vector<256x4xf32> to vector<4xf32>
    %49 = vector.shape_cast %48 : vector<4xf32> to vector<1x4xf32>
    %50 = vector.shape_cast %49 : vector<1x4xf32> to vector<1x1x4xf32>
    %c0_36 = arith.constant 0 : index
    %c0_37 = arith.constant 0 : index
    %c0_38 = arith.constant 0 : index
    %51 = vector.load %arg6[%c0_36, %c0_37, %c0_38] : memref<1x2x4xf32, #tpu.memory_space<vmem>>, vector<1x1x4xf32>
    tpu.vector_store %arg6[%c0_36, %c0_37, %c0_38], %50 {strides = array<i32>} : memref<1x2x4xf32, #tpu.memory_space<vmem>>, vector<1x1x4xf32>,
    %52 = arith.mulf %45, %45 : vector<256x4xf32>
    %cst_39 = arith.constant dense<0.000000e+00> : vector<4xf32>
    %53 = vector.multi_reduction <add>, %52, %cst_39 [0] : vector<256x4xf32> to vector<4xf32>
    %54 = vector.shape_cast %53 : vector<4xf32> to vector<1x4xf32>
    %55 = vector.shape_cast %54 : vector<1x4xf32> to vector<1x1x4xf32>
    %c0_40 = arith.constant 0 : index
    %c1_41 = arith.constant 1 : index
    %c0_42 = arith.constant 0 : index
    %56 = vector.load %arg6[%c0_40, %c1_41, %c0_42] : memref<1x2x4xf32, #tpu.memory_space<vmem>>, vector<1x1x4xf32>
    tpu.vector_store %arg6[%c0_40, %c1_41, %c0_42], %55 {strides = array<i32>} : memref<1x2x4xf32, #tpu.memory_space<vmem>>, vector<1x1x4xf32>,
    return
  }
  func.func @transform_0(%arg0: i32) -> (i32, i32, i32, i32) {
    %c0_i32 = arith.constant 0 : i32
    %c0_i32_0 = arith.constant 0 : i32
    %c0_i32_1 = arith.constant 0 : i32
    %c0_i32_2 = arith.constant 0 : i32
    return %arg0, %c0_i32, %c0_i32_0, %c0_i32_1 : i32, i32, i32, i32
  }
  func.func @transform_1(%arg0: i32) -> (i32, i32) {
    %c0_i32 = arith.constant 0 : i32
    %c0_i32_0 = arith.constant 0 : i32
    %c0_i32_1 = arith.constant 0 : i32
    return %c0_i32, %c0_i32_0 : i32, i32
  }
  func.func @transform_2(%arg0: i32) -> (i32, i32) {
    %c0_i32 = arith.constant 0 : i32
    %c0_i32_0 = arith.constant 0 : i32
    %c0_i32_1 = arith.constant 0 : i32
    return %c0_i32, %c0_i32_0 : i32, i32
  }
  func.func @transform_3(%arg0: i32) -> (i32, i32) {
    %c0_i32 = arith.constant 0 : i32
    %c0_i32_0 = arith.constant 0 : i32
    %c0_i32_1 = arith.constant 0 : i32
    return %c0_i32, %c0_i32_0 : i32, i32
  }
  func.func @transform_4(%arg0: i32) -> (i32, i32, i32, i32) {
    %c0_i32 = arith.constant 0 : i32
    %c0_i32_0 = arith.constant 0 : i32
    %c0_i32_1 = arith.constant 0 : i32
    %c0_i32_2 = arith.constant 0 : i32
    return %arg0, %c0_i32, %c0_i32_0, %c0_i32_1 : i32, i32, i32, i32
  }
  func.func @transform_5(%arg0: i32) -> (i32, i32, i32) {
    %c0_i32 = arith.constant 0 : i32
    %c0_i32_0 = arith.constant 0 : i32
    %c0_i32_1 = arith.constant 0 : i32
    return %arg0, %c0_i32, %c0_i32_0 : i32, i32, i32
  }
}

module attributes {stable_mosaic.version = 11 : i64} {
  func.func @affine_add_relu_kernel(%arg0: i32, %arg1: memref<1x16x16x4xf32, #tpu.memory_space<vmem>>, %arg2: memref<1x16x16x4xf32, #tpu.memory_space<vmem>>, %arg3: memref<1x4xf32, #tpu.memory_space<vmem>>, %arg4: memref<1x4xf32, #tpu.memory_space<vmem>>, %arg5: memref<1x16x16x4xf32, #tpu.memory_space<vmem>>) attributes {dimension_semantics = [#tpu.dimension_semantics<parallel>], iteration_bounds = array<i64: 2>, scalar_prefetch = 0 : i64, scratch_operands = 0 : i64, tpu.core_type = #tpu.core_type<tc>, window_params = [{transform_indices = @transform_0, window_bounds = array<i64: 1, 16, 16, 4>}, {transform_indices = @transform_1, window_bounds = array<i64: 1, 16, 16, 4>}, {pipeline_mode = #tpu.pipeline_mode<synchronous>, transform_indices = @transform_2, window_bounds = array<i64: 1, 4>}, {pipeline_mode = #tpu.pipeline_mode<synchronous>, transform_indices = @transform_3, window_bounds = array<i64: 1, 4>}, {transform_indices = @transform_4, window_bounds = array<i64: 1, 16, 16, 4>}]} {
    %c0 = arith.constant 0 : index
    %c0_0 = arith.constant 0 : index
    %c0_1 = arith.constant 0 : index
    %c0_2 = arith.constant 0 : index
    %0 = vector.load %arg1[%c0, %c0_0, %c0_1, %c0_2] : memref<1x16x16x4xf32, #tpu.memory_space<vmem>>, vector<1x16x16x4xf32>
    %c0_3 = arith.constant 0 : index
    %c0_4 = arith.constant 0 : index
    %1 = vector.load %arg3[%c0_3, %c0_4] : memref<1x4xf32, #tpu.memory_space<vmem>>, vector<1x4xf32>
    %2 = vector.shape_cast %1 : vector<1x4xf32> to vector<1x1x1x4xf32>
    %3 = vector.broadcast %2 : vector<1x1x1x4xf32> to vector<1x16x16x4xf32>
    %4 = arith.mulf %0, %3 : vector<1x16x16x4xf32>
    %c0_5 = arith.constant 0 : index
    %c0_6 = arith.constant 0 : index
    %5 = vector.load %arg4[%c0_5, %c0_6] : memref<1x4xf32, #tpu.memory_space<vmem>>, vector<1x4xf32>
    %6 = vector.shape_cast %5 : vector<1x4xf32> to vector<1x1x1x4xf32>
    %7 = vector.broadcast %6 : vector<1x1x1x4xf32> to vector<1x16x16x4xf32>
    %8 = arith.addf %4, %7 : vector<1x16x16x4xf32>
    %c0_7 = arith.constant 0 : index
    %c0_8 = arith.constant 0 : index
    %c0_9 = arith.constant 0 : index
    %c0_10 = arith.constant 0 : index
    %9 = vector.load %arg2[%c0_7, %c0_8, %c0_9, %c0_10] : memref<1x16x16x4xf32, #tpu.memory_space<vmem>>, vector<1x16x16x4xf32>
    %10 = arith.addf %8, %9 : vector<1x16x16x4xf32>
    %cst = arith.constant 0.000000e+00 : f32
    %11 = vector.broadcast %cst : f32 to vector<1x16x16x4xf32>
    %12 = arith.maximumf %10, %11 : vector<1x16x16x4xf32>
    %c0_11 = arith.constant 0 : index
    %c0_12 = arith.constant 0 : index
    %c0_13 = arith.constant 0 : index
    %c0_14 = arith.constant 0 : index
    %13 = vector.load %arg5[%c0_11, %c0_12, %c0_13, %c0_14] : memref<1x16x16x4xf32, #tpu.memory_space<vmem>>, vector<1x16x16x4xf32>
    tpu.vector_store %arg5[%c0_11, %c0_12, %c0_13, %c0_14], %12 {strides = array<i32>} : memref<1x16x16x4xf32, #tpu.memory_space<vmem>>, vector<1x16x16x4xf32>,
    return
  }
  func.func @transform_0(%arg0: i32) -> (i32, i32, i32, i32) {
    %c0_i32 = arith.constant 0 : i32
    %c0_i32_0 = arith.constant 0 : i32
    %c0_i32_1 = arith.constant 0 : i32
    %c0_i32_2 = arith.constant 0 : i32
    return %arg0, %c0_i32, %c0_i32_0, %c0_i32_1 : i32, i32, i32, i32
  }
  func.func @transform_1(%arg0: i32) -> (i32, i32, i32, i32) {
    %c0_i32 = arith.constant 0 : i32
    %c0_i32_0 = arith.constant 0 : i32
    %c0_i32_1 = arith.constant 0 : i32
    %c0_i32_2 = arith.constant 0 : i32
    return %arg0, %c0_i32, %c0_i32_0, %c0_i32_1 : i32, i32, i32, i32
  }
  func.func @transform_2(%arg0: i32) -> (i32, i32) {
    %c0_i32 = arith.constant 0 : i32
    %c0_i32_0 = arith.constant 0 : i32
    %c0_i32_1 = arith.constant 0 : i32
    return %c0_i32, %c0_i32_0 : i32, i32
  }
  func.func @transform_3(%arg0: i32) -> (i32, i32) {
    %c0_i32 = arith.constant 0 : i32
    %c0_i32_0 = arith.constant 0 : i32
    %c0_i32_1 = arith.constant 0 : i32
    return %c0_i32, %c0_i32_0 : i32, i32
  }
  func.func @transform_4(%arg0: i32) -> (i32, i32, i32, i32) {
    %c0_i32 = arith.constant 0 : i32
    %c0_i32_0 = arith.constant 0 : i32
    %c0_i32_1 = arith.constant 0 : i32
    %c0_i32_2 = arith.constant 0 : i32
    return %arg0, %c0_i32, %c0_i32_0, %c0_i32_1 : i32, i32, i32, i32
  }
}

</mosaic_0001>

<llo_original>
// kernel: basic_block_forward.5
$region0: #{basic_block_forward.5}
  #allocation0 [shape = 'u32[]', space=smem, size = 0x4, offset = 0x4, fixed_abs, tag = 'smem constant byte address 0x4 - core index']
  #allocation1 [shape = 'u32[72,128]{1,0:T(1,128)}', space=vmem, size = 0x9000, scoped, tag = 'internal scratch']
  %s0 = inlined_call_operand.vmem [shape: f32[2,16,16,4], index: 0, kind: input, shape index: {}]
  %s1 = inlined_call_operand.vmem [shape: f32[2,16,16,4], index: 1, kind: input, shape index: {}]
  %s2 = inlined_call_operand.vmem [shape: f32[1,4], index: 2, kind: input, shape index: {}]
  %s3 = inlined_call_operand.vmem [shape: f32[1,4], index: 3, kind: input, shape index: {}]
  %s4 = inlined_call_operand.vmem [shape: f32[2,16,16,4], index: 4, kind: output, shape index: {}]
  %s5 = sld [smem:[#allocation0]]
  $region49: #{basic_block_forward.5} parent=0
    _
  %s7 = ssub.s32 1, %s5
  %s8 = scalar_select 0, %s7, %s5
  loop: start=0, step=1, limit=4
  $region2: #{basic_block_forward.5} parent=0 // loop_pre_header
    _
  $region3: #{basic_block_forward.5} parent=0 // loop_header
    %s10 = sphi 0, %s14
    %p11 = scmp.ge.s32.totalorder %s10, 4
    %s20 = sphi 0, %s22
    %s23 = sphi 0, %s20
    %s24 = sphi 0, %s23
    %s40 = sphi 0, %s24
    %s46 = sphi 0, %s48
    %s49 = sphi 0, %s46
    %s50 = sphi 0, %s49
    %s66 = sphi 0, %s50
    %s70 = sphi 0, %s70
    %s72 = sphi 0, %s70
    %s73 = sphi 0, %s72
    %s87 = sphi 0, %s73
    %s91 = sphi 0, %s91
    %s93 = sphi 0, %s91
    %s94 = sphi 0, %s93
    %s108 = sphi 0, %s94
    %s114 = sphi 0, %s116
    %s117 = sphi 0, %s114
    %s118 = sphi 0, %s117
    %s134 = sphi 0, %s118
  $region4: #{basic_block_forward.5} parent=0 // loop_header_branch
    %13 = sbr.rel (%p11) target = $region8
  $region5: #{basic_block_forward.5} parent=0 // loop_body
    %s15 = ssub.s32 %s10, 1
    %s16 = ssub.s32 %s10, 2
    %s17 = sadd.s32 %s10, 1
    %s18 = ssub.s32 %s10, %s17
    %p19 = scmp.eq.s32.totalorder %s18, 0
    %s21 = sadd.s32 %s20, 1
    %s22 = scalar_select %p19, %s20, %s21
    %p25 = pneg %p19
    %p26 = scmp.eq.s32.totalorder %s10, 1
    %p27 = por %p25, %p26
    %p28 = scmp.ne.s32.totalorder %s20, %s23
    %p29 = scmp.eq.s32.totalorder %s10, 0
    %p30 = por %p28, %p29
    %p31 = scmp.ne.s32.totalorder %s20, %s23
    %p32 = scmp.eq.s32.totalorder %s15, 1
    %p33 = por %p31, %p32
    %p34 = scmp.ne.s32.totalorder %s23, %s24
    %p35 = scmp.eq.s32.totalorder %s15, 0
    %p36 = por %p34, %p35
    %p37 = scmp.ne.s32.totalorder %s23, %s24
    %p38 = scmp.eq.s32.totalorder %s16, 1
    %p39 = por %p37, %p38
    %p41 = scmp.ne.s32.totalorder %s24, %s40
    %p42 = scmp.eq.s32.totalorder %s16, 0
    %p43 = por %p41, %p42
    %s44 = ssub.s32 %s10, %s17
    %p45 = scmp.eq.s32.totalorder %s44, 0
    %s47 = sadd.s32 %s46, 1
    %s48 = scalar_select %p45, %s46, %s47
    %p51 = pneg %p45
    %p52 = scmp.eq.s32.totalorder %s10, 1
    %p53 = por %p51, %p52
    %p54 = scmp.ne.s32.totalorder %s46, %s49
    %p55 = scmp.eq.s32.totalorder %s10, 0
    %p56 = por %p54, %p55
    %p57 = scmp.ne.s32.totalorder %s46, %s49
    %p58 = scmp.eq.s32.totalorder %s15, 1
    %p59 = por %p57, %p58
    %p60 = scmp.ne.s32.totalorder %s49, %s50
    %p61 = scmp.eq.s32.totalorder %s15, 0
    %p62 = por %p60, %p61
    %p63 = scmp.ne.s32.totalorder %s49, %s50
    %p64 = scmp.eq.s32.totalorder %s16, 1
    %p65 = por %p63, %p64
    %p67 = scmp.ne.s32.totalorder %s50, %s66
    %p68 = scmp.eq.s32.totalorder %s16, 0
    %p69 = por %p67, %p68
    %s71 = sadd.s32 %s70, 1
    %p74 = scmp.eq.s32.totalorder %s10, 1
    %p75 = scmp.ne.s32.totalorder %s70, %s72
    %p76 = scmp.eq.s32.totalorder %s10, 0
    %p77 = por %p75, %p76
    %p78 = scmp.ne.s32.totalorder %s70, %s72
    %p79 = scmp.eq.s32.totalorder %s15, 1
    %p80 = por %p78, %p79
    %p81 = scmp.ne.s32.totalorder %s72, %s73
    %p82 = scmp.eq.s32.totalorder %s15, 0
    %p83 = por %p81, %p82
    %p84 = scmp.ne.s32.totalorder %s72, %s73
    %p85 = scmp.eq.s32.totalorder %s16, 1
    %p86 = por %p84, %p85
    %p88 = scmp.ne.s32.totalorder %s73, %s87
    %p89 = scmp.eq.s32.totalorder %s16, 0
    %p90 = por %p88, %p89
    %s92 = sadd.s32 %s91, 1
    %p95 = scmp.eq.s32.totalorder %s10, 1
    %p96 = scmp.ne.s32.totalorder %s91, %s93
    %p97 = scmp.eq.s32.totalorder %s10, 0
    %p98 = por %p96, %p97
    %p99 = scmp.ne.s32.totalorder %s91, %s93
    %p100 = scmp.eq.s32.totalorder %s15, 1
    %p101 = por %p99, %p100
    %p102 = scmp.ne.s32.totalorder %s93, %s94
    %p103 = scmp.eq.s32.totalorder %s15, 0
    %p104 = por %p102, %p103
    %p105 = scmp.ne.s32.totalorder %s93, %s94
    %p106 = scmp.eq.s32.totalorder %s16, 1
    %p107 = por %p105, %p106
    %p109 = scmp.ne.s32.totalorder %s94, %s108
    %p110 = scmp.eq.s32.totalorder %s16, 0
    %p111 = por %p109, %p110
    %s112 = ssub.s32 %s10, %s17
    %p113 = scmp.eq.s32.totalorder %s112, 0
    %s115 = sadd.s32 %s114, 1
    %s116 = scalar_select %p113, %s114, %s115
    %p119 = pneg %p113
    %p120 = scmp.eq.s32.totalorder %s10, 1
    %p121 = por %p119, %p120
    %p122 = scmp.ne.s32.totalorder %s114, %s117
    %p123 = scmp.eq.s32.totalorder %s10, 0
    %p124 = por %p122, %p123
    %p125 = scmp.ne.s32.totalorder %s114, %s117
    %p126 = scmp.eq.s32.totalorder %s15, 1
    %p127 = por %p125, %p126
    %p128 = scmp.ne.s32.totalorder %s117, %s118
    %p129 = scmp.eq.s32.totalorder %s15, 0
    %p130 = por %p128, %p129
    %p131 = scmp.ne.s32.totalorder %s117, %s118
    %p132 = scmp.eq.s32.totalorder %s16, 1
    %p133 = por %p131, %p132
    %p135 = scmp.ne.s32.totalorder %s118, %s134
    %p136 = scmp.eq.s32.totalorder %s16, 0
    %p137 = por %p135, %p136
    %p138 = scmp.le.s32.totalorder 1, %s10
    %p139 = scmp.lt.s32.totalorder %s10, 3
    %p140 = pnand %p138, %p139
    %p141 = pneg %p140
    // Predicated region
    $region9: #{basic_block_forward.5} parent=5 // pred_check
      _
    $region10: #{basic_block_forward.5} parent=5 // pred_check_branch
      %143 = sbr.rel (%p140) target = $region12
    $region11: #{basic_block_forward.5} parent=5 // pred_region
      %s144 = ssub.s32 %s10, 1
      // Predicated region
      $region13: #{basic_block_forward.5} parent=11 // pred_check
        %p145 = pneg %p83
      $region14: #{basic_block_forward.5} parent=11 // pred_check_branch
        %147 = sbr.rel (%p145) target = $region16
      $region15: #{basic_block_forward.5} parent=11 // pred_region
        _
      $region16: #{basic_block_forward.5} parent=11 // pred_fallthru
        _
      // Predicated region
      $region17: #{basic_block_forward.5} parent=11 // pred_check
        %p148 = pneg %p104
      $region18: #{basic_block_forward.5} parent=11 // pred_check_branch
        %150 = sbr.rel (%p148) target = $region20
      $region19: #{basic_block_forward.5} parent=11 // pred_region
        _
      $region20: #{basic_block_forward.5} parent=11 // pred_fallthru
        _
    $region12: #{basic_block_forward.5} parent=5 // pred_fallthru
      _
    %p151 = scmp.lt.s32.totalorder %s10, 2
    // Predicated region
    $region21: #{basic_block_forward.5} parent=5 // pred_check
      %p152 = pneg %p151
    $region22: #{basic_block_forward.5} parent=5 // pred_check_branch
      %154 = sbr.rel (%p152) target = $region24
    $region23: #{basic_block_forward.5} parent=5 // pred_region
      // Predicated region
      $region25: #{basic_block_forward.5} parent=23 // pred_check
        %p155 = pneg %p30
      $region26: #{basic_block_forward.5} parent=23 // pred_check_branch
        %157 = sbr.rel (%p155) target = $region28
      $region27: #{basic_block_forward.5} parent=23 // pred_region
        %p158 = scmp.lt.s32.totalorder %s10, 1
        %s159 = scalar_select %p158, %s10, 1
        %s160 = smul.addr %s159, 32
        %s161 = smul.addr %s160, 8
        %s162 = scalar_lea.vmem %s0, %s161
      $region28: #{basic_block_forward.5} parent=23 // pred_fallthru
        _
      // Predicated region
      $region29: #{basic_block_forward.5} parent=23 // pred_check
        %p163 = pneg %p56
      $region30: #{basic_block_forward.5} parent=23 // pred_check_branch
        %165 = sbr.rel (%p163) target = $region32
      $region31: #{basic_block_forward.5} parent=23 // pred_region
        %p166 = scmp.lt.s32.totalorder %s10, 1
        %s167 = scalar_select %p166, %s10, 1
        %s168 = smul.addr %s167, 32
        %s169 = smul.addr %s168, 8
        %s170 = scalar_lea.vmem %s1, %s169
      $region32: #{basic_block_forward.5} parent=23 // pred_fallthru
        _
    $region24: #{basic_block_forward.5} parent=5 // pred_fallthru
      _
    %p171 = scmp.le.s32.totalorder 1, %s10
    %p172 = scmp.lt.s32.totalorder %s10, 3
    %p173 = pnand %p171, %p172
    %p174 = pneg %p173
    // Predicated region
    $region33: #{basic_block_forward.5} parent=5 // pred_check
      _
    $region34: #{basic_block_forward.5} parent=5 // pred_check_branch
      %176 = sbr.rel (%p173) target = $region36
    $region35: #{basic_block_forward.5} parent=5 // pred_region
      %s177 = ssub.s32 %s10, 1
      %p178 = scmp.lt.s32.totalorder %s15, 1
      %s179 = scalar_select %p178, %s15, 1
      %s180 = smul.addr %s179, 32
      %s181 = smul.addr %s180, 8
      %s182 = scalar_lea.vmem %s0, %s181
      %p183 = pneg %p36
      %p184 = pneg %p33
      %p185 = scmp.lt.s32.totalorder %s15, 1
      %s186 = scalar_select %p185, %s15, 1
      %s187 = smul.addr %s186, 32
      %s188 = smul.addr %s187, 8
      %s189 = scalar_lea.vmem %s1, %s188
      %p190 = pneg %p62
      %p191 = pneg %p59
      %p192 = pneg %p83
      %p193 = pneg %p80
      %p194 = pneg %p104
      %p195 = pneg %p101
      %p196 = pneg %p130
      %p197 = pneg %p127
      %p198 = scmp.lt.s32.totalorder %s15, 1
      %s199 = scalar_select %p198, %s15, 1
      %s200 = smul.addr %s199, 32
      %s201 = smul.addr %s200, 8
      %s202 = scalar_lea.vmem %s4, %s201
      %p203 = scmp.lt.s32.totalorder %s15, 1
      %s204 = scalar_select %p203, %s15, 1
      %s205 = smul.addr %s204, 32
      %s206 = smul.addr %s205, 8
      %s207 = scalar_lea.vmem %s0, %s206
      %p208 = scmp.lt.s32.totalorder %s15, 1
      %s209 = scalar_select %p208, %s15, 1
      %s210 = smul.addr %s209, 32
      %s211 = smul.addr %s210, 8
      %s212 = scalar_lea.vmem %s1, %s211
      %p213 = scmp.lt.s32.totalorder %s15, 1
      %s214 = scalar_select %p213, %s15, 1
      %s215 = smul.addr %s214, 32
      %s216 = smul.addr %s215, 8
      %s217 = scalar_lea.vmem %s4, %s216
      %v218 = vld [vmem:[%s207] sm:$0xff]
      %v219 = vld [vmem:[%s207 + $0x8] sm:$0xff]
      %v220 = vld [vmem:[%s207 + $0x10] sm:$0xff]
      %v221 = vld [vmem:[%s207 + $0x18] sm:$0xff]
      %v222 = vld [vmem:[%s207 + $0x20] sm:$0xff]
      %v223 = vld [vmem:[%s207 + $0x28] sm:$0xff]
      %v224 = vld [vmem:[%s207 + $0x30] sm:$0xff]
      %v225 = vld [vmem:[%s207 + $0x38] sm:$0xff]
      %v226 = vld [vmem:[%s207 + $0x40] sm:$0xff]
      %v227 = vld [vmem:[%s207 + $0x48] sm:$0xff]
      %v228 = vld [vmem:[%s207 + $0x50] sm:$0xff]
      %v229 = vld [vmem:[%s207 + $0x58] sm:$0xff]
      %v230 = vld [vmem:[%s207 + $0x60] sm:$0xff]
      %v231 = vld [vmem:[%s207 + $0x68] sm:$0xff]
      %v232 = vld [vmem:[%s207 + $0x70] sm:$0xff]
      %v233 = vld [vmem:[%s207 + $0x78] sm:$0xff]
      %v234 = vld [vmem:[%s207 + $0x80] sm:$0xff]
      %v235 = vld [vmem:[%s207 + $0x88] sm:$0xff]
      %v236 = vld [vmem:[%s207 + $0x90] sm:$0xff]
      %v237 = vld [vmem:[%s207 + $0x98] sm:$0xff]
      %v238 = vld [vmem:[%s207 + $0xa0] sm:$0xff]
      %v239 = vld [vmem:[%s207 + $0xa8] sm:$0xff]
      %v240 = vld [vmem:[%s207 + $0xb0] sm:$0xff]
      %v241 = vld [vmem:[%s207 + $0xb8] sm:$0xff]
      %v242 = vld [vmem:[%s207 + $0xc0] sm:$0xff]
      %v243 = vld [vmem:[%s207 + $0xc8] sm:$0xff]
      %v244 = vld [vmem:[%s207 + $0xd0] sm:$0xff]
      %v245 = vld [vmem:[%s207 + $0xd8] sm:$0xff]
      %v246 = vld [vmem:[%s207 + $0xe0] sm:$0xff]
      %v247 = vld [vmem:[%s207 + $0xe8] sm:$0xff]
      %v248 = vld [vmem:[%s207 + $0xf0] sm:$0xff]
      %v249 = vld [vmem:[%s207 + $0xf8] sm:$0xff]
      %v250 = vld [vmem:[%s2] sm:$0x1]
      %v252 = vperm.slane %v250, 0
      %v254 = vmul.f32 %v218, %v252
      %v255 = vmul.f32 %v219, %v252
      %v256 = vmul.f32 %v220, %v252
      %v257 = vmul.f32 %v221, %v252
      %v258 = vmul.f32 %v222, %v252
      %v259 = vmul.f32 %v223, %v252
      %v260 = vmul.f32 %v224, %v252
      %v261 = vmul.f32 %v225, %v252
      %v262 = vmul.f32 %v226, %v252
      %v263 = vmul.f32 %v227, %v252
      %v264 = vmul.f32 %v228, %v252
      %v265 = vmul.f32 %v229, %v252
      %v266 = vmul.f32 %v230, %v252
      %v267 = vmul.f32 %v231, %v252
      %v268 = vmul.f32 %v232, %v252
      %v269 = vmul.f32 %v233, %v252
      %v270 = vmul.f32 %v234, %v252
      %v271 = vmul.f32 %v235, %v252
      %v272 = vmul.f32 %v236, %v252
      %v273 = vmul.f32 %v237, %v252
      %v274 = vmul.f32 %v238, %v252
      %v275 = vmul.f32 %v239, %v252
      %v276 = vmul.f32 %v240, %v252
      %v277 = vmul.f32 %v241, %v252
      %v278 = vmul.f32 %v242, %v252
      %v279 = vmul.f32 %v243, %v252
      %v280 = vmul.f32 %v244, %v252
      %v281 = vmul.f32 %v245, %v252
      %v282 = vmul.f32 %v246, %v252
      %v283 = vmul.f32 %v247, %v252
      %v284 = vmul.f32 %v248, %v252
      %v285 = vmul.f32 %v249, %v252
      %v286 = vld [vmem:[%s3] sm:$0x1]
      %v288 = vperm.slane %v286, 0
      %v290 = vadd.f32 %v254, %v288
      %v291 = vadd.f32 %v255, %v288
      %v292 = vadd.f32 %v256, %v288
      %v293 = vadd.f32 %v257, %v288
      %v294 = vadd.f32 %v258, %v288
      %v295 = vadd.f32 %v259, %v288
      %v296 = vadd.f32 %v260, %v288
      %v297 = vadd.f32 %v261, %v288
      %v298 = vadd.f32 %v262, %v288
      %v299 = vadd.f32 %v263, %v288
      %v300 = vadd.f32 %v264, %v288
      %v301 = vadd.f32 %v265, %v288
      %v302 = vadd.f32 %v266, %v288
      %v303 = vadd.f32 %v267, %v288
      %v304 = vadd.f32 %v268, %v288
      %v305 = vadd.f32 %v269, %v288
      %v306 = vadd.f32 %v270, %v288
      %v307 = vadd.f32 %v271, %v288
      %v308 = vadd.f32 %v272, %v288
      %v309 = vadd.f32 %v273, %v288
      %v310 = vadd.f32 %v274, %v288
      %v311 = vadd.f32 %v275, %v288
      %v312 = vadd.f32 %v276, %v288
      %v313 = vadd.f32 %v277, %v288
      %v314 = vadd.f32 %v278, %v288
      %v315 = vadd.f32 %v279, %v288
      %v316 = vadd.f32 %v280, %v288
      %v317 = vadd.f32 %v281, %v288
      %v318 = vadd.f32 %v282, %v288
      %v319 = vadd.f32 %v283, %v288
      %v320 = vadd.f32 %v284, %v288
      %v321 = vadd.f32 %v285, %v288
      %v322 = vld [vmem:[%s212] sm:$0xff]
      %v323 = vld [vmem:[%s212 + $0x8] sm:$0xff]
      %v324 = vld [vmem:[%s212 + $0x10] sm:$0xff]
      %v325 = vld [vmem:[%s212 + $0x18] sm:$0xff]
      %v326 = vld [vmem:[%s212 + $0x20] sm:$0xff]
      %v327 = vld [vmem:[%s212 + $0x28] sm:$0xff]
      %v328 = vld [vmem:[%s212 + $0x30] sm:$0xff]
      %v329 = vld [vmem:[%s212 + $0x38] sm:$0xff]
      %v330 = vld [vmem:[%s212 + $0x40] sm:$0xff]
      %v331 = vld [vmem:[%s212 + $0x48] sm:$0xff]
      %v332 = vld [vmem:[%s212 + $0x50] sm:$0xff]
      %v333 = vld [vmem:[%s212 + $0x58] sm:$0xff]
      %v334 = vld [vmem:[%s212 + $0x60] sm:$0xff]
      %v335 = vld [vmem:[%s212 + $0x68] sm:$0xff]
      %v336 = vld [vmem:[%s212 + $0x70] sm:$0xff]
      %v337 = vld [vmem:[%s212 + $0x78] sm:$0xff]
      %v338 = vld [vmem:[%s212 + $0x80] sm:$0xff]
      %v339 = vld [vmem:[%s212 + $0x88] sm:$0xff]
      %v340 = vld [vmem:[%s212 + $0x90] sm:$0xff]
      %v341 = vld [vmem:[%s212 + $0x98] sm:$0xff]
      %v342 = vld [vmem:[%s212 + $0xa0] sm:$0xff]
      %v343 = vld [vmem:[%s212 + $0xa8] sm:$0xff]
      %v344 = vld [vmem:[%s212 + $0xb0] sm:$0xff]
      %v345 = vld [vmem:[%s212 + $0xb8] sm:$0xff]
      %v346 = vld [vmem:[%s212 + $0xc0] sm:$0xff]
      %v347 = vld [vmem:[%s212 + $0xc8] sm:$0xff]
      %v348 = vld [vmem:[%s212 + $0xd0] sm:$0xff]
      %v349 = vld [vmem:[%s212 + $0xd8] sm:$0xff]
      %v350 = vld [vmem:[%s212 + $0xe0] sm:$0xff]
      %v351 = vld [vmem:[%s212 + $0xe8] sm:$0xff]
      %v352 = vld [vmem:[%s212 + $0xf0] sm:$0xff]
      %v353 = vld [vmem:[%s212 + $0xf8] sm:$0xff]
      %v354 = vadd.f32 %v290, %v322
      %v355 = vadd.f32 %v291, %v323
      %v356 = vadd.f32 %v292, %v324
      %v357 = vadd.f32 %v293, %v325
      %v358 = vadd.f32 %v294, %v326
      %v359 = vadd.f32 %v295, %v327
      %v360 = vadd.f32 %v296, %v328
      %v361 = vadd.f32 %v297, %v329
      %v362 = vadd.f32 %v298, %v330
      %v363 = vadd.f32 %v299, %v331
      %v364 = vadd.f32 %v300, %v332
      %v365 = vadd.f32 %v301, %v333
      %v366 = vadd.f32 %v302, %v334
      %v367 = vadd.f32 %v303, %v335
      %v368 = vadd.f32 %v304, %v336
      %v369 = vadd.f32 %v305, %v337
      %v370 = vadd.f32 %v306, %v338
      %v371 = vadd.f32 %v307, %v339
      %v372 = vadd.f32 %v308, %v340
      %v373 = vadd.f32 %v309, %v341
      %v374 = vadd.f32 %v310, %v342
      %v375 = vadd.f32 %v311, %v343
      %v376 = vadd.f32 %v312, %v344
      %v377 = vadd.f32 %v313, %v345
      %v378 = vadd.f32 %v314, %v346
      %v379 = vadd.f32 %v315, %v347
      %v380 = vadd.f32 %v316, %v348
      %v381 = vadd.f32 %v317, %v349
      %v382 = vadd.f32 %v318, %v350
      %v383 = vadd.f32 %v319, %v351
      %v384 = vadd.f32 %v320, %v352
      %v385 = vadd.f32 %v321, %v353
      %v386 = vmax.f32 %v354, 0.0
      %v387 = vmax.f32 %v355, 0.0
      %v388 = vmax.f32 %v356, 0.0
      %v389 = vmax.f32 %v357, 0.0
      %v390 = vmax.f32 %v358, 0.0
      %v391 = vmax.f32 %v359, 0.0
      %v392 = vmax.f32 %v360, 0.0
      %v393 = vmax.f32 %v361, 0.0
      %v394 = vmax.f32 %v362, 0.0
      %v395 = vmax.f32 %v363, 0.0
      %v396 = vmax.f32 %v364, 0.0
      %v397 = vmax.f32 %v365, 0.0
      %v398 = vmax.f32 %v366, 0.0
      %v399 = vmax.f32 %v367, 0.0
      %v400 = vmax.f32 %v368, 0.0
      %v401 = vmax.f32 %v369, 0.0
      %v402 = vmax.f32 %v370, 0.0
      %v403 = vmax.f32 %v371, 0.0
      %v404 = vmax.f32 %v372, 0.0
      %v405 = vmax.f32 %v373, 0.0
      %v406 = vmax.f32 %v374, 0.0
      %v407 = vmax.f32 %v375, 0.0
      %v408 = vmax.f32 %v376, 0.0
      %v409 = vmax.f32 %v377, 0.0
      %v410 = vmax.f32 %v378, 0.0
      %v411 = vmax.f32 %v379, 0.0
      %v412 = vmax.f32 %v380, 0.0
      %v413 = vmax.f32 %v381, 0.0
      %v414 = vmax.f32 %v382, 0.0
      %v415 = vmax.f32 %v383, 0.0
      %v416 = vmax.f32 %v384, 0.0
      %v417 = vmax.f32 %v385, 0.0
      %vm418 = vcmask 31744
      %419 = vst.msk [vmem:[%s217] sm:$0xff] %vm418, %v386
      %420 = vst.msk [vmem:[%s217 + $0x8] sm:$0xff] %vm418, %v387
      %421 = vst.msk [vmem:[%s217 + $0x10] sm:$0xff] %vm418, %v388
      %422 = vst.msk [vmem:[%s217 + $0x18] sm:$0xff] %vm418, %v389
      %423 = vst.msk [vmem:[%s217 + $0x20] sm:$0xff] %vm418, %v390
      %424 = vst.msk [vmem:[%s217 + $0x28] sm:$0xff] %vm418, %v391
      %425 = vst.msk [vmem:[%s217 + $0x30] sm:$0xff] %vm418, %v392
      %426 = vst.msk [vmem:[%s217 + $0x38] sm:$0xff] %vm418, %v393
      %427 = vst.msk [vmem:[%s217 + $0x40] sm:$0xff] %vm418, %v394
      %428 = vst.msk [vmem:[%s217 + $0x48] sm:$0xff] %vm418, %v395
      %429 = vst.msk [vmem:[%s217 + $0x50] sm:$0xff] %vm418, %v396
      %430 = vst.msk [vmem:[%s217 + $0x58] sm:$0xff] %vm418, %v397
      %431 = vst.msk [vmem:[%s217 + $0x60] sm:$0xff] %vm418, %v398
      %432 = vst.msk [vmem:[%s217 + $0x68] sm:$0xff] %vm418, %v399
      %433 = vst.msk [vmem:[%s217 + $0x70] sm:$0xff] %vm418, %v400
      %434 = vst.msk [vmem:[%s217 + $0x78] sm:$0xff] %vm418, %v401
      %435 = vst.msk [vmem:[%s217 + $0x80] sm:$0xff] %vm418, %v402
      %436 = vst.msk [vmem:[%s217 + $0x88] sm:$0xff] %vm418, %v403
      %437 = vst.msk [vmem:[%s217 + $0x90] sm:$0xff] %vm418, %v404
      %438 = vst.msk [vmem:[%s217 + $0x98] sm:$0xff] %vm418, %v405
      %439 = vst.msk [vmem:[%s217 + $0xa0] sm:$0xff] %vm418, %v406
      %440 = vst.msk [vmem:[%s217 + $0xa8] sm:$0xff] %vm418, %v407
      %441 = vst.msk [vmem:[%s217 + $0xb0] sm:$0xff] %vm418, %v408
      %442 = vst.msk [vmem:[%s217 + $0xb8] sm:$0xff] %vm418, %v409
      %443 = vst.msk [vmem:[%s217 + $0xc0] sm:$0xff] %vm418, %v410
      %444 = vst.msk [vmem:[%s217 + $0xc8] sm:$0xff] %vm418, %v411
      %445 = vst.msk [vmem:[%s217 + $0xd0] sm:$0xff] %vm418, %v412
      %446 = vst.msk [vmem:[%s217 + $0xd8] sm:$0xff] %vm418, %v413
      %447 = vst.msk [vmem:[%s217 + $0xe0] sm:$0xff] %vm418, %v414
      %448 = vst.msk [vmem:[%s217 + $0xe8] sm:$0xff] %vm418, %v415
      %449 = vst.msk [vmem:[%s217 + $0xf0] sm:$0xff] %vm418, %v416
      %450 = vst.msk [vmem:[%s217 + $0xf8] sm:$0xff] %vm418, %v417
      %p451 = scmp.lt.s32.totalorder %s15, 1
      %s452 = scalar_select %p451, %s15, 1
      %s453 = smul.addr %s452, 32
      %s454 = smul.addr %s453, 8
      %s455 = scalar_lea.vmem %s4, %s454
      // Predicated region
      $region37: #{basic_block_forward.5} parent=35 // pred_check
        %p456 = pneg %p127
      $region38: #{basic_block_forward.5} parent=35 // pred_check_branch
        %458 = sbr.rel (%p456) target = $region40
      $region39: #{basic_block_forward.5} parent=35 // pred_region
        _
      $region40: #{basic_block_forward.5} parent=35 // pred_fallthru
        _
    $region36: #{basic_block_forward.5} parent=5 // pred_fallthru
      _
    %p459 = scmp.le.s32.totalorder 2, %s10
    // Predicated region
    $region41: #{basic_block_forward.5} parent=5 // pred_check
      %p460 = pneg %p459
    $region42: #{basic_block_forward.5} parent=5 // pred_check_branch
      %462 = sbr.rel (%p460) target = $region44
    $region43: #{basic_block_forward.5} parent=5 // pred_region
      %s463 = ssub.s32 %s10, 2
      // Predicated region
      $region45: #{basic_block_forward.5} parent=43 // pred_check
        %p464 = pneg %p133
      $region46: #{basic_block_forward.5} parent=43 // pred_check_branch
        %466 = sbr.rel (%p464) target = $region48
      $region47: #{basic_block_forward.5} parent=43 // pred_region
        %p467 = scmp.lt.s32.totalorder %s16, 1
        %s468 = scalar_select %p467, %s16, 1
        %s469 = smul.addr %s468, 32
        %s470 = smul.addr %s469, 8
        %s471 = scalar_lea.vmem %s4, %s470
      $region48: #{basic_block_forward.5} parent=43 // pred_fallthru
        _
    $region44: #{basic_block_forward.5} parent=5 // pred_fallthru
      _
  $region6: #{basic_block_forward.5} parent=0 // loop_footer
    %s14 = sadd.s32 1, %s10
  $region7: #{basic_block_forward.5} parent=0 // loop_footer_branch
    %9 = sbr.rel target = $region3
  $region8: #{basic_block_forward.5} parent=0 // loop_exit
    _

// kernel: basic_block_forward.3
$region0: #{basic_block_forward.3}
  #allocation0 [shape = 'u32[]', space=smem, size = 0x4, offset = 0x4, fixed_abs, tag = 'smem constant byte address 0x4 - core index']
  #allocation1 [shape = 'u32[72,128]{1,0:T(1,128)}', space=vmem, size = 0x9000, scoped, tag = 'internal scratch']
  #allocation2 [shape = 'f32[18,18,4]{2,1,0:T(8,128)}', space=vmem, size = 0x36000, scoped, tag = 'scratch operand']
  #allocation3 [shape = 'f32[256,36]{1,0:T(8,128)}', space=vmem, size = 0x20000, scoped, tag = 'scratch operand']
  %s0 = inlined_call_operand.vmem [shape: f32[2,16,16,4], index: 0, kind: input, shape index: {}]
  %s1 = inlined_call_operand.vmem [shape: f32[36,4], index: 1, kind: input, shape index: {}]
  %s2 = inlined_call_operand.vmem [shape: f32[2,16,16,4], index: 2, kind: output, shape index: {0}]
  %s3 = inlined_call_operand.vmem [shape: f32[2,2,4], index: 3, kind: output, shape index: {1}]
  %4 = xla_tuple %s2, %s3
  %s5 = sld [smem:[#allocation0]]
  $region49: #{basic_block_forward.3} parent=0
    _
  %s7 = ssub.s32 1, %s5
  %s8 = scalar_select 0, %s7, %s5
  loop: start=0, step=1, limit=4
  $region2: #{basic_block_forward.3} parent=0 // loop_pre_header
    _
  $region3: #{basic_block_forward.3} parent=0 // loop_header
    %s10 = sphi 0, %s14
    %p11 = scmp.ge.s32.totalorder %s10, 4
    %s20 = sphi 0, %s22
    %s23 = sphi 0, %s20
    %s24 = sphi 0, %s23
    %s40 = sphi 0, %s24
    %s44 = sphi 0, %s44
    %s46 = sphi 0, %s44
    %s47 = sphi 0, %s46
    %s61 = sphi 0, %s47
    %s67 = sphi 0, %s69
    %s70 = sphi 0, %s67
    %s71 = sphi 0, %s70
    %s87 = sphi 0, %s71
    %s93 = sphi 0, %s95
    %s96 = sphi 0, %s93
    %s97 = sphi 0, %s96
    %s113 = sphi 0, %s97
  $region4: #{basic_block_forward.3} parent=0 // loop_header_branch
    %13 = sbr.rel (%p11) target = $region8
  $region5: #{basic_block_forward.3} parent=0 // loop_body
    %s15 = ssub.s32 %s10, 1
    %s16 = ssub.s32 %s10, 2
    %s17 = sadd.s32 %s10, 1
    %s18 = ssub.s32 %s10, %s17
    %p19 = scmp.eq.s32.totalorder %s18, 0
    %s21 = sadd.s32 %s20, 1
    %s22 = scalar_select %p19, %s20, %s21
    %p25 = pneg %p19
    %p26 = scmp.eq.s32.totalorder %s10, 1
    %p27 = por %p25, %p26
    %p28 = scmp.ne.s32.totalorder %s20, %s23
    %p29 = scmp.eq.s32.totalorder %s10, 0
    %p30 = por %p28, %p29
    %p31 = scmp.ne.s32.totalorder %s20, %s23
    %p32 = scmp.eq.s32.totalorder %s15, 1
    %p33 = por %p31, %p32
    %p34 = scmp.ne.s32.totalorder %s23, %s24
    %p35 = scmp.eq.s32.totalorder %s15, 0
    %p36 = por %p34, %p35
    %p37 = scmp.ne.s32.totalorder %s23, %s24
    %p38 = scmp.eq.s32.totalorder %s16, 1
    %p39 = por %p37, %p38
    %p41 = scmp.ne.s32.totalorder %s24, %s40
    %p42 = scmp.eq.s32.totalorder %s16, 0
    %p43 = por %p41, %p42
    %s45 = sadd.s32 %s44, 1
    %p48 = scmp.eq.s32.totalorder %s10, 1
    %p49 = scmp.ne.s32.totalorder %s44, %s46
    %p50 = scmp.eq.s32.totalorder %s10, 0
    %p51 = por %p49, %p50
    %p52 = scmp.ne.s32.totalorder %s44, %s46
    %p53 = scmp.eq.s32.totalorder %s15, 1
    %p54 = por %p52, %p53
    %p55 = scmp.ne.s32.totalorder %s46, %s47
    %p56 = scmp.eq.s32.totalorder %s15, 0
    %p57 = por %p55, %p56
    %p58 = scmp.ne.s32.totalorder %s46, %s47
    %p59 = scmp.eq.s32.totalorder %s16, 1
    %p60 = por %p58, %p59
    %p62 = scmp.ne.s32.totalorder %s47, %s61
    %p63 = scmp.eq.s32.totalorder %s16, 0
    %p64 = por %p62, %p63
    %s65 = ssub.s32 %s10, %s17
    %p66 = scmp.eq.s32.totalorder %s65, 0
    %s68 = sadd.s32 %s67, 1
    %s69 = scalar_select %p66, %s67, %s68
    %p72 = pneg %p66
    %p73 = scmp.eq.s32.totalorder %s10, 1
    %p74 = por %p72, %p73
    %p75 = scmp.ne.s32.totalorder %s67, %s70
    %p76 = scmp.eq.s32.totalorder %s10, 0
    %p77 = por %p75, %p76
    %p78 = scmp.ne.s32.totalorder %s67, %s70
    %p79 = scmp.eq.s32.totalorder %s15, 1
    %p80 = por %p78, %p79
    %p81 = scmp.ne.s32.totalorder %s70, %s71
    %p82 = scmp.eq.s32.totalorder %s15, 0
    %p83 = por %p81, %p82
    %p84 = scmp.ne.s32.totalorder %s70, %s71
    %p85 = scmp.eq.s32.totalorder %s16, 1
    %p86 = por %p84, %p85
    %p88 = scmp.ne.s32.totalorder %s71, %s87
    %p89 = scmp.eq.s32.totalorder %s16, 0
    %p90 = por %p88, %p89
    %s91 = ssub.s32 %s10, %s17
    %p92 = scmp.eq.s32.totalorder %s91, 0
    %s94 = sadd.s32 %s93, 1
    %s95 = scalar_select %p92, %s93, %s94
    %p98 = pneg %p92
    %p99 = scmp.eq.s32.totalorder %s10, 1
    %p100 = por %p98, %p99
    %p101 = scmp.ne.s32.totalorder %s93, %s96
    %p102 = scmp.eq.s32.totalorder %s10, 0
    %p103 = por %p101, %p102
    %p104 = scmp.ne.s32.totalorder %s93, %s96
    %p105 = scmp.eq.s32.totalorder %s15, 1
    %p106 = por %p104, %p105
    %p107 = scmp.ne.s32.totalorder %s96, %s97
    %p108 = scmp.eq.s32.totalorder %s15, 0
    %p109 = por %p107, %p108
    %p110 = scmp.ne.s32.totalorder %s96, %s97
    %p111 = scmp.eq.s32.totalorder %s16, 1
    %p112 = por %p110, %p111
    %p114 = scmp.ne.s32.totalorder %s97, %s113
    %p115 = scmp.eq.s32.totalorder %s16, 0
    %p116 = por %p114, %p115
    %p117 = scmp.le.s32.totalorder 1, %s10
    %p118 = scmp.lt.s32.totalorder %s10, 3
    %p119 = pnand %p117, %p118
    %p120 = pneg %p119
    // Predicated region
    $region9: #{basic_block_forward.3} parent=5 // pred_check
      _
    $region10: #{basic_block_forward.3} parent=5 // pred_check_branch
      %122 = sbr.rel (%p119) target = $region12
    $region11: #{basic_block_forward.3} parent=5 // pred_region
      %s123 = ssub.s32 %s10, 1
      // Predicated region
      $region13: #{basic_block_forward.3} parent=11 // pred_check
        %p124 = pneg %p57
      $region14: #{basic_block_forward.3} parent=11 // pred_check_branch
        %126 = sbr.rel (%p124) target = $region16
      $region15: #{basic_block_forward.3} parent=11 // pred_region
        _
      $region16: #{basic_block_forward.3} parent=11 // pred_fallthru
        _
    $region12: #{basic_block_forward.3} parent=5 // pred_fallthru
      _
    %p127 = scmp.lt.s32.totalorder %s10, 2
    // Predicated region
    $region17: #{basic_block_forward.3} parent=5 // pred_check
      %p128 = pneg %p127
    $region18: #{basic_block_forward.3} parent=5 // pred_check_branch
      %130 = sbr.rel (%p128) target = $region20
    $region19: #{basic_block_forward.3} parent=5 // pred_region
      // Predicated region
      $region21: #{basic_block_forward.3} parent=19 // pred_check
        %p131 = pneg %p30
      $region22: #{basic_block_forward.3} parent=19 // pred_check_branch
        %133 = sbr.rel (%p131) target = $region24
      $region23: #{basic_block_forward.3} parent=19 // pred_region
        %p134 = scmp.lt.s32.totalorder %s10, 1
        %s135 = scalar_select %p134, %s10, 1
        %s136 = smul.addr %s135, 32
        %s137 = smul.addr %s136, 8
        %s138 = scalar_lea.vmem %s0, %s137
      $region24: #{basic_block_forward.3} parent=19 // pred_fallthru
        _
    $region20: #{basic_block_forward.3} parent=5 // pred_fallthru
      _
    %p139 = scmp.le.s32.totalorder 1, %s10
    %p140 = scmp.lt.s32.totalorder %s10, 3
    %p141 = pnand %p139, %p140
    %p142 = pneg %p141
    // Predicated region
    $region25: #{basic_block_forward.3} parent=5 // pred_check
      _
    $region26: #{basic_block_forward.3} parent=5 // pred_check_branch
      %144 = sbr.rel (%p141) target = $region28
    $region27: #{basic_block_forward.3} parent=5 // pred_region
      %s145 = ssub.s32 %s10, 1
      %p146 = scmp.lt.s32.totalorder %s15, 1
      %s147 = scalar_select %p146, %s15, 1
      %s148 = smul.addr %s147, 32
      %s149 = smul.addr %s148, 8
      %s150 = scalar_lea.vmem %s0, %s149
      %p151 = pneg %p36
      %p152 = pneg %p33
      %p153 = pneg %p57
      %p154 = pneg %p54
      %p155 = pneg %p83
      %p156 = pneg %p80
      %p157 = scmp.lt.s32.totalorder %s15, 1
      %s158 = scalar_select %p157, %s15, 1
      %s159 = smul.addr %s158, 32
      %s160 = smul.addr %s159, 8
      %s161 = scalar_lea.vmem %s2, %s160
      %p162 = pneg %p109
      %p163 = pneg %p106
      %p164 = scmp.lt.s32.totalorder %s15, 1
      %s165 = scalar_select %p164, %s15, 1
      %s166 = smul.addr %s165, 2
      %s167 = scalar_lea.vmem %s3, %s166
      %p168 = scmp.lt.s32.totalorder %s15, 1
      %s169 = scalar_select %p168, %s15, 1
      %s170 = smul.addr %s169, 32
      %s171 = smul.addr %s170, 8
      %s172 = scalar_lea.vmem %s0, %s171
      %p173 = scmp.lt.s32.totalorder %s15, 1
      %s174 = scalar_select %p173, %s15, 1
      %s175 = smul.addr %s174, 32
      %s176 = smul.addr %s175, 8
      %s177 = scalar_lea.vmem %s2, %s176
      %p178 = scmp.lt.s32.totalorder %s15, 1
      %s179 = scalar_select %p178, %s15, 1
      %s180 = smul.addr %s179, 2
      %s181 = scalar_lea.vmem %s3, %s180
      %v182 = vld [vmem:[%s172] sm:$0xff]
      %v183 = vld [vmem:[%s172 + $0x8] sm:$0xff]
      %v184 = vld [vmem:[%s172 + $0x10] sm:$0xff]
      %v185 = vld [vmem:[%s172 + $0x18] sm:$0xff]
      %v186 = vld [vmem:[%s172 + $0x20] sm:$0xff]
      %v187 = vld [vmem:[%s172 + $0x28] sm:$0xff]
      %v188 = vld [vmem:[%s172 + $0x30] sm:$0xff]
      %v189 = vld [vmem:[%s172 + $0x38] sm:$0xff]
      %v190 = vld [vmem:[%s172 + $0x40] sm:$0xff]
      %v191 = vld [vmem:[%s172 + $0x48] sm:$0xff]
      %v192 = vld [vmem:[%s172 + $0x50] sm:$0xff]
      %v193 = vld [vmem:[%s172 + $0x58] sm:$0xff]
      %v194 = vld [vmem:[%s172 + $0x60] sm:$0xff]
      %v195 = vld [vmem:[%s172 + $0x68] sm:$0xff]
      %v196 = vld [vmem:[%s172 + $0x70] sm:$0xff]
      %v197 = vld [vmem:[%s172 + $0x78] sm:$0xff]
      %v198 = vld [vmem:[%s172 + $0x80] sm:$0xff]
      %v199 = vld [vmem:[%s172 + $0x88] sm:$0xff]
      %v200 = vld [vmem:[%s172 + $0x90] sm:$0xff]
      %v201 = vld [vmem:[%s172 + $0x98] sm:$0xff]
      %v202 = vld [vmem:[%s172 + $0xa0] sm:$0xff]
      %v203 = vld [vmem:[%s172 + $0xa8] sm:$0xff]
      %v204 = vld [vmem:[%s172 + $0xb0] sm:$0xff]
      %v205 = vld [vmem:[%s172 + $0xb8] sm:$0xff]
      %v206 = vld [vmem:[%s172 + $0xc0] sm:$0xff]
      %v207 = vld [vmem:[%s172 + $0xc8] sm:$0xff]
      %v208 = vld [vmem:[%s172 + $0xd0] sm:$0xff]
      %v209 = vld [vmem:[%s172 + $0xd8] sm:$0xff]
      %v210 = vld [vmem:[%s172 + $0xe0] sm:$0xff]
      %v211 = vld [vmem:[%s172 + $0xe8] sm:$0xff]
      %v212 = vld [vmem:[%s172 + $0xf0] sm:$0xff]
      %v213 = vld [vmem:[%s172 + $0xf8] sm:$0xff]
      %vm214 = vcmask 31744
      %215 = vst.msk [vmem:[#allocation2] sm:$0xff] %vm214, 0.0
      %216 = vst.msk [vmem:[#allocation2 + $0x8] sm:$0xff] %vm214, 0.0
      %vm217 = vcmask 25600
      %218 = vst.msk [vmem:[#allocation2 + $0x10] sm:$0x3] %vm217, 0.0
      %219 = vst.msk [vmem:[#allocation2 + $0x18] sm:$0xff] %vm214, 0.0
      %220 = vst.msk [vmem:[#allocation2 + $0x20] sm:$0xff] %vm214, 0.0
      %221 = vst.msk [vmem:[#allocation2 + $0x28] sm:$0x3] %vm217, 0.0
      %222 = vst.msk [vmem:[#allocation2 + $0x30] sm:$0xff] %vm214, 0.0
      %223 = vst.msk [vmem:[#allocation2 + $0x38] sm:$0xff] %vm214, 0.0
      %224 = vst.msk [vmem:[#allocation2 + $0x40] sm:$0x3] %vm217, 0.0
      %225 = vst.msk [vmem:[#allocation2 + $0x48] sm:$0xff] %vm214, 0.0
      %226 = vst.msk [vmem:[#allocation2 + $0x50] sm:$0xff] %vm214, 0.0
      %227 = vst.msk [vmem:[#allocation2 + $0x58] sm:$0x3] %vm217, 0.0
      %228 = vst.msk [vmem:[#allocation2 + $0x60] sm:$0xff] %vm214, 0.0
      %229 = vst.msk [vmem:[#allocation2 + $0x68] sm:$0xff] %vm214, 0.0
      %230 = vst.msk [vmem:[#allocation2 + $0x70] sm:$0x3] %vm217, 0.0
      %231 = vst.msk [vmem:[#allocation2 + $0x78] sm:$0xff] %vm214, 0.0
      %232 = vst.msk [vmem:[#allocation2 + $0x80] sm:$0xff] %vm214, 0.0
      %233 = vst.msk [vmem:[#allocation2 + $0x88] sm:$0x3] %vm217, 0.0
      %234 = vst.msk [vmem:[#allocation2 + $0x90] sm:$0xff] %vm214, 0.0
      %235 = vst.msk [vmem:[#allocation2 + $0x98] sm:$0xff] %vm214, 0.0
      %236 = vst.msk [vmem:[#allocation2 + $0xa0] sm:$0x3] %vm217, 0.0
      %237 = vst.msk [vmem:[#allocation2 + $0xa8] sm:$0xff] %vm214, 0.0
      %238 = vst.msk [vmem:[#allocation2 + $0xb0] sm:$0xff] %vm214, 0.0
      %239 = vst.msk [vmem:[#allocation2 + $0xb8] sm:$0x3] %vm217, 0.0
      %240 = vst.msk [vmem:[#allocation2 + $0xc0] sm:$0xff] %vm214, 0.0
      %241 = vst.msk [vmem:[#allocation2 + $0xc8] sm:$0xff] %vm214, 0.0
      %242 = vst.msk [vmem:[#allocation2 + $0xd0] sm:$0x3] %vm217, 0.0
      %243 = vst.msk [vmem:[#allocation2 + $0xd8] sm:$0xff] %vm214, 0.0
      %244 = vst.msk [vmem:[#allocation2 + $0xe0] sm:$0xff] %vm214, 0.0
      %245 = vst.msk [vmem:[#allocation2 + $0xe8] sm:$0x3] %vm217, 0.0
      %246 = vst.msk [vmem:[#allocation2 + $0xf0] sm:$0xff] %vm214, 0.0
      %247 = vst.msk [vmem:[#allocation2 + $0xf8] sm:$0xff] %vm214, 0.0
      %248 = vst.msk [vmem:[#allocation2 + $0x100] sm:$0x3] %vm217, 0.0
      %249 = vst.msk [vmem:[#allocation2 + $0x108] sm:$0xff] %vm214, 0.0
      %250 = vst.msk [vmem:[#allocation2 + $0x110] sm:$0xff] %vm214, 0.0
      %251 = vst.msk [vmem:[#allocation2 + $0x118] sm:$0x3] %vm217, 0.0
      %252 = vst.msk [vmem:[#allocation2 + $0x120] sm:$0xff] %vm214, 0.0
      %253 = vst.msk [vmem:[#allocation2 + $0x128] sm:$0xff] %vm214, 0.0
      %254 = vst.msk [vmem:[#allocation2 + $0x130] sm:$0x3] %vm217, 0.0
      %255 = vst.msk [vmem:[#allocation2 + $0x138] sm:$0xff] %vm214, 0.0
      %256 = vst.msk [vmem:[#allocation2 + $0x140] sm:$0xff] %vm214, 0.0
      %257 = vst.msk [vmem:[#allocation2 + $0x148] sm:$0x3] %vm217, 0.0
      %258 = vst.msk [vmem:[#allocation2 + $0x150] sm:$0xff] %vm214, 0.0
      %259 = vst.msk [vmem:[#allocation2 + $0x158] sm:$0xff] %vm214, 0.0
      %260 = vst.msk [vmem:[#allocation2 + $0x160] sm:$0x3] %vm217, 0.0
      %261 = vst.msk [vmem:[#allocation2 + $0x168] sm:$0xff] %vm214, 0.0
      %262 = vst.msk [vmem:[#allocation2 + $0x170] sm:$0xff] %vm214, 0.0
      %263 = vst.msk [vmem:[#allocation2 + $0x178] sm:$0x3] %vm217, 0.0
      %264 = vst.msk [vmem:[#allocation2 + $0x180] sm:$0xff] %vm214, 0.0
      %265 = vst.msk [vmem:[#allocation2 + $0x188] sm:$0xff] %vm214, 0.0
      %266 = vst.msk [vmem:[#allocation2 + $0x190] sm:$0x3] %vm217, 0.0
      %267 = vst.msk [vmem:[#allocation2 + $0x198] sm:$0xff] %vm214, 0.0
      %268 = vst.msk [vmem:[#allocation2 + $0x1a0] sm:$0xff] %vm214, 0.0
      %269 = vst.msk [vmem:[#allocation2 + $0x1a8] sm:$0x3] %vm217, 0.0
      %s270 = scalar_lea.vmem [#allocation2], 24
      %271 = vst.msk [vmem:[%s270 + $0x1] sm:$0xff] %vm214, %v182
      %272 = vst.msk [vmem:[%s270 + $0x9] sm:$0xff] %vm214, %v183
      %273 = vst.msk [vmem:[%s270 + $0x19] sm:$0xff] %vm214, %v184
      %274 = vst.msk [vmem:[%s270 + $0x21] sm:$0xff] %vm214, %v185
      %275 = vst.msk [vmem:[%s270 + $0x31] sm:$0xff] %vm214, %v186
      %276 = vst.msk [vmem:[%s270 + $0x39] sm:$0xff] %vm214, %v187
      %277 = vst.msk [vmem:[%s270 + $0x49] sm:$0xff] %vm214, %v188
      %278 = vst.msk [vmem:[%s270 + $0x51] sm:$0xff] %vm214, %v189
      %279 = vst.msk [vmem:[%s270 + $0x61] sm:$0xff] %vm214, %v190
      %280 = vst.msk [vmem:[%s270 + $0x69] sm:$0xff] %vm214, %v191
      %281 = vst.msk [vmem:[%s270 + $0x79] sm:$0xff] %vm214, %v192
      %282 = vst.msk [vmem:[%s270 + $0x81] sm:$0xff] %vm214, %v193
      %283 = vst.msk [vmem:[%s270 + $0x91] sm:$0xff] %vm214, %v194
      %284 = vst.msk [vmem:[%s270 + $0x99] sm:$0xff] %vm214, %v195
      %285 = vst.msk [vmem:[%s270 + $0xa9] sm:$0xff] %vm214, %v196
      %286 = vst.msk [vmem:[%s270 + $0xb1] sm:$0xff] %vm214, %v197
      %287 = vst.msk [vmem:[%s270 + $0xc1] sm:$0xff] %vm214, %v198
      %288 = vst.msk [vmem:[%s270 + $0xc9] sm:$0xff] %vm214, %v199
      %289 = vst.msk [vmem:[%s270 + $0xd9] sm:$0xff] %vm214, %v200
      %290 = vst.msk [vmem:[%s270 + $0xe1] sm:$0xff] %vm214, %v201
      %291 = vst.msk [vmem:[%s270 + $0xf1] sm:$0xff] %vm214, %v202
      %292 = vst.msk [vmem:[%s270 + $0xf9] sm:$0xff] %vm214, %v203
      %293 = vst.msk [vmem:[%s270 + $0x109] sm:$0xff] %vm214, %v204
      %294 = vst.msk [vmem:[%s270 + $0x111] sm:$0xff] %vm214, %v205
      %295 = vst.msk [vmem:[%s270 + $0x121] sm:$0xff] %vm214, %v206
      %296 = vst.msk [vmem:[%s270 + $0x129] sm:$0xff] %vm214, %v207
      %297 = vst.msk [vmem:[%s270 + $0x139] sm:$0xff] %vm214, %v208
      %298 = vst.msk [vmem:[%s270 + $0x141] sm:$0xff] %vm214, %v209
      %299 = vst.msk [vmem:[%s270 + $0x151] sm:$0xff] %vm214, %v210
      %300 = vst.msk [vmem:[%s270 + $0x159] sm:$0xff] %vm214, %v211
      %301 = vst.msk [vmem:[%s270 + $0x169] sm:$0xff] %vm214, %v212
      %302 = vst.msk [vmem:[%s270 + $0x171] sm:$0xff] %vm214, %v213
      %v303 = vld [vmem:[#allocation2] sm:$0xff]
      %v304 = vld [vmem:[#allocation2 + $0x8] sm:$0xff]
      %v305 = vld [vmem:[#allocation2 + $0x10] sm:$0x3]
      %v306 = vld [vmem:[#allocation2 + $0x18] sm:$0xff]
      %v307 = vld [vmem:[#allocation2 + $0x20] sm:$0xff]
      %v308 = vld [vmem:[#allocation2 + $0x28] sm:$0x3]
      %v309 = vld [vmem:[#allocation2 + $0x30] sm:$0xff]
      %v310 = vld [vmem:[#allocation2 + $0x38] sm:$0xff]
      %v311 = vld [vmem:[#allocation2 + $0x40] sm:$0x3]
      %v312 = vld [vmem:[#allocation2 + $0x48] sm:$0xff]
      %v313 = vld [vmem:[#allocation2 + $0x50] sm:$0xff]
      %v314 = vld [vmem:[#allocation2 + $0x58] sm:$0x3]
      %v315 = vld [vmem:[#allocation2 + $0x60] sm:$0xff]
      %v316 = vld [vmem:[#allocation2 + $0x68] sm:$0xff]
      %v317 = vld [vmem:[#allocation2 + $0x70] sm:$0x3]
      %v318 = vld [vmem:[#allocation2 + $0x78] sm:$0xff]
      %v319 = vld [vmem:[#allocation2 + $0x80] sm:$0xff]
      %v320 = vld [vmem:[#allocation2 + $0x88] sm:$0x3]
      %v321 = vld [vmem:[#allocation2 + $0x90] sm:$0xff]
      %v322 = vld [vmem:[#allocation2 + $0x98] sm:$0xff]
      %v323 = vld [vmem:[#allocation2 + $0xa0] sm:$0x3]
      %v324 = vld [vmem:[#allocation2 + $0xa8] sm:$0xff]
      %v325 = vld [vmem:[#allocation2 + $0xb0] sm:$0xff]
      %v326 = vld [vmem:[#allocation2 + $0xb8] sm:$0x3]
      %v327 = vld [vmem:[#allocation2 + $0xc0] sm:$0xff]
      %v328 = vld [vmem:[#allocation2 + $0xc8] sm:$0xff]
      %v329 = vld [vmem:[#allocation2 + $0xd0] sm:$0x3]
      %v330 = vld [vmem:[#allocation2 + $0xd8] sm:$0xff]
      %v331 = vld [vmem:[#allocation2 + $0xe0] sm:$0xff]
      %v332 = vld [vmem:[#allocation2 + $0xe8] sm:$0x3]
      %v333 = vld [vmem:[#allocation2 + $0xf0] sm:$0xff]
      %v334 = vld [vmem:[#allocation2 + $0xf8] sm:$0xff]
      %v335 = vld [vmem:[#allocation2 + $0x100] sm:$0x3]
      %v336 = vld [vmem:[#allocation2 + $0x108] sm:$0xff]
      %v337 = vld [vmem:[#allocation2 + $0x110] sm:$0xff]
      %v338 = vld [vmem:[#allocation2 + $0x118] sm:$0x3]
      %v339 = vld [vmem:[#allocation2 + $0x120] sm:$0xff]
      %v340 = vld [vmem:[#allocation2 + $0x128] sm:$0xff]
      %v341 = vld [vmem:[#allocation2 + $0x130] sm:$0x3]
      %v342 = vld [vmem:[#allocation2 + $0x138] sm:$0xff]
      %v343 = vld [vmem:[#allocation2 + $0x140] sm:$0xff]
      %v344 = vld [vmem:[#allocation2 + $0x148] sm:$0x3]
      %v345 = vld [vmem:[#allocation2 + $0x150] sm:$0xff]
      %v346 = vld [vmem:[#allocation2 + $0x158] sm:$0xff]
      %v347 = vld [vmem:[#allocation2 + $0x160] sm:$0x3]
      %v348 = vld [vmem:[#allocation2 + $0x168] sm:$0xff]
      %v349 = vld [vmem:[#allocation2 + $0x170] sm:$0xff]
      %v350 = vld [vmem:[#allocation2 + $0x178] sm:$0x3]
      %v351 = vld [vmem:[#allocation2 + $0x180] sm:$0xff]
      %v352 = vld [vmem:[#allocation2 + $0x188] sm:$0xff]
      %v353 = vld [vmem:[#allocation2 + $0x190] sm:$0x3]
      %v354 = vld [vmem:[#allocation2 + $0x198] sm:$0xff]
      %v355 = vld [vmem:[#allocation2 + $0x1a0] sm:$0xff]
      %v356 = vld [vmem:[#allocation2 + $0x1a8] sm:$0x3]
      %357 = vst.msk [vmem:[#allocation3] sm:$0xff] %vm214, %v303
      %358 = vst.msk [vmem:[#allocation3 + $0x8] sm:$0xff] %vm214, %v304
      %359 = vst.msk [vmem:[#allocation3 + $0x10] sm:$0xff] %vm214, %v306
      %360 = vst.msk [vmem:[#allocation3 + $0x18] sm:$0xff] %vm214, %v307
      %361 = vst.msk [vmem:[#allocation3 + $0x20] sm:$0xff] %vm214, %v309
      %362 = vst.msk [vmem:[#allocation3 + $0x28] sm:$0xff] %vm214, %v310
      %363 = vst.msk [vmem:[#allocation3 + $0x30] sm:$0xff] %vm214, %v312
      %364 = vst.msk [vmem:[#allocation3 + $0x38] sm:$0xff] %vm214, %v313
      %365 = vst.msk [vmem:[#allocation3 + $0x40] sm:$0xff] %vm214, %v315
      %366 = vst.msk [vmem:[#allocation3 + $0x48] sm:$0xff] %vm214, %v316
      %367 = vst.msk [vmem:[#allocation3 + $0x50] sm:$0xff] %vm214, %v318
      %368 = vst.msk [vmem:[#allocation3 + $0x58] sm:$0xff] %vm214, %v319
      %369 = vst.msk [vmem:[#allocation3 + $0x60] sm:$0xff] %vm214, %v321
      %370 = vst.msk [vmem:[#allocation3 + $0x68] sm:$0xff] %vm214, %v322
      %371 = vst.msk [vmem:[#allocation3 + $0x70] sm:$0xff] %vm214, %v324
      %372 = vst.msk [vmem:[#allocation3 + $0x78] sm:$0xff] %vm214, %v325
      %373 = vst.msk [vmem:[#allocation3 + $0x80] sm:$0xff] %vm214, %v327
      %374 = vst.msk [vmem:[#allocation3 + $0x88] sm:$0xff] %vm214, %v328
      %375 = vst.msk [vmem:[#allocation3 + $0x90] sm:$0xff] %vm214, %v330
      %376 = vst.msk [vmem:[#allocation3 + $0x98] sm:$0xff] %vm214, %v331
      %377 = vst.msk [vmem:[#allocation3 + $0xa0] sm:$0xff] %vm214, %v333
      %378 = vst.msk [vmem:[#allocation3 + $0xa8] sm:$0xff] %vm214, %v334
      %379 = vst.msk [vmem:[#allocation3 + $0xb0] sm:$0xff] %vm214, %v336
      %380 = vst.msk [vmem:[#allocation3 + $0xb8] sm:$0xff] %vm214, %v337
      %381 = vst.msk [vmem:[#allocation3 + $0xc0] sm:$0xff] %vm214, %v339
      %382 = vst.msk [vmem:[#allocation3 + $0xc8] sm:$0xff] %vm214, %v340
      %383 = vst.msk [vmem:[#allocation3 + $0xd0] sm:$0xff] %vm214, %v342
      %384 = vst.msk [vmem:[#allocation3 + $0xd8] sm:$0xff] %vm214, %v343
      %385 = vst.msk [vmem:[#allocation3 + $0xe0] sm:$0xff] %vm214, %v345
      %386 = vst.msk [vmem:[#allocation3 + $0xe8] sm:$0xff] %vm214, %v346
      %387 = vst.msk [vmem:[#allocation3 + $0xf0] sm:$0xff] %vm214, %v348
      %388 = vst.msk [vmem:[#allocation3 + $0xf8] sm:$0xff] %vm214, %v349
      %vm437 = vcmask 1046528
      %v438 = vrot.slane %v303, 1
      %v439 = vrot.slane %v304, 1
      %v440 = vsel %vm437, %v438, %v439
      %v441 = vrot.slane %v305, 1
      %v442 = vsel %vm437, %v439, %v441
      %v443 = vrot.slane %v306, 1
      %v444 = vrot.slane %v307, 1
      %v445 = vsel %vm437, %v443, %v444
      %v446 = vrot.slane %v308, 1
      %v447 = vsel %vm437, %v444, %v446
      %v448 = vrot.slane %v309, 1
      %v449 = vrot.slane %v310, 1
      %v450 = vsel %vm437, %v448, %v449
      %v451 = vrot.slane %v311, 1
      %v452 = vsel %vm437, %v449, %v451
      %v453 = vrot.slane %v312, 1
      %v454 = vrot.slane %v313, 1
      %v455 = vsel %vm437, %v453, %v454
      %v456 = vrot.slane %v314, 1
      %v457 = vsel %vm437, %v454, %v456
      %v458 = vrot.slane %v315, 1
      %v459 = vrot.slane %v316, 1
      %v460 = vsel %vm437, %v458, %v459
      %v461 = vrot.slane %v317, 1
      %v462 = vsel %vm437, %v459, %v461
      %v463 = vrot.slane %v318, 1
      %v464 = vrot.slane %v319, 1
      %v465 = vsel %vm437, %v463, %v464
      %v466 = vrot.slane %v320, 1
      %v467 = vsel %vm437, %v464, %v466
      %v468 = vrot.slane %v321, 1
      %v469 = vrot.slane %v322, 1
      %v470 = vsel %vm437, %v468, %v469
      %v471 = vrot.slane %v323, 1
      %v472 = vsel %vm437, %v469, %v471
      %v473 = vrot.slane %v324, 1
      %v474 = vrot.slane %v325, 1
      %v475 = vsel %vm437, %v473, %v474
      %v476 = vrot.slane %v326, 1
      %v477 = vsel %vm437, %v474, %v476
      %v478 = vrot.slane %v327, 1
      %v479 = vrot.slane %v328, 1
      %v480 = vsel %vm437, %v478, %v479
      %v481 = vrot.slane %v329, 1
      %v482 = vsel %vm437, %v479, %v481
      %v483 = vrot.slane %v330, 1
      %v484 = vrot.slane %v331, 1
      %v485 = vsel %vm437, %v483, %v484
      %v486 = vrot.slane %v332, 1
      %v487 = vsel %vm437, %v484, %v486
      %v488 = vrot.slane %v333, 1
      %v489 = vrot.slane %v334, 1
      %v490 = vsel %vm437, %v488, %v489
      %v491 = vrot.slane %v335, 1
      %v492 = vsel %vm437, %v489, %v491
      %v493 = vrot.slane %v336, 1
      %v494 = vrot.slane %v337, 1
      %v495 = vsel %vm437, %v493, %v494
      %v496 = vrot.slane %v338, 1
      %v497 = vsel %vm437, %v494, %v496
      %v498 = vrot.slane %v339, 1
      %v499 = vrot.slane %v340, 1
      %v500 = vsel %vm437, %v498, %v499
      %v501 = vrot.slane %v341, 1
      %v502 = vsel %vm437, %v499, %v501
      %v503 = vrot.slane %v342, 1
      %v504 = vrot.slane %v343, 1
      %v505 = vsel %vm437, %v503, %v504
      %v506 = vrot.slane %v344, 1
      %v507 = vsel %vm437, %v504, %v506
      %v508 = vrot.slane %v345, 1
      %v509 = vrot.slane %v346, 1
      %v510 = vsel %vm437, %v508, %v509
      %v511 = vrot.slane %v347, 1
      %v512 = vsel %vm437, %v509, %v511
      %v513 = vrot.slane %v348, 1
      %v514 = vrot.slane %v349, 1
      %v515 = vsel %vm437, %v513, %v514
      %v516 = vrot.slane %v350, 1
      %v517 = vsel %vm437, %v514, %v516
      %518 = vrot.lane.b32.xlu0 %v440, 4
      %v519 = vpop.permute.xlu0 %518
      %520 = vrot.lane.b32.xlu0 %v442, 4
      %v521 = vpop.permute.xlu0 %520
      %522 = vrot.lane.b32.xlu0 %v445, 4
      %v523 = vpop.permute.xlu0 %522
      %524 = vrot.lane.b32.xlu0 %v447, 4
      %v525 = vpop.permute.xlu0 %524
      %526 = vrot.lane.b32.xlu0 %v450, 4
      %v527 = vpop.permute.xlu0 %526
      %528 = vrot.lane.b32.xlu0 %v452, 4
      %v529 = vpop.permute.xlu0 %528
      %530 = vrot.lane.b32.xlu0 %v455, 4
      %v531 = vpop.permute.xlu0 %530
      %532 = vrot.lane.b32.xlu0 %v457, 4
      %v533 = vpop.permute.xlu0 %532
      %534 = vrot.lane.b32.xlu0 %v460, 4
      %v535 = vpop.permute.xlu0 %534
      %536 = vrot.lane.b32.xlu0 %v462, 4
      %v537 = vpop.permute.xlu0 %536
      %538 = vrot.lane.b32.xlu0 %v465, 4
      %v539 = vpop.permute.xlu0 %538
      %540 = vrot.lane.b32.xlu0 %v467, 4
      %v541 = vpop.permute.xlu0 %540
      %542 = vrot.lane.b32.xlu0 %v470, 4
      %v543 = vpop.permute.xlu0 %542
      %544 = vrot.lane.b32.xlu0 %v472, 4
      %v545 = vpop.permute.xlu0 %544
      %546 = vrot.lane.b32.xlu0 %v475, 4
      %v547 = vpop.permute.xlu0 %546
      %548 = vrot.lane.b32.xlu0 %v477, 4
      %v549 = vpop.permute.xlu0 %548
      %550 = vrot.lane.b32.xlu0 %v480, 4
      %v551 = vpop.permute.xlu0 %550
      %552 = vrot.lane.b32.xlu0 %v482, 4
      %v553 = vpop.permute.xlu0 %552
      %554 = vrot.lane.b32.xlu0 %v485, 4
      %v555 = vpop.permute.xlu0 %554
      %556 = vrot.lane.b32.xlu0 %v487, 4
      %v557 = vpop.permute.xlu0 %556
      %558 = vrot.lane.b32.xlu0 %v490, 4
      %v559 = vpop.permute.xlu0 %558
      %560 = vrot.lane.b32.xlu0 %v492, 4
      %v561 = vpop.permute.xlu0 %560
      %562 = vrot.lane.b32.xlu0 %v495, 4
      %v563 = vpop.permute.xlu0 %562
      %564 = vrot.lane.b32.xlu0 %v497, 4
      %v565 = vpop.permute.xlu0 %564
      %566 = vrot.lane.b32.xlu0 %v500, 4
      %v567 = vpop.permute.xlu0 %566
      %568 = vrot.lane.b32.xlu0 %v502, 4
      %v569 = vpop.permute.xlu0 %568
      %570 = vrot.lane.b32.xlu0 %v505, 4
      %v571 = vpop.permute.xlu0 %570
      %572 = vrot.lane.b32.xlu0 %v507, 4
      %v573 = vpop.permute.xlu0 %572
      %574 = vrot.lane.b32.xlu0 %v510, 4
      %v575 = vpop.permute.xlu0 %574
      %576 = vrot.lane.b32.xlu0 %v512, 4
      %v577 = vpop.permute.xlu0 %576
      %578 = vrot.lane.b32.xlu0 %v515, 4
      %v579 = vpop.permute.xlu0 %578
      %580 = vrot.lane.b32.xlu0 %v517, 4
      %v581 = vpop.permute.xlu0 %580
      %vm614 = vcmask 64544
      %615 = vst.msk [vmem:[#allocation3] sm:$0xff] %vm614, %v519
      %616 = vst.msk [vmem:[#allocation3 + $0x8] sm:$0xff] %vm614, %v521
      %617 = vst.msk [vmem:[#allocation3 + $0x10] sm:$0xff] %vm614, %v523
      %618 = vst.msk [vmem:[#allocation3 + $0x18] sm:$0xff] %vm614, %v525
      %619 = vst.msk [vmem:[#allocation3 + $0x20] sm:$0xff] %vm614, %v527
      %620 = vst.msk [vmem:[#allocation3 + $0x28] sm:$0xff] %vm614, %v529
      %621 = vst.msk [vmem:[#allocation3 + $0x30] sm:$0xff] %vm614, %v531
      %622 = vst.msk [vmem:[#allocation3 + $0x38] sm:$0xff] %vm614, %v533
      %623 = vst.msk [vmem:[#allocation3 + $0x40] sm:$0xff] %vm614, %v535
      %624 = vst.msk [vmem:[#allocation3 + $0x48] sm:$0xff] %vm614, %v537
      %625 = vst.msk [vmem:[#allocation3 + $0x50] sm:$0xff] %vm614, %v539
      %626 = vst.msk [vmem:[#allocation3 + $0x58] sm:$0xff] %vm614, %v541
      %627 = vst.msk [vmem:[#allocation3 + $0x60] sm:$0xff] %vm614, %v543
      %628 = vst.msk [vmem:[#allocation3 + $0x68] sm:$0xff] %vm614, %v545
      %629 = vst.msk [vmem:[#allocation3 + $0x70] sm:$0xff] %vm614, %v547
      %630 = vst.msk [vmem:[#allocation3 + $0x78] sm:$0xff] %vm614, %v549
      %631 = vst.msk [vmem:[#allocation3 + $0x80] sm:$0xff] %vm614, %v551
      %632 = vst.msk [vmem:[#allocation3 + $0x88] sm:$0xff] %vm614, %v553
      %633 = vst.msk [vmem:[#allocation3 + $0x90] sm:$0xff] %vm614, %v555
      %634 = vst.msk [vmem:[#allocation3 + $0x98] sm:$0xff] %vm614, %v557
      %635 = vst.msk [vmem:[#allocation3 + $0xa0] sm:$0xff] %vm614, %v559
      %636 = vst.msk [vmem:[#allocation3 + $0xa8] sm:$0xff] %vm614, %v561
      %637 = vst.msk [vmem:[#allocation3 + $0xb0] sm:$0xff] %vm614, %v563
      %638 = vst.msk [vmem:[#allocation3 + $0xb8] sm:$0xff] %vm614, %v565
      %639 = vst.msk [vmem:[#allocation3 + $0xc0] sm:$0xff] %vm614, %v567
      %640 = vst.msk [vmem:[#allocation3 + $0xc8] sm:$0xff] %vm614, %v569
      %641 = vst.msk [vmem:[#allocation3 + $0xd0] sm:$0xff] %vm614, %v571
      %642 = vst.msk [vmem:[#allocation3 + $0xd8] sm:$0xff] %vm614, %v573
      %643 = vst.msk [vmem:[#allocation3 + $0xe0] sm:$0xff] %vm614, %v575
      %644 = vst.msk [vmem:[#allocation3 + $0xe8] sm:$0xff] %vm614, %v577
      %645 = vst.msk [vmem:[#allocation3 + $0xf0] sm:$0xff] %vm614, %v579
      %646 = vst.msk [vmem:[#allocation3 + $0xf8] sm:$0xff] %vm614, %v581
      %vm647 = vcmask 1045504
      %v648 = vrot.slane %v303, 2
      %v649 = vrot.slane %v304, 2
      %v650 = vsel %vm647, %v648, %v649
      %v651 = vrot.slane %v305, 2
      %v652 = vsel %vm647, %v649, %v651
      %v653 = vrot.slane %v306, 2
      %v654 = vrot.slane %v307, 2
      %v655 = vsel %vm647, %v653, %v654
      %v656 = vrot.slane %v308, 2
      %v657 = vsel %vm647, %v654, %v656
      %v658 = vrot.slane %v309, 2
      %v659 = vrot.slane %v310, 2
      %v660 = vsel %vm647, %v658, %v659
      %v661 = vrot.slane %v311, 2
      %v662 = vsel %vm647, %v659, %v661
      %v663 = vrot.slane %v312, 2
      %v664 = vrot.slane %v313, 2
      %v665 = vsel %vm647, %v663, %v664
      %v666 = vrot.slane %v314, 2
      %v667 = vsel %vm647, %v664, %v666
      %v668 = vrot.slane %v315, 2
      %v669 = vrot.slane %v316, 2
      %v670 = vsel %vm647, %v668, %v669
      %v671 = vrot.slane %v317, 2
      %v672 = vsel %vm647, %v669, %v671
      %v673 = vrot.slane %v318, 2
      %v674 = vrot.slane %v319, 2
      %v675 = vsel %vm647, %v673, %v674
      %v676 = vrot.slane %v320, 2
      %v677 = vsel %vm647, %v674, %v676
      %v678 = vrot.slane %v321, 2
      %v679 = vrot.slane %v322, 2
      %v680 = vsel %vm647, %v678, %v679
      %v681 = vrot.slane %v323, 2
      %v682 = vsel %vm647, %v679, %v681
      %v683 = vrot.slane %v324, 2
      %v684 = vrot.slane %v325, 2
      %v685 = vsel %vm647, %v683, %v684
      %v686 = vrot.slane %v326, 2
      %v687 = vsel %vm647, %v684, %v686
      %v688 = vrot.slane %v327, 2
      %v689 = vrot.slane %v328, 2
      %v690 = vsel %vm647, %v688, %v689
      %v691 = vrot.slane %v329, 2
      %v692 = vsel %vm647, %v689, %v691
      %v693 = vrot.slane %v330, 2
      %v694 = vrot.slane %v331, 2
      %v695 = vsel %vm647, %v693, %v694
      %v696 = vrot.slane %v332, 2
      %v697 = vsel %vm647, %v694, %v696
      %v698 = vrot.slane %v333, 2
      %v699 = vrot.slane %v334, 2
      %v700 = vsel %vm647, %v698, %v699
      %v701 = vrot.slane %v335, 2
      %v702 = vsel %vm647, %v699, %v701
      %v703 = vrot.slane %v336, 2
      %v704 = vrot.slane %v337, 2
      %v705 = vsel %vm647, %v703, %v704
      %v706 = vrot.slane %v338, 2
      %v707 = vsel %vm647, %v704, %v706
      %v708 = vrot.slane %v339, 2
      %v709 = vrot.slane %v340, 2
      %v710 = vsel %vm647, %v708, %v709
      %v711 = vrot.slane %v341, 2
      %v712 = vsel %vm647, %v709, %v711
      %v713 = vrot.slane %v342, 2
      %v714 = vrot.slane %v343, 2
      %v715 = vsel %vm647, %v713, %v714
      %v716 = vrot.slane %v344, 2
      %v717 = vsel %vm647, %v714, %v716
      %v718 = vrot.slane %v345, 2
      %v719 = vrot.slane %v346, 2
      %v720 = vsel %vm647, %v718, %v719
      %v721 = vrot.slane %v347, 2
      %v722 = vsel %vm647, %v719, %v721
      %v723 = vrot.slane %v348, 2
      %v724 = vrot.slane %v349, 2
      %v725 = vsel %vm647, %v723, %v724
      %v726 = vrot.slane %v350, 2
      %v727 = vsel %vm647, %v724, %v726
      %728 = vrot.lane.b32.xlu0 %v650, 8
      %v729 = vpop.permute.xlu0 %728
      %730 = vrot.lane.b32.xlu0 %v652, 8
      %v731 = vpop.permute.xlu0 %730
      %732 = vrot.lane.b32.xlu0 %v655, 8
      %v733 = vpop.permute.xlu0 %732
      %734 = vrot.lane.b32.xlu0 %v657, 8
      %v735 = vpop.permute.xlu0 %734
      %736 = vrot.lane.b32.xlu0 %v660, 8
      %v737 = vpop.permute.xlu0 %736
      %738 = vrot.lane.b32.xlu0 %v662, 8
      %v739 = vpop.permute.xlu0 %738
      %740 = vrot.lane.b32.xlu0 %v665, 8
      %v741 = vpop.permute.xlu0 %740
      %742 = vrot.lane.b32.xlu0 %v667, 8
      %v743 = vpop.permute.xlu0 %742
      %744 = vrot.lane.b32.xlu0 %v670, 8
      %v745 = vpop.permute.xlu0 %744
      %746 = vrot.lane.b32.xlu0 %v672, 8
      %v747 = vpop.permute.xlu0 %746
      %748 = vrot.lane.b32.xlu0 %v675, 8
      %v749 = vpop.permute.xlu0 %748
      %750 = vrot.lane.b32.xlu0 %v677, 8
      %v751 = vpop.permute.xlu0 %750
      %752 = vrot.lane.b32.xlu0 %v680, 8
      %v753 = vpop.permute.xlu0 %752
      %754 = vrot.lane.b32.xlu0 %v682, 8
      %v755 = vpop.permute.xlu0 %754
      %756 = vrot.lane.b32.xlu0 %v685, 8
      %v757 = vpop.permute.xlu0 %756
      %758 = vrot.lane.b32.xlu0 %v687, 8
      %v759 = vpop.permute.xlu0 %758
      %760 = vrot.lane.b32.xlu0 %v690, 8
      %v761 = vpop.permute.xlu0 %760
      %762 = vrot.lane.b32.xlu0 %v692, 8
      %v763 = vpop.permute.xlu0 %762
      %764 = vrot.lane.b32.xlu0 %v695, 8
      %v765 = vpop.permute.xlu0 %764
      %766 = vrot.lane.b32.xlu0 %v697, 8
      %v767 = vpop.permute.xlu0 %766
      %768 = vrot.lane.b32.xlu0 %v700, 8
      %v769 = vpop.permute.xlu0 %768
      %770 = vrot.lane.b32.xlu0 %v702, 8
      %v771 = vpop.permute.xlu0 %770
      %772 = vrot.lane.b32.xlu0 %v705, 8
      %v773 = vpop.permute.xlu0 %772
      %774 = vrot.lane.b32.xlu0 %v707, 8
      %v775 = vpop.permute.xlu0 %774
      %776 = vrot.lane.b32.xlu0 %v710, 8
      %v777 = vpop.permute.xlu0 %776
      %778 = vrot.lane.b32.xlu0 %v712, 8
      %v779 = vpop.permute.xlu0 %778
      %780 = vrot.lane.b32.xlu0 %v715, 8
      %v781 = vpop.permute.xlu0 %780
      %782 = vrot.lane.b32.xlu0 %v717, 8
      %v783 = vpop.permute.xlu0 %782
      %784 = vrot.lane.b32.xlu0 %v720, 8
      %v785 = vpop.permute.xlu0 %784
      %786 = vrot.lane.b32.xlu0 %v722, 8
      %v787 = vpop.permute.xlu0 %786
      %788 = vrot.lane.b32.xlu0 %v725, 8
      %v789 = vpop.permute.xlu0 %788
      %790 = vrot.lane.b32.xlu0 %v727, 8
      %v791 = vpop.permute.xlu0 %790
      %vm824 = vcmask 97344
      %825 = vst.msk [vmem:[#allocation3] sm:$0xff] %vm824, %v729
      %826 = vst.msk [vmem:[#allocation3 + $0x8] sm:$0xff] %vm824, %v731
      %827 = vst.msk [vmem:[#allocation3 + $0x10] sm:$0xff] %vm824, %v733
      %828 = vst.msk [vmem:[#allocation3 + $0x18] sm:$0xff] %vm824, %v735
      %829 = vst.msk [vmem:[#allocation3 + $0x20] sm:$0xff] %vm824, %v737
      %830 = vst.msk [vmem:[#allocation3 + $0x28] sm:$0xff] %vm824, %v739
      %831 = vst.msk [vmem:[#allocation3 + $0x30] sm:$0xff] %vm824, %v741
      %832 = vst.msk [vmem:[#allocation3 + $0x38] sm:$0xff] %vm824, %v743
      %833 = vst.msk [vmem:[#allocation3 + $0x40] sm:$0xff] %vm824, %v745
      %834 = vst.msk [vmem:[#allocation3 + $0x48] sm:$0xff] %vm824, %v747
      %835 = vst.msk [vmem:[#allocation3 + $0x50] sm:$0xff] %vm824, %v749
      %836 = vst.msk [vmem:[#allocation3 + $0x58] sm:$0xff] %vm824, %v751
      %837 = vst.msk [vmem:[#allocation3 + $0x60] sm:$0xff] %vm824, %v753
      %838 = vst.msk [vmem:[#allocation3 + $0x68] sm:$0xff] %vm824, %v755
      %839 = vst.msk [vmem:[#allocation3 + $0x70] sm:$0xff] %vm824, %v757
      %840 = vst.msk [vmem:[#allocation3 + $0x78] sm:$0xff] %vm824, %v759
      %841 = vst.msk [vmem:[#allocation3 + $0x80] sm:$0xff] %vm824, %v761
      %842 = vst.msk [vmem:[#allocation3 + $0x88] sm:$0xff] %vm824, %v763
      %843 = vst.msk [vmem:[#allocation3 + $0x90] sm:$0xff] %vm824, %v765
      %844 = vst.msk [vmem:[#allocation3 + $0x98] sm:$0xff] %vm824, %v767
      %845 = vst.msk [vmem:[#allocation3 + $0xa0] sm:$0xff] %vm824, %v769
      %846 = vst.msk [vmem:[#allocation3 + $0xa8] sm:$0xff] %vm824, %v771
      %847 = vst.msk [vmem:[#allocation3 + $0xb0] sm:$0xff] %vm824, %v773
      %848 = vst.msk [vmem:[#allocation3 + $0xb8] sm:$0xff] %vm824, %v775
      %849 = vst.msk [vmem:[#allocation3 + $0xc0] sm:$0xff] %vm824, %v777
      %850 = vst.msk [vmem:[#allocation3 + $0xc8] sm:$0xff] %vm824, %v779
      %851 = vst.msk [vmem:[#allocation3 + $0xd0] sm:$0xff] %vm824, %v781
      %852 = vst.msk [vmem:[#allocation3 + $0xd8] sm:$0xff] %vm824, %v783
      %853 = vst.msk [vmem:[#allocation3 + $0xe0] sm:$0xff] %vm824, %v785
      %854 = vst.msk [vmem:[#allocation3 + $0xe8] sm:$0xff] %vm824, %v787
      %855 = vst.msk [vmem:[#allocation3 + $0xf0] sm:$0xff] %vm824, %v789
      %856 = vst.msk [vmem:[#allocation3 + $0xf8] sm:$0xff] %vm824, %v791
      %859 = vrot.lane.b32.xlu0 %v306, 12
      %v860 = vpop.permute.xlu0 %859
      %861 = vrot.lane.b32.xlu0 %v307, 12
      %v862 = vpop.permute.xlu0 %861
      %863 = vrot.lane.b32.xlu0 %v309, 12
      %v864 = vpop.permute.xlu0 %863
      %865 = vrot.lane.b32.xlu0 %v310, 12
      %v866 = vpop.permute.xlu0 %865
      %867 = vrot.lane.b32.xlu0 %v312, 12
      %v868 = vpop.permute.xlu0 %867
      %869 = vrot.lane.b32.xlu0 %v313, 12
      %v870 = vpop.permute.xlu0 %869
      %871 = vrot.lane.b32.xlu0 %v315, 12
      %v872 = vpop.permute.xlu0 %871
      %873 = vrot.lane.b32.xlu0 %v316, 12
      %v874 = vpop.permute.xlu0 %873
      %875 = vrot.lane.b32.xlu0 %v318, 12
      %v876 = vpop.permute.xlu0 %875
      %877 = vrot.lane.b32.xlu0 %v319, 12
      %v878 = vpop.permute.xlu0 %877
      %879 = vrot.lane.b32.xlu0 %v321, 12
      %v880 = vpop.permute.xlu0 %879
      %881 = vrot.lane.b32.xlu0 %v322, 12
      %v882 = vpop.permute.xlu0 %881
      %883 = vrot.lane.b32.xlu0 %v324, 12
      %v884 = vpop.permute.xlu0 %883
      %885 = vrot.lane.b32.xlu0 %v325, 12
      %v886 = vpop.permute.xlu0 %885
      %887 = vrot.lane.b32.xlu0 %v327, 12
      %v888 = vpop.permute.xlu0 %887
      %889 = vrot.lane.b32.xlu0 %v328, 12
      %v890 = vpop.permute.xlu0 %889
      %891 = vrot.lane.b32.xlu0 %v330, 12
      %v892 = vpop.permute.xlu0 %891
      %893 = vrot.lane.b32.xlu0 %v331, 12
      %v894 = vpop.permute.xlu0 %893
      %895 = vrot.lane.b32.xlu0 %v333, 12
      %v896 = vpop.permute.xlu0 %895
      %897 = vrot.lane.b32.xlu0 %v334, 12
      %v898 = vpop.permute.xlu0 %897
      %899 = vrot.lane.b32.xlu0 %v336, 12
      %v900 = vpop.permute.xlu0 %899
      %901 = vrot.lane.b32.xlu0 %v337, 12
      %v902 = vpop.permute.xlu0 %901
      %903 = vrot.lane.b32.xlu0 %v339, 12
      %v904 = vpop.permute.xlu0 %903
      %905 = vrot.lane.b32.xlu0 %v340, 12
      %v906 = vpop.permute.xlu0 %905
      %907 = vrot.lane.b32.xlu0 %v342, 12
      %v908 = vpop.permute.xlu0 %907
      %909 = vrot.lane.b32.xlu0 %v343, 12
      %v910 = vpop.permute.xlu0 %909
      %911 = vrot.lane.b32.xlu0 %v345, 12
      %v912 = vpop.permute.xlu0 %911
      %913 = vrot.lane.b32.xlu0 %v346, 12
      %v914 = vpop.permute.xlu0 %913
      %915 = vrot.lane.b32.xlu0 %v348, 12
      %v916 = vpop.permute.xlu0 %915
      %917 = vrot.lane.b32.xlu0 %v349, 12
      %v918 = vpop.permute.xlu0 %917
      %919 = vrot.lane.b32.xlu0 %v351, 12
      %v920 = vpop.permute.xlu0 %919
      %921 = vrot.lane.b32.xlu0 %v352, 12
      %v922 = vpop.permute.xlu0 %921
      %vm955 = vcmask 130144
      %956 = vst.msk [vmem:[#allocation3] sm:$0xff] %vm955, %v860
      %957 = vst.msk [vmem:[#allocation3 + $0x8] sm:$0xff] %vm955, %v862
      %958 = vst.msk [vmem:[#allocation3 + $0x10] sm:$0xff] %vm955, %v864
      %959 = vst.msk [vmem:[#allocation3 + $0x18] sm:$0xff] %vm955, %v866
      %960 = vst.msk [vmem:[#allocation3 + $0x20] sm:$0xff] %vm955, %v868
      %961 = vst.msk [vmem:[#allocation3 + $0x28] sm:$0xff] %vm955, %v870
      %962 = vst.msk [vmem:[#allocation3 + $0x30] sm:$0xff] %vm955, %v872
      %963 = vst.msk [vmem:[#allocation3 + $0x38] sm:$0xff] %vm955, %v874
      %964 = vst.msk [vmem:[#allocation3 + $0x40] sm:$0xff] %vm955, %v876
      %965 = vst.msk [vmem:[#allocation3 + $0x48] sm:$0xff] %vm955, %v878
      %966 = vst.msk [vmem:[#allocation3 + $0x50] sm:$0xff] %vm955, %v880
      %967 = vst.msk [vmem:[#allocation3 + $0x58] sm:$0xff] %vm955, %v882
      %968 = vst.msk [vmem:[#allocation3 + $0x60] sm:$0xff] %vm955, %v884
      %969 = vst.msk [vmem:[#allocation3 + $0x68] sm:$0xff] %vm955, %v886
      %970 = vst.msk [vmem:[#allocation3 + $0x70] sm:$0xff] %vm955, %v888
      %971 = vst.msk [vmem:[#allocation3 + $0x78] sm:$0xff] %vm955, %v890
      %972 = vst.msk [vmem:[#allocation3 + $0x80] sm:$0xff] %vm955, %v892
      %973 = vst.msk [vmem:[#allocation3 + $0x88] sm:$0xff] %vm955, %v894
      %974 = vst.msk [vmem:[#allocation3 + $0x90] sm:$0xff] %vm955, %v896
      %975 = vst.msk [vmem:[#allocation3 + $0x98] sm:$0xff] %vm955, %v898
      %976 = vst.msk [vmem:[#allocation3 + $0xa0] sm:$0xff] %vm955, %v900
      %977 = vst.msk [vmem:[#allocation3 + $0xa8] sm:$0xff] %vm955, %v902
      %978 = vst.msk [vmem:[#allocation3 + $0xb0] sm:$0xff] %vm955, %v904
      %979 = vst.msk [vmem:[#allocation3 + $0xb8] sm:$0xff] %vm955, %v906
      %980 = vst.msk [vmem:[#allocation3 + $0xc0] sm:$0xff] %vm955, %v908
      %981 = vst.msk [vmem:[#allocation3 + $0xc8] sm:$0xff] %vm955, %v910
      %982 = vst.msk [vmem:[#allocation3 + $0xd0] sm:$0xff] %vm955, %v912
      %983 = vst.msk [vmem:[#allocation3 + $0xd8] sm:$0xff] %vm955, %v914
      %984 = vst.msk [vmem:[#allocation3 + $0xe0] sm:$0xff] %vm955, %v916
      %985 = vst.msk [vmem:[#allocation3 + $0xe8] sm:$0xff] %vm955, %v918
      %986 = vst.msk [vmem:[#allocation3 + $0xf0] sm:$0xff] %vm955, %v920
      %987 = vst.msk [vmem:[#allocation3 + $0xf8] sm:$0xff] %vm955, %v922
      %v989 = vrot.slane %v351, 1
      %v990 = vrot.slane %v352, 1
      %v991 = vsel %vm437, %v989, %v990
      %v992 = vrot.slane %v353, 1
      %v993 = vsel %vm437, %v990, %v992
      %994 = vrot.lane.b32.xlu0 %v445, 16
      %v995 = vpop.permute.xlu0 %994
      %996 = vrot.lane.b32.xlu0 %v447, 16
      %v997 = vpop.permute.xlu0 %996
      %998 = vrot.lane.b32.xlu0 %v450, 16
      %v999 = vpop.permute.xlu0 %998
      %1000 = vrot.lane.b32.xlu0 %v452, 16
      %v1001 = vpop.permute.xlu0 %1000
      %1002 = vrot.lane.b32.xlu0 %v455, 16
      %v1003 = vpop.permute.xlu0 %1002
      %1004 = vrot.lane.b32.xlu0 %v457, 16
      %v1005 = vpop.permute.xlu0 %1004
      %1006 = vrot.lane.b32.xlu0 %v460, 16
      %v1007 = vpop.permute.xlu0 %1006
      %1008 = vrot.lane.b32.xlu0 %v462, 16
      %v1009 = vpop.permute.xlu0 %1008
      %1010 = vrot.lane.b32.xlu0 %v465, 16
      %v1011 = vpop.permute.xlu0 %1010
      %1012 = vrot.lane.b32.xlu0 %v467, 16
      %v1013 = vpop.permute.xlu0 %1012
      %1014 = vrot.lane.b32.xlu0 %v470, 16
      %v1015 = vpop.permute.xlu0 %1014
      %1016 = vrot.lane.b32.xlu0 %v472, 16
      %v1017 = vpop.permute.xlu0 %1016
      %1018 = vrot.lane.b32.xlu0 %v475, 16
      %v1019 = vpop.permute.xlu0 %1018
      %1020 = vrot.lane.b32.xlu0 %v477, 16
      %v1021 = vpop.permute.xlu0 %1020
      %1022 = vrot.lane.b32.xlu0 %v480, 16
      %v1023 = vpop.permute.xlu0 %1022
      %1024 = vrot.lane.b32.xlu0 %v482, 16
      %v1025 = vpop.permute.xlu0 %1024
      %1026 = vrot.lane.b32.xlu0 %v485, 16
      %v1027 = vpop.permute.xlu0 %1026
      %1028 = vrot.lane.b32.xlu0 %v487, 16
      %v1029 = vpop.permute.xlu0 %1028
      %1030 = vrot.lane.b32.xlu0 %v490, 16
      %v1031 = vpop.permute.xlu0 %1030
      %1032 = vrot.lane.b32.xlu0 %v492, 16
      %v1033 = vpop.permute.xlu0 %1032
      %1034 = vrot.lane.b32.xlu0 %v495, 16
      %v1035 = vpop.permute.xlu0 %1034
      %1036 = vrot.lane.b32.xlu0 %v497, 16
      %v1037 = vpop.permute.xlu0 %1036
      %1038 = vrot.lane.b32.xlu0 %v500, 16
      %v1039 = vpop.permute.xlu0 %1038
      %1040 = vrot.lane.b32.xlu0 %v502, 16
      %v1041 = vpop.permute.xlu0 %1040
      %1042 = vrot.lane.b32.xlu0 %v505, 16
      %v1043 = vpop.permute.xlu0 %1042
      %1044 = vrot.lane.b32.xlu0 %v507, 16
      %v1045 = vpop.permute.xlu0 %1044
      %1046 = vrot.lane.b32.xlu0 %v510, 16
      %v1047 = vpop.permute.xlu0 %1046
      %1048 = vrot.lane.b32.xlu0 %v512, 16
      %v1049 = vpop.permute.xlu0 %1048
      %1050 = vrot.lane.b32.xlu0 %v515, 16
      %v1051 = vpop.permute.xlu0 %1050
      %1052 = vrot.lane.b32.xlu0 %v517, 16
      %v1053 = vpop.permute.xlu0 %1052
      %1054 = vrot.lane.b32.xlu0 %v991, 16
      %v1055 = vpop.permute.xlu0 %1054
      %1056 = vrot.lane.b32.xlu0 %v993, 16
      %v1057 = vpop.permute.xlu0 %1056
      %vm1090 = vcmask 162944
      %1091 = vst.msk [vmem:[#allocation3] sm:$0xff] %vm1090, %v995
      %1092 = vst.msk [vmem:[#allocation3 + $0x8] sm:$0xff] %vm1090, %v997
      %1093 = vst.msk [vmem:[#allocation3 + $0x10] sm:$0xff] %vm1090, %v999
      %1094 = vst.msk [vmem:[#allocation3 + $0x18] sm:$0xff] %vm1090, %v1001
      %1095 = vst.msk [vmem:[#allocation3 + $0x20] sm:$0xff] %vm1090, %v1003
      %1096 = vst.msk [vmem:[#allocation3 + $0x28] sm:$0xff] %vm1090, %v1005
      %1097 = vst.msk [vmem:[#allocation3 + $0x30] sm:$0xff] %vm1090, %v1007
      %1098 = vst.msk [vmem:[#allocation3 + $0x38] sm:$0xff] %vm1090, %v1009
      %1099 = vst.msk [vmem:[#allocation3 + $0x40] sm:$0xff] %vm1090, %v1011
      %1100 = vst.msk [vmem:[#allocation3 + $0x48] sm:$0xff] %vm1090, %v1013
      %1101 = vst.msk [vmem:[#allocation3 + $0x50] sm:$0xff] %vm1090, %v1015
      %1102 = vst.msk [vmem:[#allocation3 + $0x58] sm:$0xff] %vm1090, %v1017
      %1103 = vst.msk [vmem:[#allocation3 + $0x60] sm:$0xff] %vm1090, %v1019
      %1104 = vst.msk [vmem:[#allocation3 + $0x68] sm:$0xff] %vm1090, %v1021
      %1105 = vst.msk [vmem:[#allocation3 + $0x70] sm:$0xff] %vm1090, %v1023
      %1106 = vst.msk [vmem:[#allocation3 + $0x78] sm:$0xff] %vm1090, %v1025
      %1107 = vst.msk [vmem:[#allocation3 + $0x80] sm:$0xff] %vm1090, %v1027
      %1108 = vst.msk [vmem:[#allocation3 + $0x88] sm:$0xff] %vm1090, %v1029
      %1109 = vst.msk [vmem:[#allocation3 + $0x90] sm:$0xff] %vm1090, %v1031
      %1110 = vst.msk [vmem:[#allocation3 + $0x98] sm:$0xff] %vm1090, %v1033
      %1111 = vst.msk [vmem:[#allocation3 + $0xa0] sm:$0xff] %vm1090, %v1035
      %1112 = vst.msk [vmem:[#allocation3 + $0xa8] sm:$0xff] %vm1090, %v1037
      %1113 = vst.msk [vmem:[#allocation3 + $0xb0] sm:$0xff] %vm1090, %v1039
      %1114 = vst.msk [vmem:[#allocation3 + $0xb8] sm:$0xff] %vm1090, %v1041
      %1115 = vst.msk [vmem:[#allocation3 + $0xc0] sm:$0xff] %vm1090, %v1043
      %1116 = vst.msk [vmem:[#allocation3 + $0xc8] sm:$0xff] %vm1090, %v1045
      %1117 = vst.msk [vmem:[#allocation3 + $0xd0] sm:$0xff] %vm1090, %v1047
      %1118 = vst.msk [vmem:[#allocation3 + $0xd8] sm:$0xff] %vm1090, %v1049
      %1119 = vst.msk [vmem:[#allocation3 + $0xe0] sm:$0xff] %vm1090, %v1051
      %1120 = vst.msk [vmem:[#allocation3 + $0xe8] sm:$0xff] %vm1090, %v1053
      %1121 = vst.msk [vmem:[#allocation3 + $0xf0] sm:$0xff] %vm1090, %v1055
      %1122 = vst.msk [vmem:[#allocation3 + $0xf8] sm:$0xff] %vm1090, %v1057
      %v1123 = vrot.slane %v351, 2
      %v1124 = vrot.slane %v352, 2
      %v1125 = vsel %vm647, %v1123, %v1124
      %v1126 = vrot.slane %v353, 2
      %v1127 = vsel %vm647, %v1124, %v1126
      %1128 = vrot.lane.b32.xlu0 %v655, 20
      %v1129 = vpop.permute.xlu0 %1128
      %1130 = vrot.lane.b32.xlu0 %v657, 20
      %v1131 = vpop.permute.xlu0 %1130
      %1132 = vrot.lane.b32.xlu0 %v660, 20
      %v1133 = vpop.permute.xlu0 %1132
      %1134 = vrot.lane.b32.xlu0 %v662, 20
      %v1135 = vpop.permute.xlu0 %1134
      %1136 = vrot.lane.b32.xlu0 %v665, 20
      %v1137 = vpop.permute.xlu0 %1136
      %1138 = vrot.lane.b32.xlu0 %v667, 20
      %v1139 = vpop.permute.xlu0 %1138
      %1140 = vrot.lane.b32.xlu0 %v670, 20
      %v1141 = vpop.permute.xlu0 %1140
      %1142 = vrot.lane.b32.xlu0 %v672, 20
      %v1143 = vpop.permute.xlu0 %1142
      %1144 = vrot.lane.b32.xlu0 %v675, 20
      %v1145 = vpop.permute.xlu0 %1144
      %1146 = vrot.lane.b32.xlu0 %v677, 20
      %v1147 = vpop.permute.xlu0 %1146
      %1148 = vrot.lane.b32.xlu0 %v680, 20
      %v1149 = vpop.permute.xlu0 %1148
      %1150 = vrot.lane.b32.xlu0 %v682, 20
      %v1151 = vpop.permute.xlu0 %1150
      %1152 = vrot.lane.b32.xlu0 %v685, 20
      %v1153 = vpop.permute.xlu0 %1152
      %1154 = vrot.lane.b32.xlu0 %v687, 20
      %v1155 = vpop.permute.xlu0 %1154
      %1156 = vrot.lane.b32.xlu0 %v690, 20
      %v1157 = vpop.permute.xlu0 %1156
      %1158 = vrot.lane.b32.xlu0 %v692, 20
      %v1159 = vpop.permute.xlu0 %1158
      %1160 = vrot.lane.b32.xlu0 %v695, 20
      %v1161 = vpop.permute.xlu0 %1160
      %1162 = vrot.lane.b32.xlu0 %v697, 20
      %v1163 = vpop.permute.xlu0 %1162
      %1164 = vrot.lane.b32.xlu0 %v700, 20
      %v1165 = vpop.permute.xlu0 %1164
      %1166 = vrot.lane.b32.xlu0 %v702, 20
      %v1167 = vpop.permute.xlu0 %1166
      %1168 = vrot.lane.b32.xlu0 %v705, 20
      %v1169 = vpop.permute.xlu0 %1168
      %1170 = vrot.lane.b32.xlu0 %v707, 20
      %v1171 = vpop.permute.xlu0 %1170
      %1172 = vrot.lane.b32.xlu0 %v710, 20
      %v1173 = vpop.permute.xlu0 %1172
      %1174 = vrot.lane.b32.xlu0 %v712, 20
      %v1175 = vpop.permute.xlu0 %1174
      %1176 = vrot.lane.b32.xlu0 %v715, 20
      %v1177 = vpop.permute.xlu0 %1176
      %1178 = vrot.lane.b32.xlu0 %v717, 20
      %v1179 = vpop.permute.xlu0 %1178
      %1180 = vrot.lane.b32.xlu0 %v720, 20
      %v1181 = vpop.permute.xlu0 %1180
      %1182 = vrot.lane.b32.xlu0 %v722, 20
      %v1183 = vpop.permute.xlu0 %1182
      %1184 = vrot.lane.b32.xlu0 %v725, 20
      %v1185 = vpop.permute.xlu0 %1184
      %1186 = vrot.lane.b32.xlu0 %v727, 20
      %v1187 = vpop.permute.xlu0 %1186
      %1188 = vrot.lane.b32.xlu0 %v1125, 20
      %v1189 = vpop.permute.xlu0 %1188
      %1190 = vrot.lane.b32.xlu0 %v1127, 20
      %v1191 = vpop.permute.xlu0 %1190
      %vm1224 = vcmask 195744
      %1225 = vst.msk [vmem:[#allocation3] sm:$0xff] %vm1224, %v1129
      %1226 = vst.msk [vmem:[#allocation3 + $0x8] sm:$0xff] %vm1224, %v1131
      %1227 = vst.msk [vmem:[#allocation3 + $0x10] sm:$0xff] %vm1224, %v1133
      %1228 = vst.msk [vmem:[#allocation3 + $0x18] sm:$0xff] %vm1224, %v1135
      %1229 = vst.msk [vmem:[#allocation3 + $0x20] sm:$0xff] %vm1224, %v1137
      %1230 = vst.msk [vmem:[#allocation3 + $0x28] sm:$0xff] %vm1224, %v1139
      %1231 = vst.msk [vmem:[#allocation3 + $0x30] sm:$0xff] %vm1224, %v1141
      %1232 = vst.msk [vmem:[#allocation3 + $0x38] sm:$0xff] %vm1224, %v1143
      %1233 = vst.msk [vmem:[#allocation3 + $0x40] sm:$0xff] %vm1224, %v1145
      %1234 = vst.msk [vmem:[#allocation3 + $0x48] sm:$0xff] %vm1224, %v1147
      %1235 = vst.msk [vmem:[#allocation3 + $0x50] sm:$0xff] %vm1224, %v1149
      %1236 = vst.msk [vmem:[#allocation3 + $0x58] sm:$0xff] %vm1224, %v1151
      %1237 = vst.msk [vmem:[#allocation3 + $0x60] sm:$0xff] %vm1224, %v1153
      %1238 = vst.msk [vmem:[#allocation3 + $0x68] sm:$0xff] %vm1224, %v1155
      %1239 = vst.msk [vmem:[#allocation3 + $0x70] sm:$0xff] %vm1224, %v1157
      %1240 = vst.msk [vmem:[#allocation3 + $0x78] sm:$0xff] %vm1224, %v1159
      %1241 = vst.msk [vmem:[#allocation3 + $0x80] sm:$0xff] %vm1224, %v1161
      %1242 = vst.msk [vmem:[#allocation3 + $0x88] sm:$0xff] %vm1224, %v1163
      %1243 = vst.msk [vmem:[#allocation3 + $0x90] sm:$0xff] %vm1224, %v1165
      %1244 = vst.msk [vmem:[#allocation3 + $0x98] sm:$0xff] %vm1224, %v1167
      %1245 = vst.msk [vmem:[#allocation3 + $0xa0] sm:$0xff] %vm1224, %v1169
      %1246 = vst.msk [vmem:[#allocation3 + $0xa8] sm:$0xff] %vm1224, %v1171
      %1247 = vst.msk [vmem:[#allocation3 + $0xb0] sm:$0xff] %vm1224, %v1173
      %1248 = vst.msk [vmem:[#allocation3 + $0xb8] sm:$0xff] %vm1224, %v1175
      %1249 = vst.msk [vmem:[#allocation3 + $0xc0] sm:$0xff] %vm1224, %v1177
      %1250 = vst.msk [vmem:[#allocation3 + $0xc8] sm:$0xff] %vm1224, %v1179
      %1251 = vst.msk [vmem:[#allocation3 + $0xd0] sm:$0xff] %vm1224, %v1181
      %1252 = vst.msk [vmem:[#allocation3 + $0xd8] sm:$0xff] %vm1224, %v1183
      %1253 = vst.msk [vmem:[#allocation3 + $0xe0] sm:$0xff] %vm1224, %v1185
      %1254 = vst.msk [vmem:[#allocation3 + $0xe8] sm:$0xff] %vm1224, %v1187
      %1255 = vst.msk [vmem:[#allocation3 + $0xf0] sm:$0xff] %vm1224, %v1189
      %1256 = vst.msk [vmem:[#allocation3 + $0xf8] sm:$0xff] %vm1224, %v1191
      %1259 = vrot.lane.b32.xlu0 %v309, 24
      %v1260 = vpop.permute.xlu0 %1259
      %1261 = vrot.lane.b32.xlu0 %v310, 24
      %v1262 = vpop.permute.xlu0 %1261
      %1263 = vrot.lane.b32.xlu0 %v312, 24
      %v1264 = vpop.permute.xlu0 %1263
      %1265 = vrot.lane.b32.xlu0 %v313, 24
      %v1266 = vpop.permute.xlu0 %1265
      %1267 = vrot.lane.b32.xlu0 %v315, 24
      %v1268 = vpop.permute.xlu0 %1267
      %1269 = vrot.lane.b32.xlu0 %v316, 24
      %v1270 = vpop.permute.xlu0 %1269
      %1271 = vrot.lane.b32.xlu0 %v318, 24
      %v1272 = vpop.permute.xlu0 %1271
      %1273 = vrot.lane.b32.xlu0 %v319, 24
      %v1274 = vpop.permute.xlu0 %1273
      %1275 = vrot.lane.b32.xlu0 %v321, 24
      %v1276 = vpop.permute.xlu0 %1275
      %1277 = vrot.lane.b32.xlu0 %v322, 24
      %v1278 = vpop.permute.xlu0 %1277
      %1279 = vrot.lane.b32.xlu0 %v324, 24
      %v1280 = vpop.permute.xlu0 %1279
      %1281 = vrot.lane.b32.xlu0 %v325, 24
      %v1282 = vpop.permute.xlu0 %1281
      %1283 = vrot.lane.b32.xlu0 %v327, 24
      %v1284 = vpop.permute.xlu0 %1283
      %1285 = vrot.lane.b32.xlu0 %v328, 24
      %v1286 = vpop.permute.xlu0 %1285
      %1287 = vrot.lane.b32.xlu0 %v330, 24
      %v1288 = vpop.permute.xlu0 %1287
      %1289 = vrot.lane.b32.xlu0 %v331, 24
      %v1290 = vpop.permute.xlu0 %1289
      %1291 = vrot.lane.b32.xlu0 %v333, 24
      %v1292 = vpop.permute.xlu0 %1291
      %1293 = vrot.lane.b32.xlu0 %v334, 24
      %v1294 = vpop.permute.xlu0 %1293
      %1295 = vrot.lane.b32.xlu0 %v336, 24
      %v1296 = vpop.permute.xlu0 %1295
      %1297 = vrot.lane.b32.xlu0 %v337, 24
      %v1298 = vpop.permute.xlu0 %1297
      %1299 = vrot.lane.b32.xlu0 %v339, 24
      %v1300 = vpop.permute.xlu0 %1299
      %1301 = vrot.lane.b32.xlu0 %v340, 24
      %v1302 = vpop.permute.xlu0 %1301
      %1303 = vrot.lane.b32.xlu0 %v342, 24
      %v1304 = vpop.permute.xlu0 %1303
      %1305 = vrot.lane.b32.xlu0 %v343, 24
      %v1306 = vpop.permute.xlu0 %1305
      %1307 = vrot.lane.b32.xlu0 %v345, 24
      %v1308 = vpop.permute.xlu0 %1307
      %1309 = vrot.lane.b32.xlu0 %v346, 24
      %v1310 = vpop.permute.xlu0 %1309
      %1311 = vrot.lane.b32.xlu0 %v348, 24
      %v1312 = vpop.permute.xlu0 %1311
      %1313 = vrot.lane.b32.xlu0 %v349, 24
      %v1314 = vpop.permute.xlu0 %1313
      %1315 = vrot.lane.b32.xlu0 %v351, 24
      %v1316 = vpop.permute.xlu0 %1315
      %1317 = vrot.lane.b32.xlu0 %v352, 24
      %v1318 = vpop.permute.xlu0 %1317
      %1319 = vrot.lane.b32.xlu0 %v354, 24
      %v1320 = vpop.permute.xlu0 %1319
      %1321 = vrot.lane.b32.xlu0 %v355, 24
      %v1322 = vpop.permute.xlu0 %1321
      %vm1355 = vcmask 228544
      %1356 = vst.msk [vmem:[#allocation3] sm:$0xff] %vm1355, %v1260
      %1357 = vst.msk [vmem:[#allocation3 + $0x8] sm:$0xff] %vm1355, %v1262
      %1358 = vst.msk [vmem:[#allocation3 + $0x10] sm:$0xff] %vm1355, %v1264
      %1359 = vst.msk [vmem:[#allocation3 + $0x18] sm:$0xff] %vm1355, %v1266
      %1360 = vst.msk [vmem:[#allocation3 + $0x20] sm:$0xff] %vm1355, %v1268
      %1361 = vst.msk [vmem:[#allocation3 + $0x28] sm:$0xff] %vm1355, %v1270
      %1362 = vst.msk [vmem:[#allocation3 + $0x30] sm:$0xff] %vm1355, %v1272
      %1363 = vst.msk [vmem:[#allocation3 + $0x38] sm:$0xff] %vm1355, %v1274
      %1364 = vst.msk [vmem:[#allocation3 + $0x40] sm:$0xff] %vm1355, %v1276
      %1365 = vst.msk [vmem:[#allocation3 + $0x48] sm:$0xff] %vm1355, %v1278
      %1366 = vst.msk [vmem:[#allocation3 + $0x50] sm:$0xff] %vm1355, %v1280
      %1367 = vst.msk [vmem:[#allocation3 + $0x58] sm:$0xff] %vm1355, %v1282
      %1368 = vst.msk [vmem:[#allocation3 + $0x60] sm:$0xff] %vm1355, %v1284
      %1369 = vst.msk [vmem:[#allocation3 + $0x68] sm:$0xff] %vm1355, %v1286
      %1370 = vst.msk [vmem:[#allocation3 + $0x70] sm:$0xff] %vm1355, %v1288
      %1371 = vst.msk [vmem:[#allocation3 + $0x78] sm:$0xff] %vm1355, %v1290
      %1372 = vst.msk [vmem:[#allocation3 + $0x80] sm:$0xff] %vm1355, %v1292
      %1373 = vst.msk [vmem:[#allocation3 + $0x88] sm:$0xff] %vm1355, %v1294
      %1374 = vst.msk [vmem:[#allocation3 + $0x90] sm:$0xff] %vm1355, %v1296
      %1375 = vst.msk [vmem:[#allocation3 + $0x98] sm:$0xff] %vm1355, %v1298
      %1376 = vst.msk [vmem:[#allocation3 + $0xa0] sm:$0xff] %vm1355, %v1300
      %1377 = vst.msk [vmem:[#allocation3 + $0xa8] sm:$0xff] %vm1355, %v1302
      %1378 = vst.msk [vmem:[#allocation3 + $0xb0] sm:$0xff] %vm1355, %v1304
      %1379 = vst.msk [vmem:[#allocation3 + $0xb8] sm:$0xff] %vm1355, %v1306
      %1380 = vst.msk [vmem:[#allocation3 + $0xc0] sm:$0xff] %vm1355, %v1308
      %1381 = vst.msk [vmem:[#allocation3 + $0xc8] sm:$0xff] %vm1355, %v1310
      %1382 = vst.msk [vmem:[#allocation3 + $0xd0] sm:$0xff] %vm1355, %v1312
      %1383 = vst.msk [vmem:[#allocation3 + $0xd8] sm:$0xff] %vm1355, %v1314
      %1384 = vst.msk [vmem:[#allocation3 + $0xe0] sm:$0xff] %vm1355, %v1316
      %1385 = vst.msk [vmem:[#allocation3 + $0xe8] sm:$0xff] %vm1355, %v1318
      %1386 = vst.msk [vmem:[#allocation3 + $0xf0] sm:$0xff] %vm1355, %v1320
      %1387 = vst.msk [vmem:[#allocation3 + $0xf8] sm:$0xff] %vm1355, %v1322
      %v1389 = vrot.slane %v354, 1
      %v1390 = vrot.slane %v355, 1
      %v1391 = vsel %vm437, %v1389, %v1390
      %v1392 = vrot.slane %v356, 1
      %v1393 = vsel %vm437, %v1390, %v1392
      %1394 = vrot.lane.b32.xlu0 %v450, 28
      %v1395 = vpop.permute.xlu0 %1394
      %1396 = vrot.lane.b32.xlu0 %v452, 28
      %v1397 = vpop.permute.xlu0 %1396
      %1398 = vrot.lane.b32.xlu0 %v455, 28
      %v1399 = vpop.permute.xlu0 %1398
      %1400 = vrot.lane.b32.xlu0 %v457, 28
      %v1401 = vpop.permute.xlu0 %1400
      %1402 = vrot.lane.b32.xlu0 %v460, 28
      %v1403 = vpop.permute.xlu0 %1402
      %1404 = vrot.lane.b32.xlu0 %v462, 28
      %v1405 = vpop.permute.xlu0 %1404
      %1406 = vrot.lane.b32.xlu0 %v465, 28
      %v1407 = vpop.permute.xlu0 %1406
      %1408 = vrot.lane.b32.xlu0 %v467, 28
      %v1409 = vpop.permute.xlu0 %1408
      %1410 = vrot.lane.b32.xlu0 %v470, 28
      %v1411 = vpop.permute.xlu0 %1410
      %1412 = vrot.lane.b32.xlu0 %v472, 28
      %v1413 = vpop.permute.xlu0 %1412
      %1414 = vrot.lane.b32.xlu0 %v475, 28
      %v1415 = vpop.permute.xlu0 %1414
      %1416 = vrot.lane.b32.xlu0 %v477, 28
      %v1417 = vpop.permute.xlu0 %1416
      %1418 = vrot.lane.b32.xlu0 %v480, 28
      %v1419 = vpop.permute.xlu0 %1418
      %1420 = vrot.lane.b32.xlu0 %v482, 28
      %v1421 = vpop.permute.xlu0 %1420
      %1422 = vrot.lane.b32.xlu0 %v485, 28
      %v1423 = vpop.permute.xlu0 %1422
      %1424 = vrot.lane.b32.xlu0 %v487, 28
      %v1425 = vpop.permute.xlu0 %1424
      %1426 = vrot.lane.b32.xlu0 %v490, 28
      %v1427 = vpop.permute.xlu0 %1426
      %1428 = vrot.lane.b32.xlu0 %v492, 28
      %v1429 = vpop.permute.xlu0 %1428
      %1430 = vrot.lane.b32.xlu0 %v495, 28
      %v1431 = vpop.permute.xlu0 %1430
      %1432 = vrot.lane.b32.xlu0 %v497, 28
      %v1433 = vpop.permute.xlu0 %1432
      %1434 = vrot.lane.b32.xlu0 %v500, 28
      %v1435 = vpop.permute.xlu0 %1434
      %1436 = vrot.lane.b32.xlu0 %v502, 28
      %v1437 = vpop.permute.xlu0 %1436
      %1438 = vrot.lane.b32.xlu0 %v505, 28
      %v1439 = vpop.permute.xlu0 %1438
      %1440 = vrot.lane.b32.xlu0 %v507, 28
      %v1441 = vpop.permute.xlu0 %1440
      %1442 = vrot.lane.b32.xlu0 %v510, 28
      %v1443 = vpop.permute.xlu0 %1442
      %1444 = vrot.lane.b32.xlu0 %v512, 28
      %v1445 = vpop.permute.xlu0 %1444
      %1446 = vrot.lane.b32.xlu0 %v515, 28
      %v1447 = vpop.permute.xlu0 %1446
      %1448 = vrot.lane.b32.xlu0 %v517, 28
      %v1449 = vpop.permute.xlu0 %1448
      %1450 = vrot.lane.b32.xlu0 %v991, 28
      %v1451 = vpop.permute.xlu0 %1450
      %1452 = vrot.lane.b32.xlu0 %v993, 28
      %v1453 = vpop.permute.xlu0 %1452
      %1454 = vrot.lane.b32.xlu0 %v1391, 28
      %v1455 = vpop.permute.xlu0 %1454
      %1456 = vrot.lane.b32.xlu0 %v1393, 28
      %v1457 = vpop.permute.xlu0 %1456
      %vm1490 = vcmask 261344
      %1491 = vst.msk [vmem:[#allocation3] sm:$0xff] %vm1490, %v1395
      %1492 = vst.msk [vmem:[#allocation3 + $0x8] sm:$0xff] %vm1490, %v1397
      %1493 = vst.msk [vmem:[#allocation3 + $0x10] sm:$0xff] %vm1490, %v1399
      %1494 = vst.msk [vmem:[#allocation3 + $0x18] sm:$0xff] %vm1490, %v1401
      %1495 = vst.msk [vmem:[#allocation3 + $0x20] sm:$0xff] %vm1490, %v1403
      %1496 = vst.msk [vmem:[#allocation3 + $0x28] sm:$0xff] %vm1490, %v1405
      %1497 = vst.msk [vmem:[#allocation3 + $0x30] sm:$0xff] %vm1490, %v1407
      %1498 = vst.msk [vmem:[#allocation3 + $0x38] sm:$0xff] %vm1490, %v1409
      %1499 = vst.msk [vmem:[#allocation3 + $0x40] sm:$0xff] %vm1490, %v1411
      %1500 = vst.msk [vmem:[#allocation3 + $0x48] sm:$0xff] %vm1490, %v1413
      %1501 = vst.msk [vmem:[#allocation3 + $0x50] sm:$0xff] %vm1490, %v1415
      %1502 = vst.msk [vmem:[#allocation3 + $0x58] sm:$0xff] %vm1490, %v1417
      %1503 = vst.msk [vmem:[#allocation3 + $0x60] sm:$0xff] %vm1490, %v1419
      %1504 = vst.msk [vmem:[#allocation3 + $0x68] sm:$0xff] %vm1490, %v1421
      %1505 = vst.msk [vmem:[#allocation3 + $0x70] sm:$0xff] %vm1490, %v1423
      %1506 = vst.msk [vmem:[#allocation3 + $0x78] sm:$0xff] %vm1490, %v1425
      %1507 = vst.msk [vmem:[#allocation3 + $0x80] sm:$0xff] %vm1490, %v1427
      %1508 = vst.msk [vmem:[#allocation3 + $0x88] sm:$0xff] %vm1490, %v1429
      %1509 = vst.msk [vmem:[#allocation3 + $0x90] sm:$0xff] %vm1490, %v1431
      %1510 = vst.msk [vmem:[#allocation3 + $0x98] sm:$0xff] %vm1490, %v1433
      %1511 = vst.msk [vmem:[#allocation3 + $0xa0] sm:$0xff] %vm1490, %v1435
      %1512 = vst.msk [vmem:[#allocation3 + $0xa8] sm:$0xff] %vm1490, %v1437
      %1513 = vst.msk [vmem:[#allocation3 + $0xb0] sm:$0xff] %vm1490, %v1439
      %1514 = vst.msk [vmem:[#allocation3 + $0xb8] sm:$0xff] %vm1490, %v1441
      %1515 = vst.msk [vmem:[#allocation3 + $0xc0] sm:$0xff] %vm1490, %v1443
      %1516 = vst.msk [vmem:[#allocation3 + $0xc8] sm:$0xff] %vm1490, %v1445
      %1517 = vst.msk [vmem:[#allocation3 + $0xd0] sm:$0xff] %vm1490, %v1447
      %1518 = vst.msk [vmem:[#allocation3 + $0xd8] sm:$0xff] %vm1490, %v1449
      %1519 = vst.msk [vmem:[#allocation3 + $0xe0] sm:$0xff] %vm1490, %v1451
      %1520 = vst.msk [vmem:[#allocation3 + $0xe8] sm:$0xff] %vm1490, %v1453
      %1521 = vst.msk [vmem:[#allocation3 + $0xf0] sm:$0xff] %vm1490, %v1455
      %1522 = vst.msk [vmem:[#allocation3 + $0xf8] sm:$0xff] %vm1490, %v1457
      %v1523 = vrot.slane %v354, 2
      %v1524 = vrot.slane %v355, 2
      %v1525 = vsel %vm647, %v1523, %v1524
      %v1526 = vrot.slane %v356, 2
      %v1527 = vsel %vm647, %v1524, %v1526
      %1528 = vrot.lane.b32.xlu0 %v660, 32
      %v1529 = vpop.permute.xlu0 %1528
      %1530 = vrot.lane.b32.xlu0 %v662, 32
      %v1531 = vpop.permute.xlu0 %1530
      %1532 = vrot.lane.b32.xlu0 %v665, 32
      %v1533 = vpop.permute.xlu0 %1532
      %1534 = vrot.lane.b32.xlu0 %v667, 32
      %v1535 = vpop.permute.xlu0 %1534
      %1536 = vrot.lane.b32.xlu0 %v670, 32
      %v1537 = vpop.permute.xlu0 %1536
      %1538 = vrot.lane.b32.xlu0 %v672, 32
      %v1539 = vpop.permute.xlu0 %1538
      %1540 = vrot.lane.b32.xlu0 %v675, 32
      %v1541 = vpop.permute.xlu0 %1540
      %1542 = vrot.lane.b32.xlu0 %v677, 32
      %v1543 = vpop.permute.xlu0 %1542
      %1544 = vrot.lane.b32.xlu0 %v680, 32
      %v1545 = vpop.permute.xlu0 %1544
      %1546 = vrot.lane.b32.xlu0 %v682, 32
      %v1547 = vpop.permute.xlu0 %1546
      %1548 = vrot.lane.b32.xlu0 %v685, 32
      %v1549 = vpop.permute.xlu0 %1548
      %1550 = vrot.lane.b32.xlu0 %v687, 32
      %v1551 = vpop.permute.xlu0 %1550
      %1552 = vrot.lane.b32.xlu0 %v690, 32
      %v1553 = vpop.permute.xlu0 %1552
      %1554 = vrot.lane.b32.xlu0 %v692, 32
      %v1555 = vpop.permute.xlu0 %1554
      %1556 = vrot.lane.b32.xlu0 %v695, 32
      %v1557 = vpop.permute.xlu0 %1556
      %1558 = vrot.lane.b32.xlu0 %v697, 32
      %v1559 = vpop.permute.xlu0 %1558
      %1560 = vrot.lane.b32.xlu0 %v700, 32
      %v1561 = vpop.permute.xlu0 %1560
      %1562 = vrot.lane.b32.xlu0 %v702, 32
      %v1563 = vpop.permute.xlu0 %1562
      %1564 = vrot.lane.b32.xlu0 %v705, 32
      %v1565 = vpop.permute.xlu0 %1564
      %1566 = vrot.lane.b32.xlu0 %v707, 32
      %v1567 = vpop.permute.xlu0 %1566
      %1568 = vrot.lane.b32.xlu0 %v710, 32
      %v1569 = vpop.permute.xlu0 %1568
      %1570 = vrot.lane.b32.xlu0 %v712, 32
      %v1571 = vpop.permute.xlu0 %1570
      %1572 = vrot.lane.b32.xlu0 %v715, 32
      %v1573 = vpop.permute.xlu0 %1572
      %1574 = vrot.lane.b32.xlu0 %v717, 32
      %v1575 = vpop.permute.xlu0 %1574
      %1576 = vrot.lane.b32.xlu0 %v720, 32
      %v1577 = vpop.permute.xlu0 %1576
      %1578 = vrot.lane.b32.xlu0 %v722, 32
      %v1579 = vpop.permute.xlu0 %1578
      %1580 = vrot.lane.b32.xlu0 %v725, 32
      %v1581 = vpop.permute.xlu0 %1580
      %1582 = vrot.lane.b32.xlu0 %v727, 32
      %v1583 = vpop.permute.xlu0 %1582
      %1584 = vrot.lane.b32.xlu0 %v1125, 32
      %v1585 = vpop.permute.xlu0 %1584
      %1586 = vrot.lane.b32.xlu0 %v1127, 32
      %v1587 = vpop.permute.xlu0 %1586
      %1588 = vrot.lane.b32.xlu0 %v1525, 32
      %v1589 = vpop.permute.xlu0 %1588
      %1590 = vrot.lane.b32.xlu0 %v1527, 32
      %v1591 = vpop.permute.xlu0 %1590
      %vm1624 = vcmask 294144
      %1625 = vst.msk [vmem:[#allocation3] sm:$0xff] %vm1624, %v1529
      %1626 = vst.msk [vmem:[#allocation3 + $0x8] sm:$0xff] %vm1624, %v1531
      %1627 = vst.msk [vmem:[#allocation3 + $0x10] sm:$0xff] %vm1624, %v1533
      %1628 = vst.msk [vmem:[#allocation3 + $0x18] sm:$0xff] %vm1624, %v1535
      %1629 = vst.msk [vmem:[#allocation3 + $0x20] sm:$0xff] %vm1624, %v1537
      %1630 = vst.msk [vmem:[#allocation3 + $0x28] sm:$0xff] %vm1624, %v1539
      %1631 = vst.msk [vmem:[#allocation3 + $0x30] sm:$0xff] %vm1624, %v1541
      %1632 = vst.msk [vmem:[#allocation3 + $0x38] sm:$0xff] %vm1624, %v1543
      %1633 = vst.msk [vmem:[#allocation3 + $0x40] sm:$0xff] %vm1624, %v1545
      %1634 = vst.msk [vmem:[#allocation3 + $0x48] sm:$0xff] %vm1624, %v1547
      %1635 = vst.msk [vmem:[#allocation3 + $0x50] sm:$0xff] %vm1624, %v1549
      %1636 = vst.msk [vmem:[#allocation3 + $0x58] sm:$0xff] %vm1624, %v1551
      %1637 = vst.msk [vmem:[#allocation3 + $0x60] sm:$0xff] %vm1624, %v1553
      %1638 = vst.msk [vmem:[#allocation3 + $0x68] sm:$0xff] %vm1624, %v1555
      %1639 = vst.msk [vmem:[#allocation3 + $0x70] sm:$0xff] %vm1624, %v1557
      %1640 = vst.msk [vmem:[#allocation3 + $0x78] sm:$0xff] %vm1624, %v1559
      %1641 = vst.msk [vmem:[#allocation3 + $0x80] sm:$0xff] %vm1624, %v1561
      %1642 = vst.msk [vmem:[#allocation3 + $0x88] sm:$0xff] %vm1624, %v1563
      %1643 = vst.msk [vmem:[#allocation3 + $0x90] sm:$0xff] %vm1624, %v1565
      %1644 = vst.msk [vmem:[#allocation3 + $0x98] sm:$0xff] %vm1624, %v1567
      %1645 = vst.msk [vmem:[#allocation3 + $0xa0] sm:$0xff] %vm1624, %v1569
      %1646 = vst.msk [vmem:[#allocation3 + $0xa8] sm:$0xff] %vm1624, %v1571
      %1647 = vst.msk [vmem:[#allocation3 + $0xb0] sm:$0xff] %vm1624, %v1573
      %1648 = vst.msk [vmem:[#allocation3 + $0xb8] sm:$0xff] %vm1624, %v1575
      %1649 = vst.msk [vmem:[#allocation3 + $0xc0] sm:$0xff] %vm1624, %v1577
      %1650 = vst.msk [vmem:[#allocation3 + $0xc8] sm:$0xff] %vm1624, %v1579
      %1651 = vst.msk [vmem:[#allocation3 + $0xd0] sm:$0xff] %vm1624, %v1581
      %1652 = vst.msk [vmem:[#allocation3 + $0xd8] sm:$0xff] %vm1624, %v1583
      %1653 = vst.msk [vmem:[#allocation3 + $0xe0] sm:$0xff] %vm1624, %v1585
      %1654 = vst.msk [vmem:[#allocation3 + $0xe8] sm:$0xff] %vm1624, %v1587
      %1655 = vst.msk [vmem:[#allocation3 + $0xf0] sm:$0xff] %vm1624, %v1589
      %1656 = vst.msk [vmem:[#allocation3 + $0xf8] sm:$0xff] %vm1624, %v1591
      %v1657 = vld [vmem:[#allocation3] sm:$0xff]
      %v1658 = vld [vmem:[#allocation3 + $0x8] sm:$0xff]
      %v1659 = vld [vmem:[#allocation3 + $0x10] sm:$0xff]
      %v1660 = vld [vmem:[#allocation3 + $0x18] sm:$0xff]
      %v1661 = vld [vmem:[#allocation3 + $0x20] sm:$0xff]
      %v1662 = vld [vmem:[#allocation3 + $0x28] sm:$0xff]
      %v1663 = vld [vmem:[#allocation3 + $0x30] sm:$0xff]
      %v1664 = vld [vmem:[#allocation3 + $0x38] sm:$0xff]
      %v1665 = vld [vmem:[#allocation3 + $0x40] sm:$0xff]
      %v1666 = vld [vmem:[#allocation3 + $0x48] sm:$0xff]
      %v1667 = vld [vmem:[#allocation3 + $0x50] sm:$0xff]
      %v1668 = vld [vmem:[#allocation3 + $0x58] sm:$0xff]
      %v1669 = vld [vmem:[#allocation3 + $0x60] sm:$0xff]
      %v1670 = vld [vmem:[#allocation3 + $0x68] sm:$0xff]
      %v1671 = vld [vmem:[#allocation3 + $0x70] sm:$0xff]
      %v1672 = vld [vmem:[#allocation3 + $0x78] sm:$0xff]
      %v1673 = vld [vmem:[#allocation3 + $0x80] sm:$0xff]
      %v1674 = vld [vmem:[#allocation3 + $0x88] sm:$0xff]
      %v1675 = vld [vmem:[#allocation3 + $0x90] sm:$0xff]
      %v1676 = vld [vmem:[#allocation3 + $0x98] sm:$0xff]
      %v1677 = vld [vmem:[#allocation3 + $0xa0] sm:$0xff]
      %v1678 = vld [vmem:[#allocation3 + $0xa8] sm:$0xff]
      %v1679 = vld [vmem:[#allocation3 + $0xb0] sm:$0xff]
      %v1680 = vld [vmem:[#allocation3 + $0xb8] sm:$0xff]
      %v1681 = vld [vmem:[#allocation3 + $0xc0] sm:$0xff]
      %v1682 = vld [vmem:[#allocation3 + $0xc8] sm:$0xff]
      %v1683 = vld [vmem:[#allocation3 + $0xd0] sm:$0xff]
      %v1684 = vld [vmem:[#allocation3 + $0xd8] sm:$0xff]
      %v1685 = vld [vmem:[#allocation3 + $0xe0] sm:$0xff]
      %v1686 = vld [vmem:[#allocation3 + $0xe8] sm:$0xff]
      %v1687 = vld [vmem:[#allocation3 + $0xf0] sm:$0xff]
      %v1688 = vld [vmem:[#allocation3 + $0xf8] sm:$0xff]
      %v1689 = vld [vmem:[%s1] sm:$0xff]
      %v1690 = vld [vmem:[%s1 + $0x8] sm:$0xff]
      %v1691 = vld [vmem:[%s1 + $0x10] sm:$0xff]
      %v1692 = vld [vmem:[%s1 + $0x18] sm:$0xff]
      %v1693 = vld [vmem:[%s1 + $0x20] sm:$0xf]
      %vm1694 = vcmask 293888
      %v1696 = vsel %vm1694, %v1657, 0
      %v1699 = vsel %vm1694, %v1658, 0
      %v1702 = vsel %vm1694, %v1659, 0
      %v1705 = vsel %vm1694, %v1660, 0
      %v1708 = vsel %vm1694, %v1661, 0
      %v1711 = vsel %vm1694, %v1662, 0
      %v1714 = vsel %vm1694, %v1663, 0
      %v1717 = vsel %vm1694, %v1664, 0
      %v1720 = vsel %vm1694, %v1665, 0
      %v1723 = vsel %vm1694, %v1666, 0
      %v1726 = vsel %vm1694, %v1667, 0
      %v1729 = vsel %vm1694, %v1668, 0
      %v1732 = vsel %vm1694, %v1669, 0
      %v1735 = vsel %vm1694, %v1670, 0
      %v1738 = vsel %vm1694, %v1671, 0
      %v1741 = vsel %vm1694, %v1672, 0
      %v1744 = vsel %vm1694, %v1673, 0
      %v1747 = vsel %vm1694, %v1674, 0
      %v1750 = vsel %vm1694, %v1675, 0
      %v1753 = vsel %vm1694, %v1676, 0
      %v1756 = vsel %vm1694, %v1677, 0
      %v1759 = vsel %vm1694, %v1678, 0
      %v1762 = vsel %vm1694, %v1679, 0
      %v1765 = vsel %vm1694, %v1680, 0
      %v1768 = vsel %vm1694, %v1681, 0
      %v1771 = vsel %vm1694, %v1682, 0
      %v1774 = vsel %vm1694, %v1683, 0
      %v1777 = vsel %vm1694, %v1684, 0
      %v1780 = vsel %vm1694, %v1685, 0
      %v1783 = vsel %vm1694, %v1686, 0
      %v1786 = vsel %vm1694, %v1687, 0
      %v1789 = vsel %vm1694, %v1688, 0
      %vm1791 = vcmask 1043456
      %v1793 = vsel %vm1791, %v1693, 0
      %1795 = vmatpush.msra.mxu0 0.0
      %1796 = vmatpush.msra.mxu0 0.0
      %1797 = vmatpush.msra.mxu0 0.0
      %1798 = vmatpush.msra.mxu0 0.0
      %1799 = vmatpush.msra.mxu0 0.0
      %1800 = vmatpush.msra.mxu0 0.0
      %1801 = vmatpush.msra.mxu0 0.0
      %1802 = vmatpush.msra.mxu0 0.0
      %1803 = vmatpush.msra.mxu0 0.0
      %1804 = vmatpush.msra.mxu0 0.0
      %1805 = vmatpush.msra.mxu0 0.0
      %1806 = vmatpush.msra.mxu0 %v1793
      %1807 = vmatpush.msra.mxu0 %v1692
      %1808 = vmatpush.msra.mxu0 %v1691
      %1809 = vmatpush.msra.mxu0 %v1690
      %1810 = vmatpush.msra.mxu0 %v1689
      %1811 = vmatmul.f32.gmra.mxu0 %v1696
      %v1812 = vpop.f32.mrf.mxu0
      %v1813 = vadd.f32 0.0, %v1812
      %1814 = vmatmul.f32.gmra.mxu0 %v1699
      %v1815 = vpop.f32.mrf.mxu0
      %v1816 = vadd.f32 0.0, %v1815
      %1817 = vmatmul.f32.gmra.mxu0 %v1702
      %v1818 = vpop.f32.mrf.mxu0
      %v1819 = vadd.f32 0.0, %v1818
      %1820 = vmatmul.f32.gmra.mxu0 %v1705
      %v1821 = vpop.f32.mrf.mxu0
      %v1822 = vadd.f32 0.0, %v1821
      %1823 = vmatmul.f32.gmra.mxu0 %v1708
      %v1824 = vpop.f32.mrf.mxu0
      %v1825 = vadd.f32 0.0, %v1824
      %1826 = vmatmul.f32.gmra.mxu0 %v1711
      %v1827 = vpop.f32.mrf.mxu0
      %v1828 = vadd.f32 0.0, %v1827
      %1829 = vmatmul.f32.gmra.mxu0 %v1714
      %v1830 = vpop.f32.mrf.mxu0
      %v1831 = vadd.f32 0.0, %v1830
      %1832 = vmatmul.f32.gmra.mxu0 %v1717
      %v1833 = vpop.f32.mrf.mxu0
      %v1834 = vadd.f32 0.0, %v1833
      %1835 = vmatmul.f32.gmra.mxu0 %v1720
      %v1836 = vpop.f32.mrf.mxu0
      %v1837 = vadd.f32 0.0, %v1836
      %1838 = vmatmul.f32.gmra.mxu0 %v1723
      %v1839 = vpop.f32.mrf.mxu0
      %v1840 = vadd.f32 0.0, %v1839
      %1841 = vmatmul.f32.gmra.mxu0 %v1726
      %v1842 = vpop.f32.mrf.mxu0
      %v1843 = vadd.f32 0.0, %v1842
      %1844 = vmatmul.f32.gmra.mxu0 %v1729
      %v1845 = vpop.f32.mrf.mxu0
      %v1846 = vadd.f32 0.0, %v1845
      %1847 = vmatmul.f32.gmra.mxu0 %v1732
      %v1848 = vpop.f32.mrf.mxu0
      %v1849 = vadd.f32 0.0, %v1848
      %1850 = vmatmul.f32.gmra.mxu0 %v1735
      %v1851 = vpop.f32.mrf.mxu0
      %v1852 = vadd.f32 0.0, %v1851
      %1853 = vmatmul.f32.gmra.mxu0 %v1738
      %v1854 = vpop.f32.mrf.mxu0
      %v1855 = vadd.f32 0.0, %v1854
      %1856 = vmatmul.f32.gmra.mxu0 %v1741
      %v1857 = vpop.f32.mrf.mxu0
      %v1858 = vadd.f32 0.0, %v1857
      %1859 = vmatmul.f32.gmra.mxu0 %v1744
      %v1860 = vpop.f32.mrf.mxu0
      %v1861 = vadd.f32 0.0, %v1860
      %1862 = vmatmul.f32.gmra.mxu0 %v1747
      %v1863 = vpop.f32.mrf.mxu0
      %v1864 = vadd.f32 0.0, %v1863
      %1865 = vmatmul.f32.gmra.mxu0 %v1750
      %v1866 = vpop.f32.mrf.mxu0
      %v1867 = vadd.f32 0.0, %v1866
      %1868 = vmatmul.f32.gmra.mxu0 %v1753
      %v1869 = vpop.f32.mrf.mxu0
      %v1870 = vadd.f32 0.0, %v1869
      %1871 = vmatmul.f32.gmra.mxu0 %v1756
      %v1872 = vpop.f32.mrf.mxu0
      %v1873 = vadd.f32 0.0, %v1872
      %1874 = vmatmul.f32.gmra.mxu0 %v1759
      %v1875 = vpop.f32.mrf.mxu0
      %v1876 = vadd.f32 0.0, %v1875
      %1877 = vmatmul.f32.gmra.mxu0 %v1762
      %v1878 = vpop.f32.mrf.mxu0
      %v1879 = vadd.f32 0.0, %v1878
      %1880 = vmatmul.f32.gmra.mxu0 %v1765
      %v1881 = vpop.f32.mrf.mxu0
      %v1882 = vadd.f32 0.0, %v1881
      %1883 = vmatmul.f32.gmra.mxu0 %v1768
      %v1884 = vpop.f32.mrf.mxu0
      %v1885 = vadd.f32 0.0, %v1884
      %1886 = vmatmul.f32.gmra.mxu0 %v1771
      %v1887 = vpop.f32.mrf.mxu0
      %v1888 = vadd.f32 0.0, %v1887
      %1889 = vmatmul.f32.gmra.mxu0 %v1774
      %v1890 = vpop.f32.mrf.mxu0
      %v1891 = vadd.f32 0.0, %v1890
      %1892 = vmatmul.f32.gmra.mxu0 %v1777
      %v1893 = vpop.f32.mrf.mxu0
      %v1894 = vadd.f32 0.0, %v1893
      %1895 = vmatmul.f32.gmra.mxu0 %v1780
      %v1896 = vpop.f32.mrf.mxu0
      %v1897 = vadd.f32 0.0, %v1896
      %1898 = vmatmul.f32.gmra.mxu0 %v1783
      %v1899 = vpop.f32.mrf.mxu0
      %v1900 = vadd.f32 0.0, %v1899
      %1901 = vmatmul.f32.gmra.mxu0 %v1786
      %v1902 = vpop.f32.mrf.mxu0
      %v1903 = vadd.f32 0.0, %v1902
      %1904 = vmatmul.f32.gmra.mxu0 %v1789
      %v1905 = vpop.f32.mrf.mxu0
      %v1906 = vadd.f32 0.0, %v1905
      %1907 = vdwg.mxu0
      %1908 = vst.msk [vmem:[%s177] sm:$0xff] %vm214, %v1813
      %1909 = vst.msk [vmem:[%s177 + $0x8] sm:$0xff] %vm214, %v1816
      %1910 = vst.msk [vmem:[%s177 + $0x10] sm:$0xff] %vm214, %v1819
      %1911 = vst.msk [vmem:[%s177 + $0x18] sm:$0xff] %vm214, %v1822
      %1912 = vst.msk [vmem:[%s177 + $0x20] sm:$0xff] %vm214, %v1825
      %1913 = vst.msk [vmem:[%s177 + $0x28] sm:$0xff] %vm214, %v1828
      %1914 = vst.msk [vmem:[%s177 + $0x30] sm:$0xff] %vm214, %v1831
      %1915 = vst.msk [vmem:[%s177 + $0x38] sm:$0xff] %vm214, %v1834
      %1916 = vst.msk [vmem:[%s177 + $0x40] sm:$0xff] %vm214, %v1837
      %1917 = vst.msk [vmem:[%s177 + $0x48] sm:$0xff] %vm214, %v1840
      %1918 = vst.msk [vmem:[%s177 + $0x50] sm:$0xff] %vm214, %v1843
      %1919 = vst.msk [vmem:[%s177 + $0x58] sm:$0xff] %vm214, %v1846
      %1920 = vst.msk [vmem:[%s177 + $0x60] sm:$0xff] %vm214, %v1849
      %1921 = vst.msk [vmem:[%s177 + $0x68] sm:$0xff] %vm214, %v1852
      %1922 = vst.msk [vmem:[%s177 + $0x70] sm:$0xff] %vm214, %v1855
      %1923 = vst.msk [vmem:[%s177 + $0x78] sm:$0xff] %vm214, %v1858
      %1924 = vst.msk [vmem:[%s177 + $0x80] sm:$0xff] %vm214, %v1861
      %1925 = vst.msk [vmem:[%s177 + $0x88] sm:$0xff] %vm214, %v1864
      %1926 = vst.msk [vmem:[%s177 + $0x90] sm:$0xff] %vm214, %v1867
      %1927 = vst.msk [vmem:[%s177 + $0x98] sm:$0xff] %vm214, %v1870
      %1928 = vst.msk [vmem:[%s177 + $0xa0] sm:$0xff] %vm214, %v1873
      %1929 = vst.msk [vmem:[%s177 + $0xa8] sm:$0xff] %vm214, %v1876
      %1930 = vst.msk [vmem:[%s177 + $0xb0] sm:$0xff] %vm214, %v1879
      %1931 = vst.msk [vmem:[%s177 + $0xb8] sm:$0xff] %vm214, %v1882
      %1932 = vst.msk [vmem:[%s177 + $0xc0] sm:$0xff] %vm214, %v1885
      %1933 = vst.msk [vmem:[%s177 + $0xc8] sm:$0xff] %vm214, %v1888
      %1934 = vst.msk [vmem:[%s177 + $0xd0] sm:$0xff] %vm214, %v1891
      %1935 = vst.msk [vmem:[%s177 + $0xd8] sm:$0xff] %vm214, %v1894
      %1936 = vst.msk [vmem:[%s177 + $0xe0] sm:$0xff] %vm214, %v1897
      %1937 = vst.msk [vmem:[%s177 + $0xe8] sm:$0xff] %vm214, %v1900
      %1938 = vst.msk [vmem:[%s177 + $0xf0] sm:$0xff] %vm214, %v1903
      %1939 = vst.msk [vmem:[%s177 + $0xf8] sm:$0xff] %vm214, %v1906
      %v1940 = vsel %vm214, %v1813, 0.0
      %v1941 = vsel %vm214, %v1816, 0.0
      %v1942 = vadd.f32 %v1940, %v1941
      %v1943 = vsel %vm214, %v1819, 0.0
      %v1944 = vadd.f32 %v1942, %v1943
      %v1945 = vsel %vm214, %v1822, 0.0
      %v1946 = vadd.f32 %v1944, %v1945
      %v1947 = vsel %vm214, %v1825, 0.0
      %v1948 = vadd.f32 %v1946, %v1947
      %v1949 = vsel %vm214, %v1828, 0.0
      %v1950 = vadd.f32 %v1948, %v1949
      %v1951 = vsel %vm214, %v1831, 0.0
      %v1952 = vadd.f32 %v1950, %v1951
      %v1953 = vsel %vm214, %v1834, 0.0
      %v1954 = vadd.f32 %v1952, %v1953
      %v1955 = vsel %vm214, %v1837, 0.0
      %v1956 = vadd.f32 %v1954, %v1955
      %v1957 = vsel %vm214, %v1840, 0.0
      %v1958 = vadd.f32 %v1956, %v1957
      %v1959 = vsel %vm214, %v1843, 0.0
      %v1960 = vadd.f32 %v1958, %v1959
      %v1961 = vsel %vm214, %v1846, 0.0
      %v1962 = vadd.f32 %v1960, %v1961
      %v1963 = vsel %vm214, %v1849, 0.0
      %v1964 = vadd.f32 %v1962, %v1963
      %v1965 = vsel %vm214, %v1852, 0.0
      %v1966 = vadd.f32 %v1964, %v1965
      %v1967 = vsel %vm214, %v1855, 0.0
      %v1968 = vadd.f32 %v1966, %v1967
      %v1969 = vsel %vm214, %v1858, 0.0
      %v1970 = vadd.f32 %v1968, %v1969
      %v1971 = vsel %vm214, %v1861, 0.0
      %v1972 = vadd.f32 %v1970, %v1971
      %v1973 = vsel %vm214, %v1864, 0.0
      %v1974 = vadd.f32 %v1972, %v1973
      %v1975 = vsel %vm214, %v1867, 0.0
      %v1976 = vadd.f32 %v1974, %v1975
      %v1977 = vsel %vm214, %v1870, 0.0
      %v1978 = vadd.f32 %v1976, %v1977
      %v1979 = vsel %vm214, %v1873, 0.0
      %v1980 = vadd.f32 %v1978, %v1979
      %v1981 = vsel %vm214, %v1876, 0.0
      %v1982 = vadd.f32 %v1980, %v1981
      %v1983 = vsel %vm214, %v1879, 0.0
      %v1984 = vadd.f32 %v1982, %v1983
      %v1985 = vsel %vm214, %v1882, 0.0
      %v1986 = vadd.f32 %v1984, %v1985
      %v1987 = vsel %vm214, %v1885, 0.0
      %v1988 = vadd.f32 %v1986, %v1987
      %v1989 = vsel %vm214, %v1888, 0.0
      %v1990 = vadd.f32 %v1988, %v1989
      %v1991 = vsel %vm214, %v1891, 0.0
      %v1992 = vadd.f32 %v1990, %v1991
      %v1993 = vsel %vm214, %v1894, 0.0
      %v1994 = vadd.f32 %v1992, %v1993
      %v1995 = vsel %vm214, %v1897, 0.0
      %v1996 = vadd.f32 %v1994, %v1995
      %v1997 = vsel %vm214, %v1900, 0.0
      %v1998 = vadd.f32 %v1996, %v1997
      %v1999 = vsel %vm214, %v1903, 0.0
      %v2000 = vadd.f32 %v1998, %v1999
      %v2001 = vsel %vm214, %v1906, 0.0
      %v2002 = vadd.f32 %v2000, %v2001
      %v2003 = vrot.slane %v2002, 4
      %v2004 = vadd.f32 %v2002, %v2003
      %v2005 = vrot.slane %v2004, 2
      %v2006 = vadd.f32 %v2004, %v2005
      %v2007 = vrot.slane %v2006, 1
      %v2008 = vadd.f32 %v2006, %v2007
      %vm2009 = vcmask 24576
      %2010 = vst.msk [vmem:[%s181] sm:$0x1] %vm2009, %v2008
      %v2011 = vmul.f32 %v1813, %v1813
      %v2012 = vmul.f32 %v1816, %v1816
      %v2013 = vmul.f32 %v1819, %v1819
      %v2014 = vmul.f32 %v1822, %v1822
      %v2015 = vmul.f32 %v1825, %v1825
      %v2016 = vmul.f32 %v1828, %v1828
      %v2017 = vmul.f32 %v1831, %v1831
      %v2018 = vmul.f32 %v1834, %v1834
      %v2019 = vmul.f32 %v1837, %v1837
      %v2020 = vmul.f32 %v1840, %v1840
      %v2021 = vmul.f32 %v1843, %v1843
      %v2022 = vmul.f32 %v1846, %v1846
      %v2023 = vmul.f32 %v1849, %v1849
      %v2024 = vmul.f32 %v1852, %v1852
      %v2025 = vmul.f32 %v1855, %v1855
      %v2026 = vmul.f32 %v1858, %v1858
      %v2027 = vmul.f32 %v1861, %v1861
      %v2028 = vmul.f32 %v1864, %v1864
      %v2029 = vmul.f32 %v1867, %v1867
      %v2030 = vmul.f32 %v1870, %v1870
      %v2031 = vmul.f32 %v1873, %v1873
      %v2032 = vmul.f32 %v1876, %v1876
      %v2033 = vmul.f32 %v1879, %v1879
      %v2034 = vmul.f32 %v1882, %v1882
      %v2035 = vmul.f32 %v1885, %v1885
      %v2036 = vmul.f32 %v1888, %v1888
      %v2037 = vmul.f32 %v1891, %v1891
      %v2038 = vmul.f32 %v1894, %v1894
      %v2039 = vmul.f32 %v1897, %v1897
      %v2040 = vmul.f32 %v1900, %v1900
      %v2041 = vmul.f32 %v1903, %v1903
      %v2042 = vmul.f32 %v1906, %v1906
      %v2043 = vsel %vm214, %v2011, 0.0
      %v2044 = vsel %vm214, %v2012, 0.0
      %v2045 = vadd.f32 %v2043, %v2044
      %v2046 = vsel %vm214, %v2013, 0.0
      %v2047 = vadd.f32 %v2045, %v2046
      %v2048 = vsel %vm214, %v2014, 0.0
      %v2049 = vadd.f32 %v2047, %v2048
      %v2050 = vsel %vm214, %v2015, 0.0
      %v2051 = vadd.f32 %v2049, %v2050
      %v2052 = vsel %vm214, %v2016, 0.0
      %v2053 = vadd.f32 %v2051, %v2052
      %v2054 = vsel %vm214, %v2017, 0.0
      %v2055 = vadd.f32 %v2053, %v2054
      %v2056 = vsel %vm214, %v2018, 0.0
      %v2057 = vadd.f32 %v2055, %v2056
      %v2058 = vsel %vm214, %v2019, 0.0
      %v2059 = vadd.f32 %v2057, %v2058
      %v2060 = vsel %vm214, %v2020, 0.0
      %v2061 = vadd.f32 %v2059, %v2060
      %v2062 = vsel %vm214, %v2021, 0.0
      %v2063 = vadd.f32 %v2061, %v2062
      %v2064 = vsel %vm214, %v2022, 0.0
      %v2065 = vadd.f32 %v2063, %v2064
      %v2066 = vsel %vm214, %v2023, 0.0
      %v2067 = vadd.f32 %v2065, %v2066
      %v2068 = vsel %vm214, %v2024, 0.0
      %v2069 = vadd.f32 %v2067, %v2068
      %v2070 = vsel %vm214, %v2025, 0.0
      %v2071 = vadd.f32 %v2069, %v2070
      %v2072 = vsel %vm214, %v2026, 0.0
      %v2073 = vadd.f32 %v2071, %v2072
      %v2074 = vsel %vm214, %v2027, 0.0
      %v2075 = vadd.f32 %v2073, %v2074
      %v2076 = vsel %vm214, %v2028, 0.0
      %v2077 = vadd.f32 %v2075, %v2076
      %v2078 = vsel %vm214, %v2029, 0.0
      %v2079 = vadd.f32 %v2077, %v2078
      %v2080 = vsel %vm214, %v2030, 0.0
      %v2081 = vadd.f32 %v2079, %v2080
      %v2082 = vsel %vm214, %v2031, 0.0
      %v2083 = vadd.f32 %v2081, %v2082
      %v2084 = vsel %vm214, %v2032, 0.0
      %v2085 = vadd.f32 %v2083, %v2084
      %v2086 = vsel %vm214, %v2033, 0.0
      %v2087 = vadd.f32 %v2085, %v2086
      %v2088 = vsel %vm214, %v2034, 0.0
      %v2089 = vadd.f32 %v2087, %v2088
      %v2090 = vsel %vm214, %v2035, 0.0
      %v2091 = vadd.f32 %v2089, %v2090
      %v2092 = vsel %vm214, %v2036, 0.0
      %v2093 = vadd.f32 %v2091, %v2092
      %v2094 = vsel %vm214, %v2037, 0.0
      %v2095 = vadd.f32 %v2093, %v2094
      %v2096 = vsel %vm214, %v2038, 0.0
      %v2097 = vadd.f32 %v2095, %v2096
      %v2098 = vsel %vm214, %v2039, 0.0
      %v2099 = vadd.f32 %v2097, %v2098
      %v2100 = vsel %vm214, %v2040, 0.0
      %v2101 = vadd.f32 %v2099, %v2100
      %v2102 = vsel %vm214, %v2041, 0.0
      %v2103 = vadd.f32 %v2101, %v2102
      %v2104 = vsel %vm214, %v2042, 0.0
      %v2105 = vadd.f32 %v2103, %v2104
      %v2106 = vrot.slane %v2105, 4
      %v2107 = vadd.f32 %v2105, %v2106
      %v2108 = vrot.slane %v2107, 2
      %v2109 = vadd.f32 %v2107, %v2108
      %v2110 = vrot.slane %v2109, 1
      %v2111 = vadd.f32 %v2109, %v2110
      %2112 = vst.msk [vmem:[%s181 + $0x1] sm:$0x1] %vm2009, %v2111
      %p2113 = scmp.lt.s32.totalorder %s15, 1
      %s2114 = scalar_select %p2113, %s15, 1
      %s2115 = smul.addr %s2114, 32
      %s2116 = smul.addr %s2115, 8
      %s2117 = scalar_lea.vmem %s2, %s2116
      %p2118 = scmp.lt.s32.totalorder %s15, 1
      %s2119 = scalar_select %p2118, %s15, 1
      %s2120 = smul.addr %s2119, 2
      %s2121 = scalar_lea.vmem %s3, %s2120
      // Predicated region
      $region29: #{basic_block_forward.3} parent=27 // pred_check
        %p2122 = pneg %p80
      $region30: #{basic_block_forward.3} parent=27 // pred_check_branch
        %2124 = sbr.rel (%p2122) target = $region32
      $region31: #{basic_block_forward.3} parent=27 // pred_region
        _
      $region32: #{basic_block_forward.3} parent=27 // pred_fallthru
        _
      // Predicated region
      $region33: #{basic_block_forward.3} parent=27 // pred_check
        %p2125 = pneg %p106
      $region34: #{basic_block_forward.3} parent=27 // pred_check_branch
        %2127 = sbr.rel (%p2125) target = $region36
      $region35: #{basic_block_forward.3} parent=27 // pred_region
        _
      $region36: #{basic_block_forward.3} parent=27 // pred_fallthru
        _
    $region28: #{basic_block_forward.3} parent=5 // pred_fallthru
      _
    %p2128 = scmp.le.s32.totalorder 2, %s10
    // Predicated region
    $region37: #{basic_block_forward.3} parent=5 // pred_check
      %p2129 = pneg %p2128
    $region38: #{basic_block_forward.3} parent=5 // pred_check_branch
      %2131 = sbr.rel (%p2129) target = $region40
    $region39: #{basic_block_forward.3} parent=5 // pred_region
      %s2132 = ssub.s32 %s10, 2
      // Predicated region
      $region41: #{basic_block_forward.3} parent=39 // pred_check
        %p2133 = pneg %p86
      $region42: #{basic_block_forward.3} parent=39 // pred_check_branch
        %2135 = sbr.rel (%p2133) target = $region44
      $region43: #{basic_block_forward.3} parent=39 // pred_region
        %p2136 = scmp.lt.s32.totalorder %s16, 1
        %s2137 = scalar_select %p2136, %s16, 1
        %s2138 = smul.addr %s2137, 32
        %s2139 = smul.addr %s2138, 8
        %s2140 = scalar_lea.vmem %s2, %s2139
      $region44: #{basic_block_forward.3} parent=39 // pred_fallthru
        _
      // Predicated region
      $region45: #{basic_block_forward.3} parent=39 // pred_check
        %p2141 = pneg %p112
      $region46: #{basic_block_forward.3} parent=39 // pred_check_branch
        %2143 = sbr.rel (%p2141) target = $region48
      $region47: #{basic_block_forward.3} parent=39 // pred_region
        %p2144 = scmp.lt.s32.totalorder %s16, 1
        %s2145 = scalar_select %p2144, %s16, 1
        %s2146 = smul.addr %s2145, 2
        %s2147 = scalar_lea.vmem %s3, %s2146
      $region48: #{basic_block_forward.3} parent=39 // pred_fallthru
        _
    $region40: #{basic_block_forward.3} parent=5 // pred_fallthru
      _
  $region6: #{basic_block_forward.3} parent=0 // loop_footer
    %s14 = sadd.s32 1, %s10
  $region7: #{basic_block_forward.3} parent=0 // loop_footer_branch
    %9 = sbr.rel target = $region3
  $region8: #{basic_block_forward.3} parent=0 // loop_exit
    _

// kernel: basic_block_forward.4
$region0: #{basic_block_forward.4}
  #allocation0 [shape = 'u32[]', space=smem, size = 0x4, offset = 0x4, fixed_abs, tag = 'smem constant byte address 0x4 - core index']
  #allocation1 [shape = 'u32[72,128]{1,0:T(1,128)}', space=vmem, size = 0x9000, scoped, tag = 'internal scratch']
  #allocation2 [shape = 'f32[18,18,4]{2,1,0:T(8,128)}', space=vmem, size = 0x36000, scoped, tag = 'scratch operand']
  #allocation3 [shape = 'f32[256,36]{1,0:T(8,128)}', space=vmem, size = 0x20000, scoped, tag = 'scratch operand']
  %s0 = inlined_call_operand.vmem [shape: f32[2,16,16,4], index: 0, kind: input, shape index: {}]
  %s1 = inlined_call_operand.vmem [shape: f32[36,4], index: 1, kind: input, shape index: {}]
  %s2 = inlined_call_operand.vmem [shape: f32[1,4], index: 2, kind: input, shape index: {}]
  %s3 = inlined_call_operand.vmem [shape: f32[1,4], index: 3, kind: input, shape index: {}]
  %s4 = inlined_call_operand.vmem [shape: f32[2,16,16,4], index: 4, kind: output, shape index: {0}]
  %s5 = inlined_call_operand.vmem [shape: f32[2,2,4], index: 5, kind: output, shape index: {1}]
  %6 = xla_tuple %s4, %s5
  %s7 = sld [smem:[#allocation0]]
  $region57: #{basic_block_forward.4} parent=0
    _
  %s9 = ssub.s32 1, %s7
  %s10 = scalar_select 0, %s9, %s7
  loop: start=0, step=1, limit=4
  $region2: #{basic_block_forward.4} parent=0 // loop_pre_header
    _
  $region3: #{basic_block_forward.4} parent=0 // loop_header
    %s12 = sphi 0, %s16
    %p13 = scmp.ge.s32.totalorder %s12, 4
    %s22 = sphi 0, %s24
    %s25 = sphi 0, %s22
    %s26 = sphi 0, %s25
    %s42 = sphi 0, %s26
    %s46 = sphi 0, %s46
    %s48 = sphi 0, %s46
    %s49 = sphi 0, %s48
    %s63 = sphi 0, %s49
    %s67 = sphi 0, %s67
    %s69 = sphi 0, %s67
    %s70 = sphi 0, %s69
    %s84 = sphi 0, %s70
    %s88 = sphi 0, %s88
    %s90 = sphi 0, %s88
    %s91 = sphi 0, %s90
    %s105 = sphi 0, %s91
    %s111 = sphi 0, %s113
    %s114 = sphi 0, %s111
    %s115 = sphi 0, %s114
    %s131 = sphi 0, %s115
    %s137 = sphi 0, %s139
    %s140 = sphi 0, %s137
    %s141 = sphi 0, %s140
    %s157 = sphi 0, %s141
  $region4: #{basic_block_forward.4} parent=0 // loop_header_branch
    %15 = sbr.rel (%p13) target = $region8
  $region5: #{basic_block_forward.4} parent=0 // loop_body
    %s17 = ssub.s32 %s12, 1
    %s18 = ssub.s32 %s12, 2
    %s19 = sadd.s32 %s12, 1
    %s20 = ssub.s32 %s12, %s19
    %p21 = scmp.eq.s32.totalorder %s20, 0
    %s23 = sadd.s32 %s22, 1
    %s24 = scalar_select %p21, %s22, %s23
    %p27 = pneg %p21
    %p28 = scmp.eq.s32.totalorder %s12, 1
    %p29 = por %p27, %p28
    %p30 = scmp.ne.s32.totalorder %s22, %s25
    %p31 = scmp.eq.s32.totalorder %s12, 0
    %p32 = por %p30, %p31
    %p33 = scmp.ne.s32.totalorder %s22, %s25
    %p34 = scmp.eq.s32.totalorder %s17, 1
    %p35 = por %p33, %p34
    %p36 = scmp.ne.s32.totalorder %s25, %s26
    %p37 = scmp.eq.s32.totalorder %s17, 0
    %p38 = por %p36, %p37
    %p39 = scmp.ne.s32.totalorder %s25, %s26
    %p40 = scmp.eq.s32.totalorder %s18, 1
    %p41 = por %p39, %p40
    %p43 = scmp.ne.s32.totalorder %s26, %s42
    %p44 = scmp.eq.s32.totalorder %s18, 0
    %p45 = por %p43, %p44
    %s47 = sadd.s32 %s46, 1
    %p50 = scmp.eq.s32.totalorder %s12, 1
    %p51 = scmp.ne.s32.totalorder %s46, %s48
    %p52 = scmp.eq.s32.totalorder %s12, 0
    %p53 = por %p51, %p52
    %p54 = scmp.ne.s32.totalorder %s46, %s48
    %p55 = scmp.eq.s32.totalorder %s17, 1
    %p56 = por %p54, %p55
    %p57 = scmp.ne.s32.totalorder %s48, %s49
    %p58 = scmp.eq.s32.totalorder %s17, 0
    %p59 = por %p57, %p58
    %p60 = scmp.ne.s32.totalorder %s48, %s49
    %p61 = scmp.eq.s32.totalorder %s18, 1
    %p62 = por %p60, %p61
    %p64 = scmp.ne.s32.totalorder %s49, %s63
    %p65 = scmp.eq.s32.totalorder %s18, 0
    %p66 = por %p64, %p65
    %s68 = sadd.s32 %s67, 1
    %p71 = scmp.eq.s32.totalorder %s12, 1
    %p72 = scmp.ne.s32.totalorder %s67, %s69
    %p73 = scmp.eq.s32.totalorder %s12, 0
    %p74 = por %p72, %p73
    %p75 = scmp.ne.s32.totalorder %s67, %s69
    %p76 = scmp.eq.s32.totalorder %s17, 1
    %p77 = por %p75, %p76
    %p78 = scmp.ne.s32.totalorder %s69, %s70
    %p79 = scmp.eq.s32.totalorder %s17, 0
    %p80 = por %p78, %p79
    %p81 = scmp.ne.s32.totalorder %s69, %s70
    %p82 = scmp.eq.s32.totalorder %s18, 1
    %p83 = por %p81, %p82
    %p85 = scmp.ne.s32.totalorder %s70, %s84
    %p86 = scmp.eq.s32.totalorder %s18, 0
    %p87 = por %p85, %p86
    %s89 = sadd.s32 %s88, 1
    %p92 = scmp.eq.s32.totalorder %s12, 1
    %p93 = scmp.ne.s32.totalorder %s88, %s90
    %p94 = scmp.eq.s32.totalorder %s12, 0
    %p95 = por %p93, %p94
    %p96 = scmp.ne.s32.totalorder %s88, %s90
    %p97 = scmp.eq.s32.totalorder %s17, 1
    %p98 = por %p96, %p97
    %p99 = scmp.ne.s32.totalorder %s90, %s91
    %p100 = scmp.eq.s32.totalorder %s17, 0
    %p101 = por %p99, %p100
    %p102 = scmp.ne.s32.totalorder %s90, %s91
    %p103 = scmp.eq.s32.totalorder %s18, 1
    %p104 = por %p102, %p103
    %p106 = scmp.ne.s32.totalorder %s91, %s105
    %p107 = scmp.eq.s32.totalorder %s18, 0
    %p108 = por %p106, %p107
    %s109 = ssub.s32 %s12, %s19
    %p110 = scmp.eq.s32.totalorder %s109, 0
    %s112 = sadd.s32 %s111, 1
    %s113 = scalar_select %p110, %s111, %s112
    %p116 = pneg %p110
    %p117 = scmp.eq.s32.totalorder %s12, 1
    %p118 = por %p116, %p117
    %p119 = scmp.ne.s32.totalorder %s111, %s114
    %p120 = scmp.eq.s32.totalorder %s12, 0
    %p121 = por %p119, %p120
    %p122 = scmp.ne.s32.totalorder %s111, %s114
    %p123 = scmp.eq.s32.totalorder %s17, 1
    %p124 = por %p122, %p123
    %p125 = scmp.ne.s32.totalorder %s114, %s115
    %p126 = scmp.eq.s32.totalorder %s17, 0
    %p127 = por %p125, %p126
    %p128 = scmp.ne.s32.totalorder %s114, %s115
    %p129 = scmp.eq.s32.totalorder %s18, 1
    %p130 = por %p128, %p129
    %p132 = scmp.ne.s32.totalorder %s115, %s131
    %p133 = scmp.eq.s32.totalorder %s18, 0
    %p134 = por %p132, %p133
    %s135 = ssub.s32 %s12, %s19
    %p136 = scmp.eq.s32.totalorder %s135, 0
    %s138 = sadd.s32 %s137, 1
    %s139 = scalar_select %p136, %s137, %s138
    %p142 = pneg %p136
    %p143 = scmp.eq.s32.totalorder %s12, 1
    %p144 = por %p142, %p143
    %p145 = scmp.ne.s32.totalorder %s137, %s140
    %p146 = scmp.eq.s32.totalorder %s12, 0
    %p147 = por %p145, %p146
    %p148 = scmp.ne.s32.totalorder %s137, %s140
    %p149 = scmp.eq.s32.totalorder %s17, 1
    %p150 = por %p148, %p149
    %p151 = scmp.ne.s32.totalorder %s140, %s141
    %p152 = scmp.eq.s32.totalorder %s17, 0
    %p153 = por %p151, %p152
    %p154 = scmp.ne.s32.totalorder %s140, %s141
    %p155 = scmp.eq.s32.totalorder %s18, 1
    %p156 = por %p154, %p155
    %p158 = scmp.ne.s32.totalorder %s141, %s157
    %p159 = scmp.eq.s32.totalorder %s18, 0
    %p160 = por %p158, %p159
    %p161 = scmp.le.s32.totalorder 1, %s12
    %p162 = scmp.lt.s32.totalorder %s12, 3
    %p163 = pnand %p161, %p162
    %p164 = pneg %p163
    // Predicated region
    $region9: #{basic_block_forward.4} parent=5 // pred_check
      _
    $region10: #{basic_block_forward.4} parent=5 // pred_check_branch
      %166 = sbr.rel (%p163) target = $region12
    $region11: #{basic_block_forward.4} parent=5 // pred_region
      %s167 = ssub.s32 %s12, 1
      // Predicated region
      $region13: #{basic_block_forward.4} parent=11 // pred_check
        %p168 = pneg %p59
      $region14: #{basic_block_forward.4} parent=11 // pred_check_branch
        %170 = sbr.rel (%p168) target = $region16
      $region15: #{basic_block_forward.4} parent=11 // pred_region
        _
      $region16: #{basic_block_forward.4} parent=11 // pred_fallthru
        _
      // Predicated region
      $region17: #{basic_block_forward.4} parent=11 // pred_check
        %p171 = pneg %p80
      $region18: #{basic_block_forward.4} parent=11 // pred_check_branch
        %173 = sbr.rel (%p171) target = $region20
      $region19: #{basic_block_forward.4} parent=11 // pred_region
        _
      $region20: #{basic_block_forward.4} parent=11 // pred_fallthru
        _
      // Predicated region
      $region21: #{basic_block_forward.4} parent=11 // pred_check
        %p174 = pneg %p101
      $region22: #{basic_block_forward.4} parent=11 // pred_check_branch
        %176 = sbr.rel (%p174) target = $region24
      $region23: #{basic_block_forward.4} parent=11 // pred_region
        _
      $region24: #{basic_block_forward.4} parent=11 // pred_fallthru
        _
    $region12: #{basic_block_forward.4} parent=5 // pred_fallthru
      _
    %p177 = scmp.lt.s32.totalorder %s12, 2
    // Predicated region
    $region25: #{basic_block_forward.4} parent=5 // pred_check
      %p178 = pneg %p177
    $region26: #{basic_block_forward.4} parent=5 // pred_check_branch
      %180 = sbr.rel (%p178) target = $region28
    $region27: #{basic_block_forward.4} parent=5 // pred_region
      // Predicated region
      $region29: #{basic_block_forward.4} parent=27 // pred_check
        %p181 = pneg %p32
      $region30: #{basic_block_forward.4} parent=27 // pred_check_branch
        %183 = sbr.rel (%p181) target = $region32
      $region31: #{basic_block_forward.4} parent=27 // pred_region
        %p184 = scmp.lt.s32.totalorder %s12, 1
        %s185 = scalar_select %p184, %s12, 1
        %s186 = smul.addr %s185, 32
        %s187 = smul.addr %s186, 8
        %s188 = scalar_lea.vmem %s0, %s187
      $region32: #{basic_block_forward.4} parent=27 // pred_fallthru
        _
    $region28: #{basic_block_forward.4} parent=5 // pred_fallthru
      _
    %p189 = scmp.le.s32.totalorder 1, %s12
    %p190 = scmp.lt.s32.totalorder %s12, 3
    %p191 = pnand %p189, %p190
    %p192 = pneg %p191
    // Predicated region
    $region33: #{basic_block_forward.4} parent=5 // pred_check
      _
    $region34: #{basic_block_forward.4} parent=5 // pred_check_branch
      %194 = sbr.rel (%p191) target = $region36
    $region35: #{basic_block_forward.4} parent=5 // pred_region
      %s195 = ssub.s32 %s12, 1
      %p196 = scmp.lt.s32.totalorder %s17, 1
      %s197 = scalar_select %p196, %s17, 1
      %s198 = smul.addr %s197, 32
      %s199 = smul.addr %s198, 8
      %s200 = scalar_lea.vmem %s0, %s199
      %p201 = pneg %p38
      %p202 = pneg %p35
      %p203 = pneg %p59
      %p204 = pneg %p56
      %p205 = pneg %p80
      %p206 = pneg %p77
      %p207 = pneg %p101
      %p208 = pneg %p98
      %p209 = pneg %p127
      %p210 = pneg %p124
      %p211 = scmp.lt.s32.totalorder %s17, 1
      %s212 = scalar_select %p211, %s17, 1
      %s213 = smul.addr %s212, 32
      %s214 = smul.addr %s213, 8
      %s215 = scalar_lea.vmem %s4, %s214
      %p216 = pneg %p153
      %p217 = pneg %p150
      %p218 = scmp.lt.s32.totalorder %s17, 1
      %s219 = scalar_select %p218, %s17, 1
      %s220 = smul.addr %s219, 2
      %s221 = scalar_lea.vmem %s5, %s220
      %p222 = scmp.lt.s32.totalorder %s17, 1
      %s223 = scalar_select %p222, %s17, 1
      %s224 = smul.addr %s223, 32
      %s225 = smul.addr %s224, 8
      %s226 = scalar_lea.vmem %s0, %s225
      %p227 = scmp.lt.s32.totalorder %s17, 1
      %s228 = scalar_select %p227, %s17, 1
      %s229 = smul.addr %s228, 32
      %s230 = smul.addr %s229, 8
      %s231 = scalar_lea.vmem %s4, %s230
      %p232 = scmp.lt.s32.totalorder %s17, 1
      %s233 = scalar_select %p232, %s17, 1
      %s234 = smul.addr %s233, 2
      %s235 = scalar_lea.vmem %s5, %s234
      %v236 = vld [vmem:[%s226] sm:$0xff]
      %v237 = vld [vmem:[%s226 + $0x8] sm:$0xff]
      %v238 = vld [vmem:[%s226 + $0x10] sm:$0xff]
      %v239 = vld [vmem:[%s226 + $0x18] sm:$0xff]
      %v240 = vld [vmem:[%s226 + $0x20] sm:$0xff]
      %v241 = vld [vmem:[%s226 + $0x28] sm:$0xff]
      %v242 = vld [vmem:[%s226 + $0x30] sm:$0xff]
      %v243 = vld [vmem:[%s226 + $0x38] sm:$0xff]
      %v244 = vld [vmem:[%s226 + $0x40] sm:$0xff]
      %v245 = vld [vmem:[%s226 + $0x48] sm:$0xff]
      %v246 = vld [vmem:[%s226 + $0x50] sm:$0xff]
      %v247 = vld [vmem:[%s226 + $0x58] sm:$0xff]
      %v248 = vld [vmem:[%s226 + $0x60] sm:$0xff]
      %v249 = vld [vmem:[%s226 + $0x68] sm:$0xff]
      %v250 = vld [vmem:[%s226 + $0x70] sm:$0xff]
      %v251 = vld [vmem:[%s226 + $0x78] sm:$0xff]
      %v252 = vld [vmem:[%s226 + $0x80] sm:$0xff]
      %v253 = vld [vmem:[%s226 + $0x88] sm:$0xff]
      %v254 = vld [vmem:[%s226 + $0x90] sm:$0xff]
      %v255 = vld [vmem:[%s226 + $0x98] sm:$0xff]
      %v256 = vld [vmem:[%s226 + $0xa0] sm:$0xff]
      %v257 = vld [vmem:[%s226 + $0xa8] sm:$0xff]
      %v258 = vld [vmem:[%s226 + $0xb0] sm:$0xff]
      %v259 = vld [vmem:[%s226 + $0xb8] sm:$0xff]
      %v260 = vld [vmem:[%s226 + $0xc0] sm:$0xff]
      %v261 = vld [vmem:[%s226 + $0xc8] sm:$0xff]
      %v262 = vld [vmem:[%s226 + $0xd0] sm:$0xff]
      %v263 = vld [vmem:[%s226 + $0xd8] sm:$0xff]
      %v264 = vld [vmem:[%s226 + $0xe0] sm:$0xff]
      %v265 = vld [vmem:[%s226 + $0xe8] sm:$0xff]
      %v266 = vld [vmem:[%s226 + $0xf0] sm:$0xff]
      %v267 = vld [vmem:[%s226 + $0xf8] sm:$0xff]
      %v268 = vld [vmem:[%s2] sm:$0x1]
      %v270 = vperm.slane %v268, 0
      %v272 = vmul.f32 %v236, %v270
      %v273 = vmul.f32 %v237, %v270
      %v274 = vmul.f32 %v238, %v270
      %v275 = vmul.f32 %v239, %v270
      %v276 = vmul.f32 %v240, %v270
      %v277 = vmul.f32 %v241, %v270
      %v278 = vmul.f32 %v242, %v270
      %v279 = vmul.f32 %v243, %v270
      %v280 = vmul.f32 %v244, %v270
      %v281 = vmul.f32 %v245, %v270
      %v282 = vmul.f32 %v246, %v270
      %v283 = vmul.f32 %v247, %v270
      %v284 = vmul.f32 %v248, %v270
      %v285 = vmul.f32 %v249, %v270
      %v286 = vmul.f32 %v250, %v270
      %v287 = vmul.f32 %v251, %v270
      %v288 = vmul.f32 %v252, %v270
      %v289 = vmul.f32 %v253, %v270
      %v290 = vmul.f32 %v254, %v270
      %v291 = vmul.f32 %v255, %v270
      %v292 = vmul.f32 %v256, %v270
      %v293 = vmul.f32 %v257, %v270
      %v294 = vmul.f32 %v258, %v270
      %v295 = vmul.f32 %v259, %v270
      %v296 = vmul.f32 %v260, %v270
      %v297 = vmul.f32 %v261, %v270
      %v298 = vmul.f32 %v262, %v270
      %v299 = vmul.f32 %v263, %v270
      %v300 = vmul.f32 %v264, %v270
      %v301 = vmul.f32 %v265, %v270
      %v302 = vmul.f32 %v266, %v270
      %v303 = vmul.f32 %v267, %v270
      %v304 = vld [vmem:[%s3] sm:$0x1]
      %v306 = vperm.slane %v304, 0
      %v308 = vadd.f32 %v272, %v306
      %v309 = vadd.f32 %v273, %v306
      %v310 = vadd.f32 %v274, %v306
      %v311 = vadd.f32 %v275, %v306
      %v312 = vadd.f32 %v276, %v306
      %v313 = vadd.f32 %v277, %v306
      %v314 = vadd.f32 %v278, %v306
      %v315 = vadd.f32 %v279, %v306
      %v316 = vadd.f32 %v280, %v306
      %v317 = vadd.f32 %v281, %v306
      %v318 = vadd.f32 %v282, %v306
      %v319 = vadd.f32 %v283, %v306
      %v320 = vadd.f32 %v284, %v306
      %v321 = vadd.f32 %v285, %v306
      %v322 = vadd.f32 %v286, %v306
      %v323 = vadd.f32 %v287, %v306
      %v324 = vadd.f32 %v288, %v306
      %v325 = vadd.f32 %v289, %v306
      %v326 = vadd.f32 %v290, %v306
      %v327 = vadd.f32 %v291, %v306
      %v328 = vadd.f32 %v292, %v306
      %v329 = vadd.f32 %v293, %v306
      %v330 = vadd.f32 %v294, %v306
      %v331 = vadd.f32 %v295, %v306
      %v332 = vadd.f32 %v296, %v306
      %v333 = vadd.f32 %v297, %v306
      %v334 = vadd.f32 %v298, %v306
      %v335 = vadd.f32 %v299, %v306
      %v336 = vadd.f32 %v300, %v306
      %v337 = vadd.f32 %v301, %v306
      %v338 = vadd.f32 %v302, %v306
      %v339 = vadd.f32 %v303, %v306
      %v340 = vmax.f32 %v308, 0.0
      %v341 = vmax.f32 %v309, 0.0
      %v342 = vmax.f32 %v310, 0.0
      %v343 = vmax.f32 %v311, 0.0
      %v344 = vmax.f32 %v312, 0.0
      %v345 = vmax.f32 %v313, 0.0
      %v346 = vmax.f32 %v314, 0.0
      %v347 = vmax.f32 %v315, 0.0
      %v348 = vmax.f32 %v316, 0.0
      %v349 = vmax.f32 %v317, 0.0
      %v350 = vmax.f32 %v318, 0.0
      %v351 = vmax.f32 %v319, 0.0
      %v352 = vmax.f32 %v320, 0.0
      %v353 = vmax.f32 %v321, 0.0
      %v354 = vmax.f32 %v322, 0.0
      %v355 = vmax.f32 %v323, 0.0
      %v356 = vmax.f32 %v324, 0.0
      %v357 = vmax.f32 %v325, 0.0
      %v358 = vmax.f32 %v326, 0.0
      %v359 = vmax.f32 %v327, 0.0
      %v360 = vmax.f32 %v328, 0.0
      %v361 = vmax.f32 %v329, 0.0
      %v362 = vmax.f32 %v330, 0.0
      %v363 = vmax.f32 %v331, 0.0
      %v364 = vmax.f32 %v332, 0.0
      %v365 = vmax.f32 %v333, 0.0
      %v366 = vmax.f32 %v334, 0.0
      %v367 = vmax.f32 %v335, 0.0
      %v368 = vmax.f32 %v336, 0.0
      %v369 = vmax.f32 %v337, 0.0
      %v370 = vmax.f32 %v338, 0.0
      %v371 = vmax.f32 %v339, 0.0
      %vm372 = vcmask 31744
      %373 = vst.msk [vmem:[#allocation2] sm:$0xff] %vm372, 0.0
      %374 = vst.msk [vmem:[#allocation2 + $0x8] sm:$0xff] %vm372, 0.0
      %vm375 = vcmask 25600
      %376 = vst.msk [vmem:[#allocation2 + $0x10] sm:$0x3] %vm375, 0.0
      %377 = vst.msk [vmem:[#allocation2 + $0x18] sm:$0xff] %vm372, 0.0
      %378 = vst.msk [vmem:[#allocation2 + $0x20] sm:$0xff] %vm372, 0.0
      %379 = vst.msk [vmem:[#allocation2 + $0x28] sm:$0x3] %vm375, 0.0
      %380 = vst.msk [vmem:[#allocation2 + $0x30] sm:$0xff] %vm372, 0.0
      %381 = vst.msk [vmem:[#allocation2 + $0x38] sm:$0xff] %vm372, 0.0
      %382 = vst.msk [vmem:[#allocation2 + $0x40] sm:$0x3] %vm375, 0.0
      %383 = vst.msk [vmem:[#allocation2 + $0x48] sm:$0xff] %vm372, 0.0
      %384 = vst.msk [vmem:[#allocation2 + $0x50] sm:$0xff] %vm372, 0.0
      %385 = vst.msk [vmem:[#allocation2 + $0x58] sm:$0x3] %vm375, 0.0
      %386 = vst.msk [vmem:[#allocation2 + $0x60] sm:$0xff] %vm372, 0.0
      %387 = vst.msk [vmem:[#allocation2 + $0x68] sm:$0xff] %vm372, 0.0
      %388 = vst.msk [vmem:[#allocation2 + $0x70] sm:$0x3] %vm375, 0.0
      %389 = vst.msk [vmem:[#allocation2 + $0x78] sm:$0xff] %vm372, 0.0
      %390 = vst.msk [vmem:[#allocation2 + $0x80] sm:$0xff] %vm372, 0.0
      %391 = vst.msk [vmem:[#allocation2 + $0x88] sm:$0x3] %vm375, 0.0
      %392 = vst.msk [vmem:[#allocation2 + $0x90] sm:$0xff] %vm372, 0.0
      %393 = vst.msk [vmem:[#allocation2 + $0x98] sm:$0xff] %vm372, 0.0
      %394 = vst.msk [vmem:[#allocation2 + $0xa0] sm:$0x3] %vm375, 0.0
      %395 = vst.msk [vmem:[#allocation2 + $0xa8] sm:$0xff] %vm372, 0.0
      %396 = vst.msk [vmem:[#allocation2 + $0xb0] sm:$0xff] %vm372, 0.0
      %397 = vst.msk [vmem:[#allocation2 + $0xb8] sm:$0x3] %vm375, 0.0
      %398 = vst.msk [vmem:[#allocation2 + $0xc0] sm:$0xff] %vm372, 0.0
      %399 = vst.msk [vmem:[#allocation2 + $0xc8] sm:$0xff] %vm372, 0.0
      %400 = vst.msk [vmem:[#allocation2 + $0xd0] sm:$0x3] %vm375, 0.0
      %401 = vst.msk [vmem:[#allocation2 + $0xd8] sm:$0xff] %vm372, 0.0
      %402 = vst.msk [vmem:[#allocation2 + $0xe0] sm:$0xff] %vm372, 0.0
      %403 = vst.msk [vmem:[#allocation2 + $0xe8] sm:$0x3] %vm375, 0.0
      %404 = vst.msk [vmem:[#allocation2 + $0xf0] sm:$0xff] %vm372, 0.0
      %405 = vst.msk [vmem:[#allocation2 + $0xf8] sm:$0xff] %vm372, 0.0
      %406 = vst.msk [vmem:[#allocation2 + $0x100] sm:$0x3] %vm375, 0.0
      %407 = vst.msk [vmem:[#allocation2 + $0x108] sm:$0xff] %vm372, 0.0
      %408 = vst.msk [vmem:[#allocation2 + $0x110] sm:$0xff] %vm372, 0.0
      %409 = vst.msk [vmem:[#allocation2 + $0x118] sm:$0x3] %vm375, 0.0
      %410 = vst.msk [vmem:[#allocation2 + $0x120] sm:$0xff] %vm372, 0.0
      %411 = vst.msk [vmem:[#allocation2 + $0x128] sm:$0xff] %vm372, 0.0
      %412 = vst.msk [vmem:[#allocation2 + $0x130] sm:$0x3] %vm375, 0.0
      %413 = vst.msk [vmem:[#allocation2 + $0x138] sm:$0xff] %vm372, 0.0
      %414 = vst.msk [vmem:[#allocation2 + $0x140] sm:$0xff] %vm372, 0.0
      %415 = vst.msk [vmem:[#allocation2 + $0x148] sm:$0x3] %vm375, 0.0
      %416 = vst.msk [vmem:[#allocation2 + $0x150] sm:$0xff] %vm372, 0.0
      %417 = vst.msk [vmem:[#allocation2 + $0x158] sm:$0xff] %vm372, 0.0
      %418 = vst.msk [vmem:[#allocation2 + $0x160] sm:$0x3] %vm375, 0.0
      %419 = vst.msk [vmem:[#allocation2 + $0x168] sm:$0xff] %vm372, 0.0
      %420 = vst.msk [vmem:[#allocation2 + $0x170] sm:$0xff] %vm372, 0.0
      %421 = vst.msk [vmem:[#allocation2 + $0x178] sm:$0x3] %vm375, 0.0
      %422 = vst.msk [vmem:[#allocation2 + $0x180] sm:$0xff] %vm372, 0.0
      %423 = vst.msk [vmem:[#allocation2 + $0x188] sm:$0xff] %vm372, 0.0
      %424 = vst.msk [vmem:[#allocation2 + $0x190] sm:$0x3] %vm375, 0.0
      %425 = vst.msk [vmem:[#allocation2 + $0x198] sm:$0xff] %vm372, 0.0
      %426 = vst.msk [vmem:[#allocation2 + $0x1a0] sm:$0xff] %vm372, 0.0
      %427 = vst.msk [vmem:[#allocation2 + $0x1a8] sm:$0x3] %vm375, 0.0
      %s428 = scalar_lea.vmem [#allocation2], 24
      %429 = vst.msk [vmem:[%s428 + $0x1] sm:$0xff] %vm372, %v340
      %430 = vst.msk [vmem:[%s428 + $0x9] sm:$0xff] %vm372, %v341
      %431 = vst.msk [vmem:[%s428 + $0x19] sm:$0xff] %vm372, %v342
      %432 = vst.msk [vmem:[%s428 + $0x21] sm:$0xff] %vm372, %v343
      %433 = vst.msk [vmem:[%s428 + $0x31] sm:$0xff] %vm372, %v344
      %434 = vst.msk [vmem:[%s428 + $0x39] sm:$0xff] %vm372, %v345
      %435 = vst.msk [vmem:[%s428 + $0x49] sm:$0xff] %vm372, %v346
      %436 = vst.msk [vmem:[%s428 + $0x51] sm:$0xff] %vm372, %v347
      %437 = vst.msk [vmem:[%s428 + $0x61] sm:$0xff] %vm372, %v348
      %438 = vst.msk [vmem:[%s428 + $0x69] sm:$0xff] %vm372, %v349
      %439 = vst.msk [vmem:[%s428 + $0x79] sm:$0xff] %vm372, %v350
      %440 = vst.msk [vmem:[%s428 + $0x81] sm:$0xff] %vm372, %v351
      %441 = vst.msk [vmem:[%s428 + $0x91] sm:$0xff] %vm372, %v352
      %442 = vst.msk [vmem:[%s428 + $0x99] sm:$0xff] %vm372, %v353
      %443 = vst.msk [vmem:[%s428 + $0xa9] sm:$0xff] %vm372, %v354
      %444 = vst.msk [vmem:[%s428 + $0xb1] sm:$0xff] %vm372, %v355
      %445 = vst.msk [vmem:[%s428 + $0xc1] sm:$0xff] %vm372, %v356
      %446 = vst.msk [vmem:[%s428 + $0xc9] sm:$0xff] %vm372, %v357
      %447 = vst.msk [vmem:[%s428 + $0xd9] sm:$0xff] %vm372, %v358
      %448 = vst.msk [vmem:[%s428 + $0xe1] sm:$0xff] %vm372, %v359
      %449 = vst.msk [vmem:[%s428 + $0xf1] sm:$0xff] %vm372, %v360
      %450 = vst.msk [vmem:[%s428 + $0xf9] sm:$0xff] %vm372, %v361
      %451 = vst.msk [vmem:[%s428 + $0x109] sm:$0xff] %vm372, %v362
      %452 = vst.msk [vmem:[%s428 + $0x111] sm:$0xff] %vm372, %v363
      %453 = vst.msk [vmem:[%s428 + $0x121] sm:$0xff] %vm372, %v364
      %454 = vst.msk [vmem:[%s428 + $0x129] sm:$0xff] %vm372, %v365
      %455 = vst.msk [vmem:[%s428 + $0x139] sm:$0xff] %vm372, %v366
      %456 = vst.msk [vmem:[%s428 + $0x141] sm:$0xff] %vm372, %v367
      %457 = vst.msk [vmem:[%s428 + $0x151] sm:$0xff] %vm372, %v368
      %458 = vst.msk [vmem:[%s428 + $0x159] sm:$0xff] %vm372, %v369
      %459 = vst.msk [vmem:[%s428 + $0x169] sm:$0xff] %vm372, %v370
      %460 = vst.msk [vmem:[%s428 + $0x171] sm:$0xff] %vm372, %v371
      %v461 = vld [vmem:[#allocation2] sm:$0xff]
      %v462 = vld [vmem:[#allocation2 + $0x8] sm:$0xff]
      %v463 = vld [vmem:[#allocation2 + $0x10] sm:$0x3]
      %v464 = vld [vmem:[#allocation2 + $0x18] sm:$0xff]
      %v465 = vld [vmem:[#allocation2 + $0x20] sm:$0xff]
      %v466 = vld [vmem:[#allocation2 + $0x28] sm:$0x3]
      %v467 = vld [vmem:[#allocation2 + $0x30] sm:$0xff]
      %v468 = vld [vmem:[#allocation2 + $0x38] sm:$0xff]
      %v469 = vld [vmem:[#allocation2 + $0x40] sm:$0x3]
      %v470 = vld [vmem:[#allocation2 + $0x48] sm:$0xff]
      %v471 = vld [vmem:[#allocation2 + $0x50] sm:$0xff]
      %v472 = vld [vmem:[#allocation2 + $0x58] sm:$0x3]
      %v473 = vld [vmem:[#allocation2 + $0x60] sm:$0xff]
      %v474 = vld [vmem:[#allocation2 + $0x68] sm:$0xff]
      %v475 = vld [vmem:[#allocation2 + $0x70] sm:$0x3]
      %v476 = vld [vmem:[#allocation2 + $0x78] sm:$0xff]
      %v477 = vld [vmem:[#allocation2 + $0x80] sm:$0xff]
      %v478 = vld [vmem:[#allocation2 + $0x88] sm:$0x3]
      %v479 = vld [vmem:[#allocation2 + $0x90] sm:$0xff]
      %v480 = vld [vmem:[#allocation2 + $0x98] sm:$0xff]
      %v481 = vld [vmem:[#allocation2 + $0xa0] sm:$0x3]
      %v482 = vld [vmem:[#allocation2 + $0xa8] sm:$0xff]
      %v483 = vld [vmem:[#allocation2 + $0xb0] sm:$0xff]
      %v484 = vld [vmem:[#allocation2 + $0xb8] sm:$0x3]
      %v485 = vld [vmem:[#allocation2 + $0xc0] sm:$0xff]
      %v486 = vld [vmem:[#allocation2 + $0xc8] sm:$0xff]
      %v487 = vld [vmem:[#allocation2 + $0xd0] sm:$0x3]
      %v488 = vld [vmem:[#allocation2 + $0xd8] sm:$0xff]
      %v489 = vld [vmem:[#allocation2 + $0xe0] sm:$0xff]
      %v490 = vld [vmem:[#allocation2 + $0xe8] sm:$0x3]
      %v491 = vld [vmem:[#allocation2 + $0xf0] sm:$0xff]
      %v492 = vld [vmem:[#allocation2 + $0xf8] sm:$0xff]
      %v493 = vld [vmem:[#allocation2 + $0x100] sm:$0x3]
      %v494 = vld [vmem:[#allocation2 + $0x108] sm:$0xff]
      %v495 = vld [vmem:[#allocation2 + $0x110] sm:$0xff]
      %v496 = vld [vmem:[#allocation2 + $0x118] sm:$0x3]
      %v497 = vld [vmem:[#allocation2 + $0x120] sm:$0xff]
      %v498 = vld [vmem:[#allocation2 + $0x128] sm:$0xff]
      %v499 = vld [vmem:[#allocation2 + $0x130] sm:$0x3]
      %v500 = vld [vmem:[#allocation2 + $0x138] sm:$0xff]
      %v501 = vld [vmem:[#allocation2 + $0x140] sm:$0xff]
      %v502 = vld [vmem:[#allocation2 + $0x148] sm:$0x3]
      %v503 = vld [vmem:[#allocation2 + $0x150] sm:$0xff]
      %v504 = vld [vmem:[#allocation2 + $0x158] sm:$0xff]
      %v505 = vld [vmem:[#allocation2 + $0x160] sm:$0x3]
      %v506 = vld [vmem:[#allocation2 + $0x168] sm:$0xff]
      %v507 = vld [vmem:[#allocation2 + $0x170] sm:$0xff]
      %v508 = vld [vmem:[#allocation2 + $0x178] sm:$0x3]
      %v509 = vld [vmem:[#allocation2 + $0x180] sm:$0xff]
      %v510 = vld [vmem:[#allocation2 + $0x188] sm:$0xff]
      %v511 = vld [vmem:[#allocation2 + $0x190] sm:$0x3]
      %v512 = vld [vmem:[#allocation2 + $0x198] sm:$0xff]
      %v513 = vld [vmem:[#allocation2 + $0x1a0] sm:$0xff]
      %v514 = vld [vmem:[#allocation2 + $0x1a8] sm:$0x3]
      %515 = vst.msk [vmem:[#allocation3] sm:$0xff] %vm372, %v461
      %516 = vst.msk [vmem:[#allocation3 + $0x8] sm:$0xff] %vm372, %v462
      %517 = vst.msk [vmem:[#allocation3 + $0x10] sm:$0xff] %vm372, %v464
      %518 = vst.msk [vmem:[#allocation3 + $0x18] sm:$0xff] %vm372, %v465
      %519 = vst.msk [vmem:[#allocation3 + $0x20] sm:$0xff] %vm372, %v467
      %520 = vst.msk [vmem:[#allocation3 + $0x28] sm:$0xff] %vm372, %v468
      %521 = vst.msk [vmem:[#allocation3 + $0x30] sm:$0xff] %vm372, %v470
      %522 = vst.msk [vmem:[#allocation3 + $0x38] sm:$0xff] %vm372, %v471
      %523 = vst.msk [vmem:[#allocation3 + $0x40] sm:$0xff] %vm372, %v473
      %524 = vst.msk [vmem:[#allocation3 + $0x48] sm:$0xff] %vm372, %v474
      %525 = vst.msk [vmem:[#allocation3 + $0x50] sm:$0xff] %vm372, %v476
      %526 = vst.msk [vmem:[#allocation3 + $0x58] sm:$0xff] %vm372, %v477
      %527 = vst.msk [vmem:[#allocation3 + $0x60] sm:$0xff] %vm372, %v479
      %528 = vst.msk [vmem:[#allocation3 + $0x68] sm:$0xff] %vm372, %v480
      %529 = vst.msk [vmem:[#allocation3 + $0x70] sm:$0xff] %vm372, %v482
      %530 = vst.msk [vmem:[#allocation3 + $0x78] sm:$0xff] %vm372, %v483
      %531 = vst.msk [vmem:[#allocation3 + $0x80] sm:$0xff] %vm372, %v485
      %532 = vst.msk [vmem:[#allocation3 + $0x88] sm:$0xff] %vm372, %v486
      %533 = vst.msk [vmem:[#allocation3 + $0x90] sm:$0xff] %vm372, %v488
      %534 = vst.msk [vmem:[#allocation3 + $0x98] sm:$0xff] %vm372, %v489
      %535 = vst.msk [vmem:[#allocation3 + $0xa0] sm:$0xff] %vm372, %v491
      %536 = vst.msk [vmem:[#allocation3 + $0xa8] sm:$0xff] %vm372, %v492
      %537 = vst.msk [vmem:[#allocation3 + $0xb0] sm:$0xff] %vm372, %v494
      %538 = vst.msk [vmem:[#allocation3 + $0xb8] sm:$0xff] %vm372, %v495
      %539 = vst.msk [vmem:[#allocation3 + $0xc0] sm:$0xff] %vm372, %v497
      %540 = vst.msk [vmem:[#allocation3 + $0xc8] sm:$0xff] %vm372, %v498
      %541 = vst.msk [vmem:[#allocation3 + $0xd0] sm:$0xff] %vm372, %v500
      %542 = vst.msk [vmem:[#allocation3 + $0xd8] sm:$0xff] %vm372, %v501
      %543 = vst.msk [vmem:[#allocation3 + $0xe0] sm:$0xff] %vm372, %v503
      %544 = vst.msk [vmem:[#allocation3 + $0xe8] sm:$0xff] %vm372, %v504
      %545 = vst.msk [vmem:[#allocation3 + $0xf0] sm:$0xff] %vm372, %v506
      %546 = vst.msk [vmem:[#allocation3 + $0xf8] sm:$0xff] %vm372, %v507
      %vm595 = vcmask 1046528
      %v596 = vrot.slane %v461, 1
      %v597 = vrot.slane %v462, 1
      %v598 = vsel %vm595, %v596, %v597
      %v599 = vrot.slane %v463, 1
      %v600 = vsel %vm595, %v597, %v599
      %v601 = vrot.slane %v464, 1
      %v602 = vrot.slane %v465, 1
      %v603 = vsel %vm595, %v601, %v602
      %v604 = vrot.slane %v466, 1
      %v605 = vsel %vm595, %v602, %v604
      %v606 = vrot.slane %v467, 1
      %v607 = vrot.slane %v468, 1
      %v608 = vsel %vm595, %v606, %v607
      %v609 = vrot.slane %v469, 1
      %v610 = vsel %vm595, %v607, %v609
      %v611 = vrot.slane %v470, 1
      %v612 = vrot.slane %v471, 1
      %v613 = vsel %vm595, %v611, %v612
      %v614 = vrot.slane %v472, 1
      %v615 = vsel %vm595, %v612, %v614
      %v616 = vrot.slane %v473, 1
      %v617 = vrot.slane %v474, 1
      %v618 = vsel %vm595, %v616, %v617
      %v619 = vrot.slane %v475, 1
      %v620 = vsel %vm595, %v617, %v619
      %v621 = vrot.slane %v476, 1
      %v622 = vrot.slane %v477, 1
      %v623 = vsel %vm595, %v621, %v622
      %v624 = vrot.slane %v478, 1
      %v625 = vsel %vm595, %v622, %v624
      %v626 = vrot.slane %v479, 1
      %v627 = vrot.slane %v480, 1
      %v628 = vsel %vm595, %v626, %v627
      %v629 = vrot.slane %v481, 1
      %v630 = vsel %vm595, %v627, %v629
      %v631 = vrot.slane %v482, 1
      %v632 = vrot.slane %v483, 1
      %v633 = vsel %vm595, %v631, %v632
      %v634 = vrot.slane %v484, 1
      %v635 = vsel %vm595, %v632, %v634
      %v636 = vrot.slane %v485, 1
      %v637 = vrot.slane %v486, 1
      %v638 = vsel %vm595, %v636, %v637
      %v639 = vrot.slane %v487, 1
      %v640 = vsel %vm595, %v637, %v639
      %v641 = vrot.slane %v488, 1
      %v642 = vrot.slane %v489, 1
      %v643 = vsel %vm595, %v641, %v642
      %v644 = vrot.slane %v490, 1
      %v645 = vsel %vm595, %v642, %v644
      %v646 = vrot.slane %v491, 1
      %v647 = vrot.slane %v492, 1
      %v648 = vsel %vm595, %v646, %v647
      %v649 = vrot.slane %v493, 1
      %v650 = vsel %vm595, %v647, %v649
      %v651 = vrot.slane %v494, 1
      %v652 = vrot.slane %v495, 1
      %v653 = vsel %vm595, %v651, %v652
      %v654 = vrot.slane %v496, 1
      %v655 = vsel %vm595, %v652, %v654
      %v656 = vrot.slane %v497, 1
      %v657 = vrot.slane %v498, 1
      %v658 = vsel %vm595, %v656, %v657
      %v659 = vrot.slane %v499, 1
      %v660 = vsel %vm595, %v657, %v659
      %v661 = vrot.slane %v500, 1
      %v662 = vrot.slane %v501, 1
      %v663 = vsel %vm595, %v661, %v662
      %v664 = vrot.slane %v502, 1
      %v665 = vsel %vm595, %v662, %v664
      %v666 = vrot.slane %v503, 1
      %v667 = vrot.slane %v504, 1
      %v668 = vsel %vm595, %v666, %v667
      %v669 = vrot.slane %v505, 1
      %v670 = vsel %vm595, %v667, %v669
      %v671 = vrot.slane %v506, 1
      %v672 = vrot.slane %v507, 1
      %v673 = vsel %vm595, %v671, %v672
      %v674 = vrot.slane %v508, 1
      %v675 = vsel %vm595, %v672, %v674
      %676 = vrot.lane.b32.xlu0 %v598, 4
      %v677 = vpop.permute.xlu0 %676
      %678 = vrot.lane.b32.xlu0 %v600, 4
      %v679 = vpop.permute.xlu0 %678
      %680 = vrot.lane.b32.xlu0 %v603, 4
      %v681 = vpop.permute.xlu0 %680
      %682 = vrot.lane.b32.xlu0 %v605, 4
      %v683 = vpop.permute.xlu0 %682
      %684 = vrot.lane.b32.xlu0 %v608, 4
      %v685 = vpop.permute.xlu0 %684
      %686 = vrot.lane.b32.xlu0 %v610, 4
      %v687 = vpop.permute.xlu0 %686
      %688 = vrot.lane.b32.xlu0 %v613, 4
      %v689 = vpop.permute.xlu0 %688
      %690 = vrot.lane.b32.xlu0 %v615, 4
      %v691 = vpop.permute.xlu0 %690
      %692 = vrot.lane.b32.xlu0 %v618, 4
      %v693 = vpop.permute.xlu0 %692
      %694 = vrot.lane.b32.xlu0 %v620, 4
      %v695 = vpop.permute.xlu0 %694
      %696 = vrot.lane.b32.xlu0 %v623, 4
      %v697 = vpop.permute.xlu0 %696
      %698 = vrot.lane.b32.xlu0 %v625, 4
      %v699 = vpop.permute.xlu0 %698
      %700 = vrot.lane.b32.xlu0 %v628, 4
      %v701 = vpop.permute.xlu0 %700
      %702 = vrot.lane.b32.xlu0 %v630, 4
      %v703 = vpop.permute.xlu0 %702
      %704 = vrot.lane.b32.xlu0 %v633, 4
      %v705 = vpop.permute.xlu0 %704
      %706 = vrot.lane.b32.xlu0 %v635, 4
      %v707 = vpop.permute.xlu0 %706
      %708 = vrot.lane.b32.xlu0 %v638, 4
      %v709 = vpop.permute.xlu0 %708
      %710 = vrot.lane.b32.xlu0 %v640, 4
      %v711 = vpop.permute.xlu0 %710
      %712 = vrot.lane.b32.xlu0 %v643, 4
      %v713 = vpop.permute.xlu0 %712
      %714 = vrot.lane.b32.xlu0 %v645, 4
      %v715 = vpop.permute.xlu0 %714
      %716 = vrot.lane.b32.xlu0 %v648, 4
      %v717 = vpop.permute.xlu0 %716
      %718 = vrot.lane.b32.xlu0 %v650, 4
      %v719 = vpop.permute.xlu0 %718
      %720 = vrot.lane.b32.xlu0 %v653, 4
      %v721 = vpop.permute.xlu0 %720
      %722 = vrot.lane.b32.xlu0 %v655, 4
      %v723 = vpop.permute.xlu0 %722
      %724 = vrot.lane.b32.xlu0 %v658, 4
      %v725 = vpop.permute.xlu0 %724
      %726 = vrot.lane.b32.xlu0 %v660, 4
      %v727 = vpop.permute.xlu0 %726
      %728 = vrot.lane.b32.xlu0 %v663, 4
      %v729 = vpop.permute.xlu0 %728
      %730 = vrot.lane.b32.xlu0 %v665, 4
      %v731 = vpop.permute.xlu0 %730
      %732 = vrot.lane.b32.xlu0 %v668, 4
      %v733 = vpop.permute.xlu0 %732
      %734 = vrot.lane.b32.xlu0 %v670, 4
      %v735 = vpop.permute.xlu0 %734
      %736 = vrot.lane.b32.xlu0 %v673, 4
      %v737 = vpop.permute.xlu0 %736
      %738 = vrot.lane.b32.xlu0 %v675, 4
      %v739 = vpop.permute.xlu0 %738
      %vm772 = vcmask 64544
      %773 = vst.msk [vmem:[#allocation3] sm:$0xff] %vm772, %v677
      %774 = vst.msk [vmem:[#allocation3 + $0x8] sm:$0xff] %vm772, %v679
      %775 = vst.msk [vmem:[#allocation3 + $0x10] sm:$0xff] %vm772, %v681
      %776 = vst.msk [vmem:[#allocation3 + $0x18] sm:$0xff] %vm772, %v683
      %777 = vst.msk [vmem:[#allocation3 + $0x20] sm:$0xff] %vm772, %v685
      %778 = vst.msk [vmem:[#allocation3 + $0x28] sm:$0xff] %vm772, %v687
      %779 = vst.msk [vmem:[#allocation3 + $0x30] sm:$0xff] %vm772, %v689
      %780 = vst.msk [vmem:[#allocation3 + $0x38] sm:$0xff] %vm772, %v691
      %781 = vst.msk [vmem:[#allocation3 + $0x40] sm:$0xff] %vm772, %v693
      %782 = vst.msk [vmem:[#allocation3 + $0x48] sm:$0xff] %vm772, %v695
      %783 = vst.msk [vmem:[#allocation3 + $0x50] sm:$0xff] %vm772, %v697
      %784 = vst.msk [vmem:[#allocation3 + $0x58] sm:$0xff] %vm772, %v699
      %785 = vst.msk [vmem:[#allocation3 + $0x60] sm:$0xff] %vm772, %v701
      %786 = vst.msk [vmem:[#allocation3 + $0x68] sm:$0xff] %vm772, %v703
      %787 = vst.msk [vmem:[#allocation3 + $0x70] sm:$0xff] %vm772, %v705
      %788 = vst.msk [vmem:[#allocation3 + $0x78] sm:$0xff] %vm772, %v707
      %789 = vst.msk [vmem:[#allocation3 + $0x80] sm:$0xff] %vm772, %v709
      %790 = vst.msk [vmem:[#allocation3 + $0x88] sm:$0xff] %vm772, %v711
      %791 = vst.msk [vmem:[#allocation3 + $0x90] sm:$0xff] %vm772, %v713
      %792 = vst.msk [vmem:[#allocation3 + $0x98] sm:$0xff] %vm772, %v715
      %793 = vst.msk [vmem:[#allocation3 + $0xa0] sm:$0xff] %vm772, %v717
      %794 = vst.msk [vmem:[#allocation3 + $0xa8] sm:$0xff] %vm772, %v719
      %795 = vst.msk [vmem:[#allocation3 + $0xb0] sm:$0xff] %vm772, %v721
      %796 = vst.msk [vmem:[#allocation3 + $0xb8] sm:$0xff] %vm772, %v723
      %797 = vst.msk [vmem:[#allocation3 + $0xc0] sm:$0xff] %vm772, %v725
      %798 = vst.msk [vmem:[#allocation3 + $0xc8] sm:$0xff] %vm772, %v727
      %799 = vst.msk [vmem:[#allocation3 + $0xd0] sm:$0xff] %vm772, %v729
      %800 = vst.msk [vmem:[#allocation3 + $0xd8] sm:$0xff] %vm772, %v731
      %801 = vst.msk [vmem:[#allocation3 + $0xe0] sm:$0xff] %vm772, %v733
      %802 = vst.msk [vmem:[#allocation3 + $0xe8] sm:$0xff] %vm772, %v735
      %803 = vst.msk [vmem:[#allocation3 + $0xf0] sm:$0xff] %vm772, %v737
      %804 = vst.msk [vmem:[#allocation3 + $0xf8] sm:$0xff] %vm772, %v739
      %vm805 = vcmask 1045504
      %v806 = vrot.slane %v461, 2
      %v807 = vrot.slane %v462, 2
      %v808 = vsel %vm805, %v806, %v807
      %v809 = vrot.slane %v463, 2
      %v810 = vsel %vm805, %v807, %v809
      %v811 = vrot.slane %v464, 2
      %v812 = vrot.slane %v465, 2
      %v813 = vsel %vm805, %v811, %v812
      %v814 = vrot.slane %v466, 2
      %v815 = vsel %vm805, %v812, %v814
      %v816 = vrot.slane %v467, 2
      %v817 = vrot.slane %v468, 2
      %v818 = vsel %vm805, %v816, %v817
      %v819 = vrot.slane %v469, 2
      %v820 = vsel %vm805, %v817, %v819
      %v821 = vrot.slane %v470, 2
      %v822 = vrot.slane %v471, 2
      %v823 = vsel %vm805, %v821, %v822
      %v824 = vrot.slane %v472, 2
      %v825 = vsel %vm805, %v822, %v824
      %v826 = vrot.slane %v473, 2
      %v827 = vrot.slane %v474, 2
      %v828 = vsel %vm805, %v826, %v827
      %v829 = vrot.slane %v475, 2
      %v830 = vsel %vm805, %v827, %v829
      %v831 = vrot.slane %v476, 2
      %v832 = vrot.slane %v477, 2
      %v833 = vsel %vm805, %v831, %v832
      %v834 = vrot.slane %v478, 2
      %v835 = vsel %vm805, %v832, %v834
      %v836 = vrot.slane %v479, 2
      %v837 = vrot.slane %v480, 2
      %v838 = vsel %vm805, %v836, %v837
      %v839 = vrot.slane %v481, 2
      %v840 = vsel %vm805, %v837, %v839
      %v841 = vrot.slane %v482, 2
      %v842 = vrot.slane %v483, 2
      %v843 = vsel %vm805, %v841, %v842
      %v844 = vrot.slane %v484, 2
      %v845 = vsel %vm805, %v842, %v844
      %v846 = vrot.slane %v485, 2
      %v847 = vrot.slane %v486, 2
      %v848 = vsel %vm805, %v846, %v847
      %v849 = vrot.slane %v487, 2
      %v850 = vsel %vm805, %v847, %v849
      %v851 = vrot.slane %v488, 2
      %v852 = vrot.slane %v489, 2
      %v853 = vsel %vm805, %v851, %v852
      %v854 = vrot.slane %v490, 2
      %v855 = vsel %vm805, %v852, %v854
      %v856 = vrot.slane %v491, 2
      %v857 = vrot.slane %v492, 2
      %v858 = vsel %vm805, %v856, %v857
      %v859 = vrot.slane %v493, 2
      %v860 = vsel %vm805, %v857, %v859
      %v861 = vrot.slane %v494, 2
      %v862 = vrot.slane %v495, 2
      %v863 = vsel %vm805, %v861, %v862
      %v864 = vrot.slane %v496, 2
      %v865 = vsel %vm805, %v862, %v864
      %v866 = vrot.slane %v497, 2
      %v867 = vrot.slane %v498, 2
      %v868 = vsel %vm805, %v866, %v867
      %v869 = vrot.slane %v499, 2
      %v870 = vsel %vm805, %v867, %v869
      %v871 = vrot.slane %v500, 2
      %v872 = vrot.slane %v501, 2
      %v873 = vsel %vm805, %v871, %v872
      %v874 = vrot.slane %v502, 2
      %v875 = vsel %vm805, %v872, %v874
      %v876 = vrot.slane %v503, 2
      %v877 = vrot.slane %v504, 2
      %v878 = vsel %vm805, %v876, %v877
      %v879 = vrot.slane %v505, 2
      %v880 = vsel %vm805, %v877, %v879
      %v881 = vrot.slane %v506, 2
      %v882 = vrot.slane %v507, 2
      %v883 = vsel %vm805, %v881, %v882
      %v884 = vrot.slane %v508, 2
      %v885 = vsel %vm805, %v882, %v884
      %886 = vrot.lane.b32.xlu0 %v808, 8
      %v887 = vpop.permute.xlu0 %886
      %888 = vrot.lane.b32.xlu0 %v810, 8
      %v889 = vpop.permute.xlu0 %888
      %890 = vrot.lane.b32.xlu0 %v813, 8
      %v891 = vpop.permute.xlu0 %890
      %892 = vrot.lane.b32.xlu0 %v815, 8
      %v893 = vpop.permute.xlu0 %892
      %894 = vrot.lane.b32.xlu0 %v818, 8
      %v895 = vpop.permute.xlu0 %894
      %896 = vrot.lane.b32.xlu0 %v820, 8
      %v897 = vpop.permute.xlu0 %896
      %898 = vrot.lane.b32.xlu0 %v823, 8
      %v899 = vpop.permute.xlu0 %898
      %900 = vrot.lane.b32.xlu0 %v825, 8
      %v901 = vpop.permute.xlu0 %900
      %902 = vrot.lane.b32.xlu0 %v828, 8
      %v903 = vpop.permute.xlu0 %902
      %904 = vrot.lane.b32.xlu0 %v830, 8
      %v905 = vpop.permute.xlu0 %904
      %906 = vrot.lane.b32.xlu0 %v833, 8
      %v907 = vpop.permute.xlu0 %906
      %908 = vrot.lane.b32.xlu0 %v835, 8
      %v909 = vpop.permute.xlu0 %908
      %910 = vrot.lane.b32.xlu0 %v838, 8
      %v911 = vpop.permute.xlu0 %910
      %912 = vrot.lane.b32.xlu0 %v840, 8
      %v913 = vpop.permute.xlu0 %912
      %914 = vrot.lane.b32.xlu0 %v843, 8
      %v915 = vpop.permute.xlu0 %914
      %916 = vrot.lane.b32.xlu0 %v845, 8
      %v917 = vpop.permute.xlu0 %916
      %918 = vrot.lane.b32.xlu0 %v848, 8
      %v919 = vpop.permute.xlu0 %918
      %920 = vrot.lane.b32.xlu0 %v850, 8
      %v921 = vpop.permute.xlu0 %920
      %922 = vrot.lane.b32.xlu0 %v853, 8
      %v923 = vpop.permute.xlu0 %922
      %924 = vrot.lane.b32.xlu0 %v855, 8
      %v925 = vpop.permute.xlu0 %924
      %926 = vrot.lane.b32.xlu0 %v858, 8
      %v927 = vpop.permute.xlu0 %926
      %928 = vrot.lane.b32.xlu0 %v860, 8
      %v929 = vpop.permute.xlu0 %928
      %930 = vrot.lane.b32.xlu0 %v863, 8
      %v931 = vpop.permute.xlu0 %930
      %932 = vrot.lane.b32.xlu0 %v865, 8
      %v933 = vpop.permute.xlu0 %932
      %934 = vrot.lane.b32.xlu0 %v868, 8
      %v935 = vpop.permute.xlu0 %934
      %936 = vrot.lane.b32.xlu0 %v870, 8
      %v937 = vpop.permute.xlu0 %936
      %938 = vrot.lane.b32.xlu0 %v873, 8
      %v939 = vpop.permute.xlu0 %938
      %940 = vrot.lane.b32.xlu0 %v875, 8
      %v941 = vpop.permute.xlu0 %940
      %942 = vrot.lane.b32.xlu0 %v878, 8
      %v943 = vpop.permute.xlu0 %942
      %944 = vrot.lane.b32.xlu0 %v880, 8
      %v945 = vpop.permute.xlu0 %944
      %946 = vrot.lane.b32.xlu0 %v883, 8
      %v947 = vpop.permute.xlu0 %946
      %948 = vrot.lane.b32.xlu0 %v885, 8
      %v949 = vpop.permute.xlu0 %948
      %vm982 = vcmask 97344
      %983 = vst.msk [vmem:[#allocation3] sm:$0xff] %vm982, %v887
      %984 = vst.msk [vmem:[#allocation3 + $0x8] sm:$0xff] %vm982, %v889
      %985 = vst.msk [vmem:[#allocation3 + $0x10] sm:$0xff] %vm982, %v891
      %986 = vst.msk [vmem:[#allocation3 + $0x18] sm:$0xff] %vm982, %v893
      %987 = vst.msk [vmem:[#allocation3 + $0x20] sm:$0xff] %vm982, %v895
      %988 = vst.msk [vmem:[#allocation3 + $0x28] sm:$0xff] %vm982, %v897
      %989 = vst.msk [vmem:[#allocation3 + $0x30] sm:$0xff] %vm982, %v899
      %990 = vst.msk [vmem:[#allocation3 + $0x38] sm:$0xff] %vm982, %v901
      %991 = vst.msk [vmem:[#allocation3 + $0x40] sm:$0xff] %vm982, %v903
      %992 = vst.msk [vmem:[#allocation3 + $0x48] sm:$0xff] %vm982, %v905
      %993 = vst.msk [vmem:[#allocation3 + $0x50] sm:$0xff] %vm982, %v907
      %994 = vst.msk [vmem:[#allocation3 + $0x58] sm:$0xff] %vm982, %v909
      %995 = vst.msk [vmem:[#allocation3 + $0x60] sm:$0xff] %vm982, %v911
      %996 = vst.msk [vmem:[#allocation3 + $0x68] sm:$0xff] %vm982, %v913
      %997 = vst.msk [vmem:[#allocation3 + $0x70] sm:$0xff] %vm982, %v915
      %998 = vst.msk [vmem:[#allocation3 + $0x78] sm:$0xff] %vm982, %v917
      %999 = vst.msk [vmem:[#allocation3 + $0x80] sm:$0xff] %vm982, %v919
      %1000 = vst.msk [vmem:[#allocation3 + $0x88] sm:$0xff] %vm982, %v921
      %1001 = vst.msk [vmem:[#allocation3 + $0x90] sm:$0xff] %vm982, %v923
      %1002 = vst.msk [vmem:[#allocation3 + $0x98] sm:$0xff] %vm982, %v925
      %1003 = vst.msk [vmem:[#allocation3 + $0xa0] sm:$0xff] %vm982, %v927
      %1004 = vst.msk [vmem:[#allocation3 + $0xa8] sm:$0xff] %vm982, %v929
      %1005 = vst.msk [vmem:[#allocation3 + $0xb0] sm:$0xff] %vm982, %v931
      %1006 = vst.msk [vmem:[#allocation3 + $0xb8] sm:$0xff] %vm982, %v933
      %1007 = vst.msk [vmem:[#allocation3 + $0xc0] sm:$0xff] %vm982, %v935
      %1008 = vst.msk [vmem:[#allocation3 + $0xc8] sm:$0xff] %vm982, %v937
      %1009 = vst.msk [vmem:[#allocation3 + $0xd0] sm:$0xff] %vm982, %v939
      %1010 = vst.msk [vmem:[#allocation3 + $0xd8] sm:$0xff] %vm982, %v941
      %1011 = vst.msk [vmem:[#allocation3 + $0xe0] sm:$0xff] %vm982, %v943
      %1012 = vst.msk [vmem:[#allocation3 + $0xe8] sm:$0xff] %vm982, %v945
      %1013 = vst.msk [vmem:[#allocation3 + $0xf0] sm:$0xff] %vm982, %v947
      %1014 = vst.msk [vmem:[#allocation3 + $0xf8] sm:$0xff] %vm982, %v949
      %1017 = vrot.lane.b32.xlu0 %v464, 12
      %v1018 = vpop.permute.xlu0 %1017
      %1019 = vrot.lane.b32.xlu0 %v465, 12
      %v1020 = vpop.permute.xlu0 %1019
      %1021 = vrot.lane.b32.xlu0 %v467, 12
      %v1022 = vpop.permute.xlu0 %1021
      %1023 = vrot.lane.b32.xlu0 %v468, 12
      %v1024 = vpop.permute.xlu0 %1023
      %1025 = vrot.lane.b32.xlu0 %v470, 12
      %v1026 = vpop.permute.xlu0 %1025
      %1027 = vrot.lane.b32.xlu0 %v471, 12
      %v1028 = vpop.permute.xlu0 %1027
      %1029 = vrot.lane.b32.xlu0 %v473, 12
      %v1030 = vpop.permute.xlu0 %1029
      %1031 = vrot.lane.b32.xlu0 %v474, 12
      %v1032 = vpop.permute.xlu0 %1031
      %1033 = vrot.lane.b32.xlu0 %v476, 12
      %v1034 = vpop.permute.xlu0 %1033
      %1035 = vrot.lane.b32.xlu0 %v477, 12
      %v1036 = vpop.permute.xlu0 %1035
      %1037 = vrot.lane.b32.xlu0 %v479, 12
      %v1038 = vpop.permute.xlu0 %1037
      %1039 = vrot.lane.b32.xlu0 %v480, 12
      %v1040 = vpop.permute.xlu0 %1039
      %1041 = vrot.lane.b32.xlu0 %v482, 12
      %v1042 = vpop.permute.xlu0 %1041
      %1043 = vrot.lane.b32.xlu0 %v483, 12
      %v1044 = vpop.permute.xlu0 %1043
      %1045 = vrot.lane.b32.xlu0 %v485, 12
      %v1046 = vpop.permute.xlu0 %1045
      %1047 = vrot.lane.b32.xlu0 %v486, 12
      %v1048 = vpop.permute.xlu0 %1047
      %1049 = vrot.lane.b32.xlu0 %v488, 12
      %v1050 = vpop.permute.xlu0 %1049
      %1051 = vrot.lane.b32.xlu0 %v489, 12
      %v1052 = vpop.permute.xlu0 %1051
      %1053 = vrot.lane.b32.xlu0 %v491, 12
      %v1054 = vpop.permute.xlu0 %1053
      %1055 = vrot.lane.b32.xlu0 %v492, 12
      %v1056 = vpop.permute.xlu0 %1055
      %1057 = vrot.lane.b32.xlu0 %v494, 12
      %v1058 = vpop.permute.xlu0 %1057
      %1059 = vrot.lane.b32.xlu0 %v495, 12
      %v1060 = vpop.permute.xlu0 %1059
      %1061 = vrot.lane.b32.xlu0 %v497, 12
      %v1062 = vpop.permute.xlu0 %1061
      %1063 = vrot.lane.b32.xlu0 %v498, 12
      %v1064 = vpop.permute.xlu0 %1063
      %1065 = vrot.lane.b32.xlu0 %v500, 12
      %v1066 = vpop.permute.xlu0 %1065
      %1067 = vrot.lane.b32.xlu0 %v501, 12
      %v1068 = vpop.permute.xlu0 %1067
      %1069 = vrot.lane.b32.xlu0 %v503, 12
      %v1070 = vpop.permute.xlu0 %1069
      %1071 = vrot.lane.b32.xlu0 %v504, 12
      %v1072 = vpop.permute.xlu0 %1071
      %1073 = vrot.lane.b32.xlu0 %v506, 12
      %v1074 = vpop.permute.xlu0 %1073
      %1075 = vrot.lane.b32.xlu0 %v507, 12
      %v1076 = vpop.permute.xlu0 %1075
      %1077 = vrot.lane.b32.xlu0 %v509, 12
      %v1078 = vpop.permute.xlu0 %1077
      %1079 = vrot.lane.b32.xlu0 %v510, 12
      %v1080 = vpop.permute.xlu0 %1079
      %vm1113 = vcmask 130144
      %1114 = vst.msk [vmem:[#allocation3] sm:$0xff] %vm1113, %v1018
      %1115 = vst.msk [vmem:[#allocation3 + $0x8] sm:$0xff] %vm1113, %v1020
      %1116 = vst.msk [vmem:[#allocation3 + $0x10] sm:$0xff] %vm1113, %v1022
      %1117 = vst.msk [vmem:[#allocation3 + $0x18] sm:$0xff] %vm1113, %v1024
      %1118 = vst.msk [vmem:[#allocation3 + $0x20] sm:$0xff] %vm1113, %v1026
      %1119 = vst.msk [vmem:[#allocation3 + $0x28] sm:$0xff] %vm1113, %v1028
      %1120 = vst.msk [vmem:[#allocation3 + $0x30] sm:$0xff] %vm1113, %v1030
      %1121 = vst.msk [vmem:[#allocation3 + $0x38] sm:$0xff] %vm1113, %v1032
      %1122 = vst.msk [vmem:[#allocation3 + $0x40] sm:$0xff] %vm1113, %v1034
      %1123 = vst.msk [vmem:[#allocation3 + $0x48] sm:$0xff] %vm1113, %v1036
      %1124 = vst.msk [vmem:[#allocation3 + $0x50] sm:$0xff] %vm1113, %v1038
      %1125 = vst.msk [vmem:[#allocation3 + $0x58] sm:$0xff] %vm1113, %v1040
      %1126 = vst.msk [vmem:[#allocation3 + $0x60] sm:$0xff] %vm1113, %v1042
      %1127 = vst.msk [vmem:[#allocation3 + $0x68] sm:$0xff] %vm1113, %v1044
      %1128 = vst.msk [vmem:[#allocation3 + $0x70] sm:$0xff] %vm1113, %v1046
      %1129 = vst.msk [vmem:[#allocation3 + $0x78] sm:$0xff] %vm1113, %v1048
      %1130 = vst.msk [vmem:[#allocation3 + $0x80] sm:$0xff] %vm1113, %v1050
      %1131 = vst.msk [vmem:[#allocation3 + $0x88] sm:$0xff] %vm1113, %v1052
      %1132 = vst.msk [vmem:[#allocation3 + $0x90] sm:$0xff] %vm1113, %v1054
      %1133 = vst.msk [vmem:[#allocation3 + $0x98] sm:$0xff] %vm1113, %v1056
      %1134 = vst.msk [vmem:[#allocation3 + $0xa0] sm:$0xff] %vm1113, %v1058
      %1135 = vst.msk [vmem:[#allocation3 + $0xa8] sm:$0xff] %vm1113, %v1060
      %1136 = vst.msk [vmem:[#allocation3 + $0xb0] sm:$0xff] %vm1113, %v1062
      %1137 = vst.msk [vmem:[#allocation3 + $0xb8] sm:$0xff] %vm1113, %v1064
      %1138 = vst.msk [vmem:[#allocation3 + $0xc0] sm:$0xff] %vm1113, %v1066
      %1139 = vst.msk [vmem:[#allocation3 + $0xc8] sm:$0xff] %vm1113, %v1068
      %1140 = vst.msk [vmem:[#allocation3 + $0xd0] sm:$0xff] %vm1113, %v1070
      %1141 = vst.msk [vmem:[#allocation3 + $0xd8] sm:$0xff] %vm1113, %v1072
      %1142 = vst.msk [vmem:[#allocation3 + $0xe0] sm:$0xff] %vm1113, %v1074
      %1143 = vst.msk [vmem:[#allocation3 + $0xe8] sm:$0xff] %vm1113, %v1076
      %1144 = vst.msk [vmem:[#allocation3 + $0xf0] sm:$0xff] %vm1113, %v1078
      %1145 = vst.msk [vmem:[#allocation3 + $0xf8] sm:$0xff] %vm1113, %v1080
      %v1147 = vrot.slane %v509, 1
      %v1148 = vrot.slane %v510, 1
      %v1149 = vsel %vm595, %v1147, %v1148
      %v1150 = vrot.slane %v511, 1
      %v1151 = vsel %vm595, %v1148, %v1150
      %1152 = vrot.lane.b32.xlu0 %v603, 16
      %v1153 = vpop.permute.xlu0 %1152
      %1154 = vrot.lane.b32.xlu0 %v605, 16
      %v1155 = vpop.permute.xlu0 %1154
      %1156 = vrot.lane.b32.xlu0 %v608, 16
      %v1157 = vpop.permute.xlu0 %1156
      %1158 = vrot.lane.b32.xlu0 %v610, 16
      %v1159 = vpop.permute.xlu0 %1158
      %1160 = vrot.lane.b32.xlu0 %v613, 16
      %v1161 = vpop.permute.xlu0 %1160
      %1162 = vrot.lane.b32.xlu0 %v615, 16
      %v1163 = vpop.permute.xlu0 %1162
      %1164 = vrot.lane.b32.xlu0 %v618, 16
      %v1165 = vpop.permute.xlu0 %1164
      %1166 = vrot.lane.b32.xlu0 %v620, 16
      %v1167 = vpop.permute.xlu0 %1166
      %1168 = vrot.lane.b32.xlu0 %v623, 16
      %v1169 = vpop.permute.xlu0 %1168
      %1170 = vrot.lane.b32.xlu0 %v625, 16
      %v1171 = vpop.permute.xlu0 %1170
      %1172 = vrot.lane.b32.xlu0 %v628, 16
      %v1173 = vpop.permute.xlu0 %1172
      %1174 = vrot.lane.b32.xlu0 %v630, 16
      %v1175 = vpop.permute.xlu0 %1174
      %1176 = vrot.lane.b32.xlu0 %v633, 16
      %v1177 = vpop.permute.xlu0 %1176
      %1178 = vrot.lane.b32.xlu0 %v635, 16
      %v1179 = vpop.permute.xlu0 %1178
      %1180 = vrot.lane.b32.xlu0 %v638, 16
      %v1181 = vpop.permute.xlu0 %1180
      %1182 = vrot.lane.b32.xlu0 %v640, 16
      %v1183 = vpop.permute.xlu0 %1182
      %1184 = vrot.lane.b32.xlu0 %v643, 16
      %v1185 = vpop.permute.xlu0 %1184
      %1186 = vrot.lane.b32.xlu0 %v645, 16
      %v1187 = vpop.permute.xlu0 %1186
      %1188 = vrot.lane.b32.xlu0 %v648, 16
      %v1189 = vpop.permute.xlu0 %1188
      %1190 = vrot.lane.b32.xlu0 %v650, 16
      %v1191 = vpop.permute.xlu0 %1190
      %1192 = vrot.lane.b32.xlu0 %v653, 16
      %v1193 = vpop.permute.xlu0 %1192
      %1194 = vrot.lane.b32.xlu0 %v655, 16
      %v1195 = vpop.permute.xlu0 %1194
      %1196 = vrot.lane.b32.xlu0 %v658, 16
      %v1197 = vpop.permute.xlu0 %1196
      %1198 = vrot.lane.b32.xlu0 %v660, 16
      %v1199 = vpop.permute.xlu0 %1198
      %1200 = vrot.lane.b32.xlu0 %v663, 16
      %v1201 = vpop.permute.xlu0 %1200
      %1202 = vrot.lane.b32.xlu0 %v665, 16
      %v1203 = vpop.permute.xlu0 %1202
      %1204 = vrot.lane.b32.xlu0 %v668, 16
      %v1205 = vpop.permute.xlu0 %1204
      %1206 = vrot.lane.b32.xlu0 %v670, 16
      %v1207 = vpop.permute.xlu0 %1206
      %1208 = vrot.lane.b32.xlu0 %v673, 16
      %v1209 = vpop.permute.xlu0 %1208
      %1210 = vrot.lane.b32.xlu0 %v675, 16
      %v1211 = vpop.permute.xlu0 %1210
      %1212 = vrot.lane.b32.xlu0 %v1149, 16
      %v1213 = vpop.permute.xlu0 %1212
      %1214 = vrot.lane.b32.xlu0 %v1151, 16
      %v1215 = vpop.permute.xlu0 %1214
      %vm1248 = vcmask 162944
      %1249 = vst.msk [vmem:[#allocation3] sm:$0xff] %vm1248, %v1153
      %1250 = vst.msk [vmem:[#allocation3 + $0x8] sm:$0xff] %vm1248, %v1155
      %1251 = vst.msk [vmem:[#allocation3 + $0x10] sm:$0xff] %vm1248, %v1157
      %1252 = vst.msk [vmem:[#allocation3 + $0x18] sm:$0xff] %vm1248, %v1159
      %1253 = vst.msk [vmem:[#allocation3 + $0x20] sm:$0xff] %vm1248, %v1161
      %1254 = vst.msk [vmem:[#allocation3 + $0x28] sm:$0xff] %vm1248, %v1163
      %1255 = vst.msk [vmem:[#allocation3 + $0x30] sm:$0xff] %vm1248, %v1165
      %1256 = vst.msk [vmem:[#allocation3 + $0x38] sm:$0xff] %vm1248, %v1167
      %1257 = vst.msk [vmem:[#allocation3 + $0x40] sm:$0xff] %vm1248, %v1169
      %1258 = vst.msk [vmem:[#allocation3 + $0x48] sm:$0xff] %vm1248, %v1171
      %1259 = vst.msk [vmem:[#allocation3 + $0x50] sm:$0xff] %vm1248, %v1173
      %1260 = vst.msk [vmem:[#allocation3 + $0x58] sm:$0xff] %vm1248, %v1175
      %1261 = vst.msk [vmem:[#allocation3 + $0x60] sm:$0xff] %vm1248, %v1177
      %1262 = vst.msk [vmem:[#allocation3 + $0x68] sm:$0xff] %vm1248, %v1179
      %1263 = vst.msk [vmem:[#allocation3 + $0x70] sm:$0xff] %vm1248, %v1181
      %1264 = vst.msk [vmem:[#allocation3 + $0x78] sm:$0xff] %vm1248, %v1183
      %1265 = vst.msk [vmem:[#allocation3 + $0x80] sm:$0xff] %vm1248, %v1185
      %1266 = vst.msk [vmem:[#allocation3 + $0x88] sm:$0xff] %vm1248, %v1187
      %1267 = vst.msk [vmem:[#allocation3 + $0x90] sm:$0xff] %vm1248, %v1189
      %1268 = vst.msk [vmem:[#allocation3 + $0x98] sm:$0xff] %vm1248, %v1191
      %1269 = vst.msk [vmem:[#allocation3 + $0xa0] sm:$0xff] %vm1248, %v1193
      %1270 = vst.msk [vmem:[#allocation3 + $0xa8] sm:$0xff] %vm1248, %v1195
      %1271 = vst.msk [vmem:[#allocation3 + $0xb0] sm:$0xff] %vm1248, %v1197
      %1272 = vst.msk [vmem:[#allocation3 + $0xb8] sm:$0xff] %vm1248, %v1199
      %1273 = vst.msk [vmem:[#allocation3 + $0xc0] sm:$0xff] %vm1248, %v1201
      %1274 = vst.msk [vmem:[#allocation3 + $0xc8] sm:$0xff] %vm1248, %v1203
      %1275 = vst.msk [vmem:[#allocation3 + $0xd0] sm:$0xff] %vm1248, %v1205
      %1276 = vst.msk [vmem:[#allocation3 + $0xd8] sm:$0xff] %vm1248, %v1207
      %1277 = vst.msk [vmem:[#allocation3 + $0xe0] sm:$0xff] %vm1248, %v1209
      %1278 = vst.msk [vmem:[#allocation3 + $0xe8] sm:$0xff] %vm1248, %v1211
      %1279 = vst.msk [vmem:[#allocation3 + $0xf0] sm:$0xff] %vm1248, %v1213
      %1280 = vst.msk [vmem:[#allocation3 + $0xf8] sm:$0xff] %vm1248, %v1215
      %v1281 = vrot.slane %v509, 2
      %v1282 = vrot.slane %v510, 2
      %v1283 = vsel %vm805, %v1281, %v1282
      %v1284 = vrot.slane %v511, 2
      %v1285 = vsel %vm805, %v1282, %v1284
      %1286 = vrot.lane.b32.xlu0 %v813, 20
      %v1287 = vpop.permute.xlu0 %1286
      %1288 = vrot.lane.b32.xlu0 %v815, 20
      %v1289 = vpop.permute.xlu0 %1288
      %1290 = vrot.lane.b32.xlu0 %v818, 20
      %v1291 = vpop.permute.xlu0 %1290
      %1292 = vrot.lane.b32.xlu0 %v820, 20
      %v1293 = vpop.permute.xlu0 %1292
      %1294 = vrot.lane.b32.xlu0 %v823, 20
      %v1295 = vpop.permute.xlu0 %1294
      %1296 = vrot.lane.b32.xlu0 %v825, 20
      %v1297 = vpop.permute.xlu0 %1296
      %1298 = vrot.lane.b32.xlu0 %v828, 20
      %v1299 = vpop.permute.xlu0 %1298
      %1300 = vrot.lane.b32.xlu0 %v830, 20
      %v1301 = vpop.permute.xlu0 %1300
      %1302 = vrot.lane.b32.xlu0 %v833, 20
      %v1303 = vpop.permute.xlu0 %1302
      %1304 = vrot.lane.b32.xlu0 %v835, 20
      %v1305 = vpop.permute.xlu0 %1304
      %1306 = vrot.lane.b32.xlu0 %v838, 20
      %v1307 = vpop.permute.xlu0 %1306
      %1308 = vrot.lane.b32.xlu0 %v840, 20
      %v1309 = vpop.permute.xlu0 %1308
      %1310 = vrot.lane.b32.xlu0 %v843, 20
      %v1311 = vpop.permute.xlu0 %1310
      %1312 = vrot.lane.b32.xlu0 %v845, 20
      %v1313 = vpop.permute.xlu0 %1312
      %1314 = vrot.lane.b32.xlu0 %v848, 20
      %v1315 = vpop.permute.xlu0 %1314
      %1316 = vrot.lane.b32.xlu0 %v850, 20
      %v1317 = vpop.permute.xlu0 %1316
      %1318 = vrot.lane.b32.xlu0 %v853, 20
      %v1319 = vpop.permute.xlu0 %1318
      %1320 = vrot.lane.b32.xlu0 %v855, 20
      %v1321 = vpop.permute.xlu0 %1320
      %1322 = vrot.lane.b32.xlu0 %v858, 20
      %v1323 = vpop.permute.xlu0 %1322
      %1324 = vrot.lane.b32.xlu0 %v860, 20
      %v1325 = vpop.permute.xlu0 %1324
      %1326 = vrot.lane.b32.xlu0 %v863, 20
      %v1327 = vpop.permute.xlu0 %1326
      %1328 = vrot.lane.b32.xlu0 %v865, 20
      %v1329 = vpop.permute.xlu0 %1328
      %1330 = vrot.lane.b32.xlu0 %v868, 20
      %v1331 = vpop.permute.xlu0 %1330
      %1332 = vrot.lane.b32.xlu0 %v870, 20
      %v1333 = vpop.permute.xlu0 %1332
      %1334 = vrot.lane.b32.xlu0 %v873, 20
      %v1335 = vpop.permute.xlu0 %1334
      %1336 = vrot.lane.b32.xlu0 %v875, 20
      %v1337 = vpop.permute.xlu0 %1336
      %1338 = vrot.lane.b32.xlu0 %v878, 20
      %v1339 = vpop.permute.xlu0 %1338
      %1340 = vrot.lane.b32.xlu0 %v880, 20
      %v1341 = vpop.permute.xlu0 %1340
      %1342 = vrot.lane.b32.xlu0 %v883, 20
      %v1343 = vpop.permute.xlu0 %1342
      %1344 = vrot.lane.b32.xlu0 %v885, 20
      %v1345 = vpop.permute.xlu0 %1344
      %1346 = vrot.lane.b32.xlu0 %v1283, 20
      %v1347 = vpop.permute.xlu0 %1346
      %1348 = vrot.lane.b32.xlu0 %v1285, 20
      %v1349 = vpop.permute.xlu0 %1348
      %vm1382 = vcmask 195744
      %1383 = vst.msk [vmem:[#allocation3] sm:$0xff] %vm1382, %v1287
      %1384 = vst.msk [vmem:[#allocation3 + $0x8] sm:$0xff] %vm1382, %v1289
      %1385 = vst.msk [vmem:[#allocation3 + $0x10] sm:$0xff] %vm1382, %v1291
      %1386 = vst.msk [vmem:[#allocation3 + $0x18] sm:$0xff] %vm1382, %v1293
      %1387 = vst.msk [vmem:[#allocation3 + $0x20] sm:$0xff] %vm1382, %v1295
      %1388 = vst.msk [vmem:[#allocation3 + $0x28] sm:$0xff] %vm1382, %v1297
      %1389 = vst.msk [vmem:[#allocation3 + $0x30] sm:$0xff] %vm1382, %v1299
      %1390 = vst.msk [vmem:[#allocation3 + $0x38] sm:$0xff] %vm1382, %v1301
      %1391 = vst.msk [vmem:[#allocation3 + $0x40] sm:$0xff] %vm1382, %v1303
      %1392 = vst.msk [vmem:[#allocation3 + $0x48] sm:$0xff] %vm1382, %v1305
      %1393 = vst.msk [vmem:[#allocation3 + $0x50] sm:$0xff] %vm1382, %v1307
      %1394 = vst.msk [vmem:[#allocation3 + $0x58] sm:$0xff] %vm1382, %v1309
      %1395 = vst.msk [vmem:[#allocation3 + $0x60] sm:$0xff] %vm1382, %v1311
      %1396 = vst.msk [vmem:[#allocation3 + $0x68] sm:$0xff] %vm1382, %v1313
      %1397 = vst.msk [vmem:[#allocation3 + $0x70] sm:$0xff] %vm1382, %v1315
      %1398 = vst.msk [vmem:[#allocation3 + $0x78] sm:$0xff] %vm1382, %v1317
      %1399 = vst.msk [vmem:[#allocation3 + $0x80] sm:$0xff] %vm1382, %v1319
      %1400 = vst.msk [vmem:[#allocation3 + $0x88] sm:$0xff] %vm1382, %v1321
      %1401 = vst.msk [vmem:[#allocation3 + $0x90] sm:$0xff] %vm1382, %v1323
      %1402 = vst.msk [vmem:[#allocation3 + $0x98] sm:$0xff] %vm1382, %v1325
      %1403 = vst.msk [vmem:[#allocation3 + $0xa0] sm:$0xff] %vm1382, %v1327
      %1404 = vst.msk [vmem:[#allocation3 + $0xa8] sm:$0xff] %vm1382, %v1329
      %1405 = vst.msk [vmem:[#allocation3 + $0xb0] sm:$0xff] %vm1382, %v1331
      %1406 = vst.msk [vmem:[#allocation3 + $0xb8] sm:$0xff] %vm1382, %v1333
      %1407 = vst.msk [vmem:[#allocation3 + $0xc0] sm:$0xff] %vm1382, %v1335
      %1408 = vst.msk [vmem:[#allocation3 + $0xc8] sm:$0xff] %vm1382, %v1337
      %1409 = vst.msk [vmem:[#allocation3 + $0xd0] sm:$0xff] %vm1382, %v1339
      %1410 = vst.msk [vmem:[#allocation3 + $0xd8] sm:$0xff] %vm1382, %v1341
      %1411 = vst.msk [vmem:[#allocation3 + $0xe0] sm:$0xff] %vm1382, %v1343
      %1412 = vst.msk [vmem:[#allocation3 + $0xe8] sm:$0xff] %vm1382, %v1345
      %1413 = vst.msk [vmem:[#allocation3 + $0xf0] sm:$0xff] %vm1382, %v1347
      %1414 = vst.msk [vmem:[#allocation3 + $0xf8] sm:$0xff] %vm1382, %v1349
      %1417 = vrot.lane.b32.xlu0 %v467, 24
      %v1418 = vpop.permute.xlu0 %1417
      %1419 = vrot.lane.b32.xlu0 %v468, 24
      %v1420 = vpop.permute.xlu0 %1419
      %1421 = vrot.lane.b32.xlu0 %v470, 24
      %v1422 = vpop.permute.xlu0 %1421
      %1423 = vrot.lane.b32.xlu0 %v471, 24
      %v1424 = vpop.permute.xlu0 %1423
      %1425 = vrot.lane.b32.xlu0 %v473, 24
      %v1426 = vpop.permute.xlu0 %1425
      %1427 = vrot.lane.b32.xlu0 %v474, 24
      %v1428 = vpop.permute.xlu0 %1427
      %1429 = vrot.lane.b32.xlu0 %v476, 24
      %v1430 = vpop.permute.xlu0 %1429
      %1431 = vrot.lane.b32.xlu0 %v477, 24
      %v1432 = vpop.permute.xlu0 %1431
      %1433 = vrot.lane.b32.xlu0 %v479, 24
      %v1434 = vpop.permute.xlu0 %1433
      %1435 = vrot.lane.b32.xlu0 %v480, 24
      %v1436 = vpop.permute.xlu0 %1435
      %1437 = vrot.lane.b32.xlu0 %v482, 24
      %v1438 = vpop.permute.xlu0 %1437
      %1439 = vrot.lane.b32.xlu0 %v483, 24
      %v1440 = vpop.permute.xlu0 %1439
      %1441 = vrot.lane.b32.xlu0 %v485, 24
      %v1442 = vpop.permute.xlu0 %1441
      %1443 = vrot.lane.b32.xlu0 %v486, 24
      %v1444 = vpop.permute.xlu0 %1443
      %1445 = vrot.lane.b32.xlu0 %v488, 24
      %v1446 = vpop.permute.xlu0 %1445
      %1447 = vrot.lane.b32.xlu0 %v489, 24
      %v1448 = vpop.permute.xlu0 %1447
      %1449 = vrot.lane.b32.xlu0 %v491, 24
      %v1450 = vpop.permute.xlu0 %1449
      %1451 = vrot.lane.b32.xlu0 %v492, 24
      %v1452 = vpop.permute.xlu0 %1451
      %1453 = vrot.lane.b32.xlu0 %v494, 24
      %v1454 = vpop.permute.xlu0 %1453
      %1455 = vrot.lane.b32.xlu0 %v495, 24
      %v1456 = vpop.permute.xlu0 %1455
      %1457 = vrot.lane.b32.xlu0 %v497, 24
      %v1458 = vpop.permute.xlu0 %1457
      %1459 = vrot.lane.b32.xlu0 %v498, 24
      %v1460 = vpop.permute.xlu0 %1459
      %1461 = vrot.lane.b32.xlu0 %v500, 24
      %v1462 = vpop.permute.xlu0 %1461
      %1463 = vrot.lane.b32.xlu0 %v501, 24
      %v1464 = vpop.permute.xlu0 %1463
      %1465 = vrot.lane.b32.xlu0 %v503, 24
      %v1466 = vpop.permute.xlu0 %1465
      %1467 = vrot.lane.b32.xlu0 %v504, 24
      %v1468 = vpop.permute.xlu0 %1467
      %1469 = vrot.lane.b32.xlu0 %v506, 24
      %v1470 = vpop.permute.xlu0 %1469
      %1471 = vrot.lane.b32.xlu0 %v507, 24
      %v1472 = vpop.permute.xlu0 %1471
      %1473 = vrot.lane.b32.xlu0 %v509, 24
      %v1474 = vpop.permute.xlu0 %1473
      %1475 = vrot.lane.b32.xlu0 %v510, 24
      %v1476 = vpop.permute.xlu0 %1475
      %1477 = vrot.lane.b32.xlu0 %v512, 24
      %v1478 = vpop.permute.xlu0 %1477
      %1479 = vrot.lane.b32.xlu0 %v513, 24
      %v1480 = vpop.permute.xlu0 %1479
      %vm1513 = vcmask 228544
      %1514 = vst.msk [vmem:[#allocation3] sm:$0xff] %vm1513, %v1418
      %1515 = vst.msk [vmem:[#allocation3 + $0x8] sm:$0xff] %vm1513, %v1420
      %1516 = vst.msk [vmem:[#allocation3 + $0x10] sm:$0xff] %vm1513, %v1422
      %1517 = vst.msk [vmem:[#allocation3 + $0x18] sm:$0xff] %vm1513, %v1424
      %1518 = vst.msk [vmem:[#allocation3 + $0x20] sm:$0xff] %vm1513, %v1426
      %1519 = vst.msk [vmem:[#allocation3 + $0x28] sm:$0xff] %vm1513, %v1428
      %1520 = vst.msk [vmem:[#allocation3 + $0x30] sm:$0xff] %vm1513, %v1430
      %1521 = vst.msk [vmem:[#allocation3 + $0x38] sm:$0xff] %vm1513, %v1432
      %1522 = vst.msk [vmem:[#allocation3 + $0x40] sm:$0xff] %vm1513, %v1434
      %1523 = vst.msk [vmem:[#allocation3 + $0x48] sm:$0xff] %vm1513, %v1436
      %1524 = vst.msk [vmem:[#allocation3 + $0x50] sm:$0xff] %vm1513, %v1438
      %1525 = vst.msk [vmem:[#allocation3 + $0x58] sm:$0xff] %vm1513, %v1440
      %1526 = vst.msk [vmem:[#allocation3 + $0x60] sm:$0xff] %vm1513, %v1442
      %1527 = vst.msk [vmem:[#allocation3 + $0x68] sm:$0xff] %vm1513, %v1444
      %1528 = vst.msk [vmem:[#allocation3 + $0x70] sm:$0xff] %vm1513, %v1446
      %1529 = vst.msk [vmem:[#allocation3 + $0x78] sm:$0xff] %vm1513, %v1448
      %1530 = vst.msk [vmem:[#allocation3 + $0x80] sm:$0xff] %vm1513, %v1450
      %1531 = vst.msk [vmem:[#allocation3 + $0x88] sm:$0xff] %vm1513, %v1452
      %1532 = vst.msk [vmem:[#allocation3 + $0x90] sm:$0xff] %vm1513, %v1454
      %1533 = vst.msk [vmem:[#allocation3 + $0x98] sm:$0xff] %vm1513, %v1456
      %1534 = vst.msk [vmem:[#allocation3 + $0xa0] sm:$0xff] %vm1513, %v1458
      %1535 = vst.msk [vmem:[#allocation3 + $0xa8] sm:$0xff] %vm1513, %v1460
      %1536 = vst.msk [vmem:[#allocation3 + $0xb0] sm:$0xff] %vm1513, %v1462
      %1537 = vst.msk [vmem:[#allocation3 + $0xb8] sm:$0xff] %vm1513, %v1464
      %1538 = vst.msk [vmem:[#allocation3 + $0xc0] sm:$0xff] %vm1513, %v1466
      %1539 = vst.msk [vmem:[#allocation3 + $0xc8] sm:$0xff] %vm1513, %v1468
      %1540 = vst.msk [vmem:[#allocation3 + $0xd0] sm:$0xff] %vm1513, %v1470
      %1541 = vst.msk [vmem:[#allocation3 + $0xd8] sm:$0xff] %vm1513, %v1472
      %1542 = vst.msk [vmem:[#allocation3 + $0xe0] sm:$0xff] %vm1513, %v1474
      %1543 = vst.msk [vmem:[#allocation3 + $0xe8] sm:$0xff] %vm1513, %v1476
      %1544 = vst.msk [vmem:[#allocation3 + $0xf0] sm:$0xff] %vm1513, %v1478
      %1545 = vst.msk [vmem:[#allocation3 + $0xf8] sm:$0xff] %vm1513, %v1480
      %v1547 = vrot.slane %v512, 1
      %v1548 = vrot.slane %v513, 1
      %v1549 = vsel %vm595, %v1547, %v1548
      %v1550 = vrot.slane %v514, 1
      %v1551 = vsel %vm595, %v1548, %v1550
      %1552 = vrot.lane.b32.xlu0 %v608, 28
      %v1553 = vpop.permute.xlu0 %1552
      %1554 = vrot.lane.b32.xlu0 %v610, 28
      %v1555 = vpop.permute.xlu0 %1554
      %1556 = vrot.lane.b32.xlu0 %v613, 28
      %v1557 = vpop.permute.xlu0 %1556
      %1558 = vrot.lane.b32.xlu0 %v615, 28
      %v1559 = vpop.permute.xlu0 %1558
      %1560 = vrot.lane.b32.xlu0 %v618, 28
      %v1561 = vpop.permute.xlu0 %1560
      %1562 = vrot.lane.b32.xlu0 %v620, 28
      %v1563 = vpop.permute.xlu0 %1562
      %1564 = vrot.lane.b32.xlu0 %v623, 28
      %v1565 = vpop.permute.xlu0 %1564
      %1566 = vrot.lane.b32.xlu0 %v625, 28
      %v1567 = vpop.permute.xlu0 %1566
      %1568 = vrot.lane.b32.xlu0 %v628, 28
      %v1569 = vpop.permute.xlu0 %1568
      %1570 = vrot.lane.b32.xlu0 %v630, 28
      %v1571 = vpop.permute.xlu0 %1570
      %1572 = vrot.lane.b32.xlu0 %v633, 28
      %v1573 = vpop.permute.xlu0 %1572
      %1574 = vrot.lane.b32.xlu0 %v635, 28
      %v1575 = vpop.permute.xlu0 %1574
      %1576 = vrot.lane.b32.xlu0 %v638, 28
      %v1577 = vpop.permute.xlu0 %1576
      %1578 = vrot.lane.b32.xlu0 %v640, 28
      %v1579 = vpop.permute.xlu0 %1578
      %1580 = vrot.lane.b32.xlu0 %v643, 28
      %v1581 = vpop.permute.xlu0 %1580
      %1582 = vrot.lane.b32.xlu0 %v645, 28
      %v1583 = vpop.permute.xlu0 %1582
      %1584 = vrot.lane.b32.xlu0 %v648, 28
      %v1585 = vpop.permute.xlu0 %1584
      %1586 = vrot.lane.b32.xlu0 %v650, 28
      %v1587 = vpop.permute.xlu0 %1586
      %1588 = vrot.lane.b32.xlu0 %v653, 28
      %v1589 = vpop.permute.xlu0 %1588
      %1590 = vrot.lane.b32.xlu0 %v655, 28
      %v1591 = vpop.permute.xlu0 %1590
      %1592 = vrot.lane.b32.xlu0 %v658, 28
      %v1593 = vpop.permute.xlu0 %1592
      %1594 = vrot.lane.b32.xlu0 %v660, 28
      %v1595 = vpop.permute.xlu0 %1594
      %1596 = vrot.lane.b32.xlu0 %v663, 28
      %v1597 = vpop.permute.xlu0 %1596
      %1598 = vrot.lane.b32.xlu0 %v665, 28
      %v1599 = vpop.permute.xlu0 %1598
      %1600 = vrot.lane.b32.xlu0 %v668, 28
      %v1601 = vpop.permute.xlu0 %1600
      %1602 = vrot.lane.b32.xlu0 %v670, 28
      %v1603 = vpop.permute.xlu0 %1602
      %1604 = vrot.lane.b32.xlu0 %v673, 28
      %v1605 = vpop.permute.xlu0 %1604
      %1606 = vrot.lane.b32.xlu0 %v675, 28
      %v1607 = vpop.permute.xlu0 %1606
      %1608 = vrot.lane.b32.xlu0 %v1149, 28
      %v1609 = vpop.permute.xlu0 %1608
      %1610 = vrot.lane.b32.xlu0 %v1151, 28
      %v1611 = vpop.permute.xlu0 %1610
      %1612 = vrot.lane.b32.xlu0 %v1549, 28
      %v1613 = vpop.permute.xlu0 %1612
      %1614 = vrot.lane.b32.xlu0 %v1551, 28
      %v1615 = vpop.permute.xlu0 %1614
      %vm1648 = vcmask 261344
      %1649 = vst.msk [vmem:[#allocation3] sm:$0xff] %vm1648, %v1553
      %1650 = vst.msk [vmem:[#allocation3 + $0x8] sm:$0xff] %vm1648, %v1555
      %1651 = vst.msk [vmem:[#allocation3 + $0x10] sm:$0xff] %vm1648, %v1557
      %1652 = vst.msk [vmem:[#allocation3 + $0x18] sm:$0xff] %vm1648, %v1559
      %1653 = vst.msk [vmem:[#allocation3 + $0x20] sm:$0xff] %vm1648, %v1561
      %1654 = vst.msk [vmem:[#allocation3 + $0x28] sm:$0xff] %vm1648, %v1563
      %1655 = vst.msk [vmem:[#allocation3 + $0x30] sm:$0xff] %vm1648, %v1565
      %1656 = vst.msk [vmem:[#allocation3 + $0x38] sm:$0xff] %vm1648, %v1567
      %1657 = vst.msk [vmem:[#allocation3 + $0x40] sm:$0xff] %vm1648, %v1569
      %1658 = vst.msk [vmem:[#allocation3 + $0x48] sm:$0xff] %vm1648, %v1571
      %1659 = vst.msk [vmem:[#allocation3 + $0x50] sm:$0xff] %vm1648, %v1573
      %1660 = vst.msk [vmem:[#allocation3 + $0x58] sm:$0xff] %vm1648, %v1575
      %1661 = vst.msk [vmem:[#allocation3 + $0x60] sm:$0xff] %vm1648, %v1577
      %1662 = vst.msk [vmem:[#allocation3 + $0x68] sm:$0xff] %vm1648, %v1579
      %1663 = vst.msk [vmem:[#allocation3 + $0x70] sm:$0xff] %vm1648, %v1581
      %1664 = vst.msk [vmem:[#allocation3 + $0x78] sm:$0xff] %vm1648, %v1583
      %1665 = vst.msk [vmem:[#allocation3 + $0x80] sm:$0xff] %vm1648, %v1585
      %1666 = vst.msk [vmem:[#allocation3 + $0x88] sm:$0xff] %vm1648, %v1587
      %1667 = vst.msk [vmem:[#allocation3 + $0x90] sm:$0xff] %vm1648, %v1589
      %1668 = vst.msk [vmem:[#allocation3 + $0x98] sm:$0xff] %vm1648, %v1591
      %1669 = vst.msk [vmem:[#allocation3 + $0xa0] sm:$0xff] %vm1648, %v1593
      %1670 = vst.msk [vmem:[#allocation3 + $0xa8] sm:$0xff] %vm1648, %v1595
      %1671 = vst.msk [vmem:[#allocation3 + $0xb0] sm:$0xff] %vm1648, %v1597
      %1672 = vst.msk [vmem:[#allocation3 + $0xb8] sm:$0xff] %vm1648, %v1599
      %1673 = vst.msk [vmem:[#allocation3 + $0xc0] sm:$0xff] %vm1648, %v1601
      %1674 = vst.msk [vmem:[#allocation3 + $0xc8] sm:$0xff] %vm1648, %v1603
      %1675 = vst.msk [vmem:[#allocation3 + $0xd0] sm:$0xff] %vm1648, %v1605
      %1676 = vst.msk [vmem:[#allocation3 + $0xd8] sm:$0xff] %vm1648, %v1607
      %1677 = vst.msk [vmem:[#allocation3 + $0xe0] sm:$0xff] %vm1648, %v1609
      %1678 = vst.msk [vmem:[#allocation3 + $0xe8] sm:$0xff] %vm1648, %v1611
      %1679 = vst.msk [vmem:[#allocation3 + $0xf0] sm:$0xff] %vm1648, %v1613
      %1680 = vst.msk [vmem:[#allocation3 + $0xf8] sm:$0xff] %vm1648, %v1615
      %v1681 = vrot.slane %v512, 2
      %v1682 = vrot.slane %v513, 2
      %v1683 = vsel %vm805, %v1681, %v1682
      %v1684 = vrot.slane %v514, 2
      %v1685 = vsel %vm805, %v1682, %v1684
      %1686 = vrot.lane.b32.xlu0 %v818, 32
      %v1687 = vpop.permute.xlu0 %1686
      %1688 = vrot.lane.b32.xlu0 %v820, 32
      %v1689 = vpop.permute.xlu0 %1688
      %1690 = vrot.lane.b32.xlu0 %v823, 32
      %v1691 = vpop.permute.xlu0 %1690
      %1692 = vrot.lane.b32.xlu0 %v825, 32
      %v1693 = vpop.permute.xlu0 %1692
      %1694 = vrot.lane.b32.xlu0 %v828, 32
      %v1695 = vpop.permute.xlu0 %1694
      %1696 = vrot.lane.b32.xlu0 %v830, 32
      %v1697 = vpop.permute.xlu0 %1696
      %1698 = vrot.lane.b32.xlu0 %v833, 32
      %v1699 = vpop.permute.xlu0 %1698
      %1700 = vrot.lane.b32.xlu0 %v835, 32
      %v1701 = vpop.permute.xlu0 %1700
      %1702 = vrot.lane.b32.xlu0 %v838, 32
      %v1703 = vpop.permute.xlu0 %1702
      %1704 = vrot.lane.b32.xlu0 %v840, 32
      %v1705 = vpop.permute.xlu0 %1704
      %1706 = vrot.lane.b32.xlu0 %v843, 32
      %v1707 = vpop.permute.xlu0 %1706
      %1708 = vrot.lane.b32.xlu0 %v845, 32
      %v1709 = vpop.permute.xlu0 %1708
      %1710 = vrot.lane.b32.xlu0 %v848, 32
      %v1711 = vpop.permute.xlu0 %1710
      %1712 = vrot.lane.b32.xlu0 %v850, 32
      %v1713 = vpop.permute.xlu0 %1712
      %1714 = vrot.lane.b32.xlu0 %v853, 32
      %v1715 = vpop.permute.xlu0 %1714
      %1716 = vrot.lane.b32.xlu0 %v855, 32
      %v1717 = vpop.permute.xlu0 %1716
      %1718 = vrot.lane.b32.xlu0 %v858, 32
      %v1719 = vpop.permute.xlu0 %1718
      %1720 = vrot.lane.b32.xlu0 %v860, 32
      %v1721 = vpop.permute.xlu0 %1720
      %1722 = vrot.lane.b32.xlu0 %v863, 32
      %v1723 = vpop.permute.xlu0 %1722
      %1724 = vrot.lane.b32.xlu0 %v865, 32
      %v1725 = vpop.permute.xlu0 %1724
      %1726 = vrot.lane.b32.xlu0 %v868, 32
      %v1727 = vpop.permute.xlu0 %1726
      %1728 = vrot.lane.b32.xlu0 %v870, 32
      %v1729 = vpop.permute.xlu0 %1728
      %1730 = vrot.lane.b32.xlu0 %v873, 32
      %v1731 = vpop.permute.xlu0 %1730
      %1732 = vrot.lane.b32.xlu0 %v875, 32
      %v1733 = vpop.permute.xlu0 %1732
      %1734 = vrot.lane.b32.xlu0 %v878, 32
      %v1735 = vpop.permute.xlu0 %1734
      %1736 = vrot.lane.b32.xlu0 %v880, 32
      %v1737 = vpop.permute.xlu0 %1736
      %1738 = vrot.lane.b32.xlu0 %v883, 32
      %v1739 = vpop.permute.xlu0 %1738
      %1740 = vrot.lane.b32.xlu0 %v885, 32
      %v1741 = vpop.permute.xlu0 %1740
      %1742 = vrot.lane.b32.xlu0 %v1283, 32
      %v1743 = vpop.permute.xlu0 %1742
      %1744 = vrot.lane.b32.xlu0 %v1285, 32
      %v1745 = vpop.permute.xlu0 %1744
      %1746 = vrot.lane.b32.xlu0 %v1683, 32
      %v1747 = vpop.permute.xlu0 %1746
      %1748 = vrot.lane.b32.xlu0 %v1685, 32
      %v1749 = vpop.permute.xlu0 %1748
      %vm1782 = vcmask 294144
      %1783 = vst.msk [vmem:[#allocation3] sm:$0xff] %vm1782, %v1687
      %1784 = vst.msk [vmem:[#allocation3 + $0x8] sm:$0xff] %vm1782, %v1689
      %1785 = vst.msk [vmem:[#allocation3 + $0x10] sm:$0xff] %vm1782, %v1691
      %1786 = vst.msk [vmem:[#allocation3 + $0x18] sm:$0xff] %vm1782, %v1693
      %1787 = vst.msk [vmem:[#allocation3 + $0x20] sm:$0xff] %vm1782, %v1695
      %1788 = vst.msk [vmem:[#allocation3 + $0x28] sm:$0xff] %vm1782, %v1697
      %1789 = vst.msk [vmem:[#allocation3 + $0x30] sm:$0xff] %vm1782, %v1699
      %1790 = vst.msk [vmem:[#allocation3 + $0x38] sm:$0xff] %vm1782, %v1701
      %1791 = vst.msk [vmem:[#allocation3 + $0x40] sm:$0xff] %vm1782, %v1703
      %1792 = vst.msk [vmem:[#allocation3 + $0x48] sm:$0xff] %vm1782, %v1705
      %1793 = vst.msk [vmem:[#allocation3 + $0x50] sm:$0xff] %vm1782, %v1707
      %1794 = vst.msk [vmem:[#allocation3 + $0x58] sm:$0xff] %vm1782, %v1709
      %1795 = vst.msk [vmem:[#allocation3 + $0x60] sm:$0xff] %vm1782, %v1711
      %1796 = vst.msk [vmem:[#allocation3 + $0x68] sm:$0xff] %vm1782, %v1713
      %1797 = vst.msk [vmem:[#allocation3 + $0x70] sm:$0xff] %vm1782, %v1715
      %1798 = vst.msk [vmem:[#allocation3 + $0x78] sm:$0xff] %vm1782, %v1717
      %1799 = vst.msk [vmem:[#allocation3 + $0x80] sm:$0xff] %vm1782, %v1719
      %1800 = vst.msk [vmem:[#allocation3 + $0x88] sm:$0xff] %vm1782, %v1721
      %1801 = vst.msk [vmem:[#allocation3 + $0x90] sm:$0xff] %vm1782, %v1723
      %1802 = vst.msk [vmem:[#allocation3 + $0x98] sm:$0xff] %vm1782, %v1725
      %1803 = vst.msk [vmem:[#allocation3 + $0xa0] sm:$0xff] %vm1782, %v1727
      %1804 = vst.msk [vmem:[#allocation3 + $0xa8] sm:$0xff] %vm1782, %v1729
      %1805 = vst.msk [vmem:[#allocation3 + $0xb0] sm:$0xff] %vm1782, %v1731
      %1806 = vst.msk [vmem:[#allocation3 + $0xb8] sm:$0xff] %vm1782, %v1733
      %1807 = vst.msk [vmem:[#allocation3 + $0xc0] sm:$0xff] %vm1782, %v1735
      %1808 = vst.msk [vmem:[#allocation3 + $0xc8] sm:$0xff] %vm1782, %v1737
      %1809 = vst.msk [vmem:[#allocation3 + $0xd0] sm:$0xff] %vm1782, %v1739
      %1810 = vst.msk [vmem:[#allocation3 + $0xd8] sm:$0xff] %vm1782, %v1741
      %1811 = vst.msk [vmem:[#allocation3 + $0xe0] sm:$0xff] %vm1782, %v1743
      %1812 = vst.msk [vmem:[#allocation3 + $0xe8] sm:$0xff] %vm1782, %v1745
      %1813 = vst.msk [vmem:[#allocation3 + $0xf0] sm:$0xff] %vm1782, %v1747
      %1814 = vst.msk [vmem:[#allocation3 + $0xf8] sm:$0xff] %vm1782, %v1749
      %v1815 = vld [vmem:[#allocation3] sm:$0xff]
      %v1816 = vld [vmem:[#allocation3 + $0x8] sm:$0xff]
      %v1817 = vld [vmem:[#allocation3 + $0x10] sm:$0xff]
      %v1818 = vld [vmem:[#allocation3 + $0x18] sm:$0xff]
      %v1819 = vld [vmem:[#allocation3 + $0x20] sm:$0xff]
      %v1820 = vld [vmem:[#allocation3 + $0x28] sm:$0xff]
      %v1821 = vld [vmem:[#allocation3 + $0x30] sm:$0xff]
      %v1822 = vld [vmem:[#allocation3 + $0x38] sm:$0xff]
      %v1823 = vld [vmem:[#allocation3 + $0x40] sm:$0xff]
      %v1824 = vld [vmem:[#allocation3 + $0x48] sm:$0xff]
      %v1825 = vld [vmem:[#allocation3 + $0x50] sm:$0xff]
      %v1826 = vld [vmem:[#allocation3 + $0x58] sm:$0xff]
      %v1827 = vld [vmem:[#allocation3 + $0x60] sm:$0xff]
      %v1828 = vld [vmem:[#allocation3 + $0x68] sm:$0xff]
      %v1829 = vld [vmem:[#allocation3 + $0x70] sm:$0xff]
      %v1830 = vld [vmem:[#allocation3 + $0x78] sm:$0xff]
      %v1831 = vld [vmem:[#allocation3 + $0x80] sm:$0xff]
      %v1832 = vld [vmem:[#allocation3 + $0x88] sm:$0xff]
      %v1833 = vld [vmem:[#allocation3 + $0x90] sm:$0xff]
      %v1834 = vld [vmem:[#allocation3 + $0x98] sm:$0xff]
      %v1835 = vld [vmem:[#allocation3 + $0xa0] sm:$0xff]
      %v1836 = vld [vmem:[#allocation3 + $0xa8] sm:$0xff]
      %v1837 = vld [vmem:[#allocation3 + $0xb0] sm:$0xff]
      %v1838 = vld [vmem:[#allocation3 + $0xb8] sm:$0xff]
      %v1839 = vld [vmem:[#allocation3 + $0xc0] sm:$0xff]
      %v1840 = vld [vmem:[#allocation3 + $0xc8] sm:$0xff]
      %v1841 = vld [vmem:[#allocation3 + $0xd0] sm:$0xff]
      %v1842 = vld [vmem:[#allocation3 + $0xd8] sm:$0xff]
      %v1843 = vld [vmem:[#allocation3 + $0xe0] sm:$0xff]
      %v1844 = vld [vmem:[#allocation3 + $0xe8] sm:$0xff]
      %v1845 = vld [vmem:[#allocation3 + $0xf0] sm:$0xff]
      %v1846 = vld [vmem:[#allocation3 + $0xf8] sm:$0xff]
      %v1847 = vld [vmem:[%s1] sm:$0xff]
      %v1848 = vld [vmem:[%s1 + $0x8] sm:$0xff]
      %v1849 = vld [vmem:[%s1 + $0x10] sm:$0xff]
      %v1850 = vld [vmem:[%s1 + $0x18] sm:$0xff]
      %v1851 = vld [vmem:[%s1 + $0x20] sm:$0xf]
      %vm1852 = vcmask 293888
      %v1854 = vsel %vm1852, %v1815, 0
      %v1857 = vsel %vm1852, %v1816, 0
      %v1860 = vsel %vm1852, %v1817, 0
      %v1863 = vsel %vm1852, %v1818, 0
      %v1866 = vsel %vm1852, %v1819, 0
      %v1869 = vsel %vm1852, %v1820, 0
      %v1872 = vsel %vm1852, %v1821, 0
      %v1875 = vsel %vm1852, %v1822, 0
      %v1878 = vsel %vm1852, %v1823, 0
      %v1881 = vsel %vm1852, %v1824, 0
      %v1884 = vsel %vm1852, %v1825, 0
      %v1887 = vsel %vm1852, %v1826, 0
      %v1890 = vsel %vm1852, %v1827, 0
      %v1893 = vsel %vm1852, %v1828, 0
      %v1896 = vsel %vm1852, %v1829, 0
      %v1899 = vsel %vm1852, %v1830, 0
      %v1902 = vsel %vm1852, %v1831, 0
      %v1905 = vsel %vm1852, %v1832, 0
      %v1908 = vsel %vm1852, %v1833, 0
      %v1911 = vsel %vm1852, %v1834, 0
      %v1914 = vsel %vm1852, %v1835, 0
      %v1917 = vsel %vm1852, %v1836, 0
      %v1920 = vsel %vm1852, %v1837, 0
      %v1923 = vsel %vm1852, %v1838, 0
      %v1926 = vsel %vm1852, %v1839, 0
      %v1929 = vsel %vm1852, %v1840, 0
      %v1932 = vsel %vm1852, %v1841, 0
      %v1935 = vsel %vm1852, %v1842, 0
      %v1938 = vsel %vm1852, %v1843, 0
      %v1941 = vsel %vm1852, %v1844, 0
      %v1944 = vsel %vm1852, %v1845, 0
      %v1947 = vsel %vm1852, %v1846, 0
      %vm1949 = vcmask 1043456
      %v1951 = vsel %vm1949, %v1851, 0
      %1953 = vmatpush.msra.mxu0 0.0
      %1954 = vmatpush.msra.mxu0 0.0
      %1955 = vmatpush.msra.mxu0 0.0
      %1956 = vmatpush.msra.mxu0 0.0
      %1957 = vmatpush.msra.mxu0 0.0
      %1958 = vmatpush.msra.mxu0 0.0
      %1959 = vmatpush.msra.mxu0 0.0
      %1960 = vmatpush.msra.mxu0 0.0
      %1961 = vmatpush.msra.mxu0 0.0
      %1962 = vmatpush.msra.mxu0 0.0
      %1963 = vmatpush.msra.mxu0 0.0
      %1964 = vmatpush.msra.mxu0 %v1951
      %1965 = vmatpush.msra.mxu0 %v1850
      %1966 = vmatpush.msra.mxu0 %v1849
      %1967 = vmatpush.msra.mxu0 %v1848
      %1968 = vmatpush.msra.mxu0 %v1847
      %1969 = vmatmul.f32.gmra.mxu0 %v1854
      %v1970 = vpop.f32.mrf.mxu0
      %v1971 = vadd.f32 0.0, %v1970
      %1972 = vmatmul.f32.gmra.mxu0 %v1857
      %v1973 = vpop.f32.mrf.mxu0
      %v1974 = vadd.f32 0.0, %v1973
      %1975 = vmatmul.f32.gmra.mxu0 %v1860
      %v1976 = vpop.f32.mrf.mxu0
      %v1977 = vadd.f32 0.0, %v1976
      %1978 = vmatmul.f32.gmra.mxu0 %v1863
      %v1979 = vpop.f32.mrf.mxu0
      %v1980 = vadd.f32 0.0, %v1979
      %1981 = vmatmul.f32.gmra.mxu0 %v1866
      %v1982 = vpop.f32.mrf.mxu0
      %v1983 = vadd.f32 0.0, %v1982
      %1984 = vmatmul.f32.gmra.mxu0 %v1869
      %v1985 = vpop.f32.mrf.mxu0
      %v1986 = vadd.f32 0.0, %v1985
      %1987 = vmatmul.f32.gmra.mxu0 %v1872
      %v1988 = vpop.f32.mrf.mxu0
      %v1989 = vadd.f32 0.0, %v1988
      %1990 = vmatmul.f32.gmra.mxu0 %v1875
      %v1991 = vpop.f32.mrf.mxu0
      %v1992 = vadd.f32 0.0, %v1991
      %1993 = vmatmul.f32.gmra.mxu0 %v1878
      %v1994 = vpop.f32.mrf.mxu0
      %v1995 = vadd.f32 0.0, %v1994
      %1996 = vmatmul.f32.gmra.mxu0 %v1881
      %v1997 = vpop.f32.mrf.mxu0
      %v1998 = vadd.f32 0.0, %v1997
      %1999 = vmatmul.f32.gmra.mxu0 %v1884
      %v2000 = vpop.f32.mrf.mxu0
      %v2001 = vadd.f32 0.0, %v2000
      %2002 = vmatmul.f32.gmra.mxu0 %v1887
      %v2003 = vpop.f32.mrf.mxu0
      %v2004 = vadd.f32 0.0, %v2003
      %2005 = vmatmul.f32.gmra.mxu0 %v1890
      %v2006 = vpop.f32.mrf.mxu0
      %v2007 = vadd.f32 0.0, %v2006
      %2008 = vmatmul.f32.gmra.mxu0 %v1893
      %v2009 = vpop.f32.mrf.mxu0
      %v2010 = vadd.f32 0.0, %v2009
      %2011 = vmatmul.f32.gmra.mxu0 %v1896
      %v2012 = vpop.f32.mrf.mxu0
      %v2013 = vadd.f32 0.0, %v2012
      %2014 = vmatmul.f32.gmra.mxu0 %v1899
      %v2015 = vpop.f32.mrf.mxu0
      %v2016 = vadd.f32 0.0, %v2015
      %2017 = vmatmul.f32.gmra.mxu0 %v1902
      %v2018 = vpop.f32.mrf.mxu0
      %v2019 = vadd.f32 0.0, %v2018
      %2020 = vmatmul.f32.gmra.mxu0 %v1905
      %v2021 = vpop.f32.mrf.mxu0
      %v2022 = vadd.f32 0.0, %v2021
      %2023 = vmatmul.f32.gmra.mxu0 %v1908
      %v2024 = vpop.f32.mrf.mxu0
      %v2025 = vadd.f32 0.0, %v2024
      %2026 = vmatmul.f32.gmra.mxu0 %v1911
      %v2027 = vpop.f32.mrf.mxu0
      %v2028 = vadd.f32 0.0, %v2027
      %2029 = vmatmul.f32.gmra.mxu0 %v1914
      %v2030 = vpop.f32.mrf.mxu0
      %v2031 = vadd.f32 0.0, %v2030
      %2032 = vmatmul.f32.gmra.mxu0 %v1917
      %v2033 = vpop.f32.mrf.mxu0
      %v2034 = vadd.f32 0.0, %v2033
      %2035 = vmatmul.f32.gmra.mxu0 %v1920
      %v2036 = vpop.f32.mrf.mxu0
      %v2037 = vadd.f32 0.0, %v2036
      %2038 = vmatmul.f32.gmra.mxu0 %v1923
      %v2039 = vpop.f32.mrf.mxu0
      %v2040 = vadd.f32 0.0, %v2039
      %2041 = vmatmul.f32.gmra.mxu0 %v1926
      %v2042 = vpop.f32.mrf.mxu0
      %v2043 = vadd.f32 0.0, %v2042
      %2044 = vmatmul.f32.gmra.mxu0 %v1929
      %v2045 = vpop.f32.mrf.mxu0
      %v2046 = vadd.f32 0.0, %v2045
      %2047 = vmatmul.f32.gmra.mxu0 %v1932
      %v2048 = vpop.f32.mrf.mxu0
      %v2049 = vadd.f32 0.0, %v2048
      %2050 = vmatmul.f32.gmra.mxu0 %v1935
      %v2051 = vpop.f32.mrf.mxu0
      %v2052 = vadd.f32 0.0, %v2051
      %2053 = vmatmul.f32.gmra.mxu0 %v1938
      %v2054 = vpop.f32.mrf.mxu0
      %v2055 = vadd.f32 0.0, %v2054
      %2056 = vmatmul.f32.gmra.mxu0 %v1941
      %v2057 = vpop.f32.mrf.mxu0
      %v2058 = vadd.f32 0.0, %v2057
      %2059 = vmatmul.f32.gmra.mxu0 %v1944
      %v2060 = vpop.f32.mrf.mxu0
      %v2061 = vadd.f32 0.0, %v2060
      %2062 = vmatmul.f32.gmra.mxu0 %v1947
      %v2063 = vpop.f32.mrf.mxu0
      %v2064 = vadd.f32 0.0, %v2063
      %2065 = vdwg.mxu0
      %2066 = vst.msk [vmem:[%s231] sm:$0xff] %vm372, %v1971
      %2067 = vst.msk [vmem:[%s231 + $0x8] sm:$0xff] %vm372, %v1974
      %2068 = vst.msk [vmem:[%s231 + $0x10] sm:$0xff] %vm372, %v1977
      %2069 = vst.msk [vmem:[%s231 + $0x18] sm:$0xff] %vm372, %v1980
      %2070 = vst.msk [vmem:[%s231 + $0x20] sm:$0xff] %vm372, %v1983
      %2071 = vst.msk [vmem:[%s231 + $0x28] sm:$0xff] %vm372, %v1986
      %2072 = vst.msk [vmem:[%s231 + $0x30] sm:$0xff] %vm372, %v1989
      %2073 = vst.msk [vmem:[%s231 + $0x38] sm:$0xff] %vm372, %v1992
      %2074 = vst.msk [vmem:[%s231 + $0x40] sm:$0xff] %vm372, %v1995
      %2075 = vst.msk [vmem:[%s231 + $0x48] sm:$0xff] %vm372, %v1998
      %2076 = vst.msk [vmem:[%s231 + $0x50] sm:$0xff] %vm372, %v2001
      %2077 = vst.msk [vmem:[%s231 + $0x58] sm:$0xff] %vm372, %v2004
      %2078 = vst.msk [vmem:[%s231 + $0x60] sm:$0xff] %vm372, %v2007
      %2079 = vst.msk [vmem:[%s231 + $0x68] sm:$0xff] %vm372, %v2010
      %2080 = vst.msk [vmem:[%s231 + $0x70] sm:$0xff] %vm372, %v2013
      %2081 = vst.msk [vmem:[%s231 + $0x78] sm:$0xff] %vm372, %v2016
      %2082 = vst.msk [vmem:[%s231 + $0x80] sm:$0xff] %vm372, %v2019
      %2083 = vst.msk [vmem:[%s231 + $0x88] sm:$0xff] %vm372, %v2022
      %2084 = vst.msk [vmem:[%s231 + $0x90] sm:$0xff] %vm372, %v2025
      %2085 = vst.msk [vmem:[%s231 + $0x98] sm:$0xff] %vm372, %v2028
      %2086 = vst.msk [vmem:[%s231 + $0xa0] sm:$0xff] %vm372, %v2031
      %2087 = vst.msk [vmem:[%s231 + $0xa8] sm:$0xff] %vm372, %v2034
      %2088 = vst.msk [vmem:[%s231 + $0xb0] sm:$0xff] %vm372, %v2037
      %2089 = vst.msk [vmem:[%s231 + $0xb8] sm:$0xff] %vm372, %v2040
      %2090 = vst.msk [vmem:[%s231 + $0xc0] sm:$0xff] %vm372, %v2043
      %2091 = vst.msk [vmem:[%s231 + $0xc8] sm:$0xff] %vm372, %v2046
      %2092 = vst.msk [vmem:[%s231 + $0xd0] sm:$0xff] %vm372, %v2049
      %2093 = vst.msk [vmem:[%s231 + $0xd8] sm:$0xff] %vm372, %v2052
      %2094 = vst.msk [vmem:[%s231 + $0xe0] sm:$0xff] %vm372, %v2055
      %2095 = vst.msk [vmem:[%s231 + $0xe8] sm:$0xff] %vm372, %v2058
      %2096 = vst.msk [vmem:[%s231 + $0xf0] sm:$0xff] %vm372, %v2061
      %2097 = vst.msk [vmem:[%s231 + $0xf8] sm:$0xff] %vm372, %v2064
      %v2098 = vsel %vm372, %v1971, 0.0
      %v2099 = vsel %vm372, %v1974, 0.0
      %v2100 = vadd.f32 %v2098, %v2099
      %v2101 = vsel %vm372, %v1977, 0.0
      %v2102 = vadd.f32 %v2100, %v2101
      %v2103 = vsel %vm372, %v1980, 0.0
      %v2104 = vadd.f32 %v2102, %v2103
      %v2105 = vsel %vm372, %v1983, 0.0
      %v2106 = vadd.f32 %v2104, %v2105
      %v2107 = vsel %vm372, %v1986, 0.0
      %v2108 = vadd.f32 %v2106, %v2107
      %v2109 = vsel %vm372, %v1989, 0.0
      %v2110 = vadd.f32 %v2108, %v2109
      %v2111 = vsel %vm372, %v1992, 0.0
      %v2112 = vadd.f32 %v2110, %v2111
      %v2113 = vsel %vm372, %v1995, 0.0
      %v2114 = vadd.f32 %v2112, %v2113
      %v2115 = vsel %vm372, %v1998, 0.0
      %v2116 = vadd.f32 %v2114, %v2115
      %v2117 = vsel %vm372, %v2001, 0.0
      %v2118 = vadd.f32 %v2116, %v2117
      %v2119 = vsel %vm372, %v2004, 0.0
      %v2120 = vadd.f32 %v2118, %v2119
      %v2121 = vsel %vm372, %v2007, 0.0
      %v2122 = vadd.f32 %v2120, %v2121
      %v2123 = vsel %vm372, %v2010, 0.0
      %v2124 = vadd.f32 %v2122, %v2123
      %v2125 = vsel %vm372, %v2013, 0.0
      %v2126 = vadd.f32 %v2124, %v2125
      %v2127 = vsel %vm372, %v2016, 0.0
      %v2128 = vadd.f32 %v2126, %v2127
      %v2129 = vsel %vm372, %v2019, 0.0
      %v2130 = vadd.f32 %v2128, %v2129
      %v2131 = vsel %vm372, %v2022, 0.0
      %v2132 = vadd.f32 %v2130, %v2131
      %v2133 = vsel %vm372, %v2025, 0.0
      %v2134 = vadd.f32 %v2132, %v2133
      %v2135 = vsel %vm372, %v2028, 0.0
      %v2136 = vadd.f32 %v2134, %v2135
      %v2137 = vsel %vm372, %v2031, 0.0
      %v2138 = vadd.f32 %v2136, %v2137
      %v2139 = vsel %vm372, %v2034, 0.0
      %v2140 = vadd.f32 %v2138, %v2139
      %v2141 = vsel %vm372, %v2037, 0.0
      %v2142 = vadd.f32 %v2140, %v2141
      %v2143 = vsel %vm372, %v2040, 0.0
      %v2144 = vadd.f32 %v2142, %v2143
      %v2145 = vsel %vm372, %v2043, 0.0
      %v2146 = vadd.f32 %v2144, %v2145
      %v2147 = vsel %vm372, %v2046, 0.0
      %v2148 = vadd.f32 %v2146, %v2147
      %v2149 = vsel %vm372, %v2049, 0.0
      %v2150 = vadd.f32 %v2148, %v2149
      %v2151 = vsel %vm372, %v2052, 0.0
      %v2152 = vadd.f32 %v2150, %v2151
      %v2153 = vsel %vm372, %v2055, 0.0
      %v2154 = vadd.f32 %v2152, %v2153
      %v2155 = vsel %vm372, %v2058, 0.0
      %v2156 = vadd.f32 %v2154, %v2155
      %v2157 = vsel %vm372, %v2061, 0.0
      %v2158 = vadd.f32 %v2156, %v2157
      %v2159 = vsel %vm372, %v2064, 0.0
      %v2160 = vadd.f32 %v2158, %v2159
      %v2161 = vrot.slane %v2160, 4
      %v2162 = vadd.f32 %v2160, %v2161
      %v2163 = vrot.slane %v2162, 2
      %v2164 = vadd.f32 %v2162, %v2163
      %v2165 = vrot.slane %v2164, 1
      %v2166 = vadd.f32 %v2164, %v2165
      %vm2167 = vcmask 24576
      %2168 = vst.msk [vmem:[%s235] sm:$0x1] %vm2167, %v2166
      %v2169 = vmul.f32 %v1971, %v1971
      %v2170 = vmul.f32 %v1974, %v1974
      %v2171 = vmul.f32 %v1977, %v1977
      %v2172 = vmul.f32 %v1980, %v1980
      %v2173 = vmul.f32 %v1983, %v1983
      %v2174 = vmul.f32 %v1986, %v1986
      %v2175 = vmul.f32 %v1989, %v1989
      %v2176 = vmul.f32 %v1992, %v1992
      %v2177 = vmul.f32 %v1995, %v1995
      %v2178 = vmul.f32 %v1998, %v1998
      %v2179 = vmul.f32 %v2001, %v2001
      %v2180 = vmul.f32 %v2004, %v2004
      %v2181 = vmul.f32 %v2007, %v2007
      %v2182 = vmul.f32 %v2010, %v2010
      %v2183 = vmul.f32 %v2013, %v2013
      %v2184 = vmul.f32 %v2016, %v2016
      %v2185 = vmul.f32 %v2019, %v2019
      %v2186 = vmul.f32 %v2022, %v2022
      %v2187 = vmul.f32 %v2025, %v2025
      %v2188 = vmul.f32 %v2028, %v2028
      %v2189 = vmul.f32 %v2031, %v2031
      %v2190 = vmul.f32 %v2034, %v2034
      %v2191 = vmul.f32 %v2037, %v2037
      %v2192 = vmul.f32 %v2040, %v2040
      %v2193 = vmul.f32 %v2043, %v2043
      %v2194 = vmul.f32 %v2046, %v2046
      %v2195 = vmul.f32 %v2049, %v2049
      %v2196 = vmul.f32 %v2052, %v2052
      %v2197 = vmul.f32 %v2055, %v2055
      %v2198 = vmul.f32 %v2058, %v2058
      %v2199 = vmul.f32 %v2061, %v2061
      %v2200 = vmul.f32 %v2064, %v2064
      %v2201 = vsel %vm372, %v2169, 0.0
      %v2202 = vsel %vm372, %v2170, 0.0
      %v2203 = vadd.f32 %v2201, %v2202
      %v2204 = vsel %vm372, %v2171, 0.0
      %v2205 = vadd.f32 %v2203, %v2204
      %v2206 = vsel %vm372, %v2172, 0.0
      %v2207 = vadd.f32 %v2205, %v2206
      %v2208 = vsel %vm372, %v2173, 0.0
      %v2209 = vadd.f32 %v2207, %v2208
      %v2210 = vsel %vm372, %v2174, 0.0
      %v2211 = vadd.f32 %v2209, %v2210
      %v2212 = vsel %vm372, %v2175, 0.0
      %v2213 = vadd.f32 %v2211, %v2212
      %v2214 = vsel %vm372, %v2176, 0.0
      %v2215 = vadd.f32 %v2213, %v2214
      %v2216 = vsel %vm372, %v2177, 0.0
      %v2217 = vadd.f32 %v2215, %v2216
      %v2218 = vsel %vm372, %v2178, 0.0
      %v2219 = vadd.f32 %v2217, %v2218
      %v2220 = vsel %vm372, %v2179, 0.0
      %v2221 = vadd.f32 %v2219, %v2220
      %v2222 = vsel %vm372, %v2180, 0.0
      %v2223 = vadd.f32 %v2221, %v2222
      %v2224 = vsel %vm372, %v2181, 0.0
      %v2225 = vadd.f32 %v2223, %v2224
      %v2226 = vsel %vm372, %v2182, 0.0
      %v2227 = vadd.f32 %v2225, %v2226
      %v2228 = vsel %vm372, %v2183, 0.0
      %v2229 = vadd.f32 %v2227, %v2228
      %v2230 = vsel %vm372, %v2184, 0.0
      %v2231 = vadd.f32 %v2229, %v2230
      %v2232 = vsel %vm372, %v2185, 0.0
      %v2233 = vadd.f32 %v2231, %v2232
      %v2234 = vsel %vm372, %v2186, 0.0
      %v2235 = vadd.f32 %v2233, %v2234
      %v2236 = vsel %vm372, %v2187, 0.0
      %v2237 = vadd.f32 %v2235, %v2236
      %v2238 = vsel %vm372, %v2188, 0.0
      %v2239 = vadd.f32 %v2237, %v2238
      %v2240 = vsel %vm372, %v2189, 0.0
      %v2241 = vadd.f32 %v2239, %v2240
      %v2242 = vsel %vm372, %v2190, 0.0
      %v2243 = vadd.f32 %v2241, %v2242
      %v2244 = vsel %vm372, %v2191, 0.0
      %v2245 = vadd.f32 %v2243, %v2244
      %v2246 = vsel %vm372, %v2192, 0.0
      %v2247 = vadd.f32 %v2245, %v2246
      %v2248 = vsel %vm372, %v2193, 0.0
      %v2249 = vadd.f32 %v2247, %v2248
      %v2250 = vsel %vm372, %v2194, 0.0
      %v2251 = vadd.f32 %v2249, %v2250
      %v2252 = vsel %vm372, %v2195, 0.0
      %v2253 = vadd.f32 %v2251, %v2252
      %v2254 = vsel %vm372, %v2196, 0.0
      %v2255 = vadd.f32 %v2253, %v2254
      %v2256 = vsel %vm372, %v2197, 0.0
      %v2257 = vadd.f32 %v2255, %v2256
      %v2258 = vsel %vm372, %v2198, 0.0
      %v2259 = vadd.f32 %v2257, %v2258
      %v2260 = vsel %vm372, %v2199, 0.0
      %v2261 = vadd.f32 %v2259, %v2260
      %v2262 = vsel %vm372, %v2200, 0.0
      %v2263 = vadd.f32 %v2261, %v2262
      %v2264 = vrot.slane %v2263, 4
      %v2265 = vadd.f32 %v2263, %v2264
      %v2266 = vrot.slane %v2265, 2
      %v2267 = vadd.f32 %v2265, %v2266
      %v2268 = vrot.slane %v2267, 1
      %v2269 = vadd.f32 %v2267, %v2268
      %2270 = vst.msk [vmem:[%s235 + $0x1] sm:$0x1] %vm2167, %v2269
      %p2271 = scmp.lt.s32.totalorder %s17, 1
      %s2272 = scalar_select %p2271, %s17, 1
      %s2273 = smul.addr %s2272, 32
      %s2274 = smul.addr %s2273, 8
      %s2275 = scalar_lea.vmem %s4, %s2274
      %p2276 = scmp.lt.s32.totalorder %s17, 1
      %s2277 = scalar_select %p2276, %s17, 1
      %s2278 = smul.addr %s2277, 2
      %s2279 = scalar_lea.vmem %s5, %s2278
      // Predicated region
      $region37: #{basic_block_forward.4} parent=35 // pred_check
        %p2280 = pneg %p124
      $region38: #{basic_block_forward.4} parent=35 // pred_check_branch
        %2282 = sbr.rel (%p2280) target = $region40
      $region39: #{basic_block_forward.4} parent=35 // pred_region
        _
      $region40: #{basic_block_forward.4} parent=35 // pred_fallthru
        _
      // Predicated region
      $region41: #{basic_block_forward.4} parent=35 // pred_check
        %p2283 = pneg %p150
      $region42: #{basic_block_forward.4} parent=35 // pred_check_branch
        %2285 = sbr.rel (%p2283) target = $region44
      $region43: #{basic_block_forward.4} parent=35 // pred_region
        _
      $region44: #{basic_block_forward.4} parent=35 // pred_fallthru
        _
    $region36: #{basic_block_forward.4} parent=5 // pred_fallthru
      _
    %p2286 = scmp.le.s32.totalorder 2, %s12
    // Predicated region
    $region45: #{basic_block_forward.4} parent=5 // pred_check
      %p2287 = pneg %p2286
    $region46: #{basic_block_forward.4} parent=5 // pred_check_branch
      %2289 = sbr.rel (%p2287) target = $region48
    $region47: #{basic_block_forward.4} parent=5 // pred_region
      %s2290 = ssub.s32 %s12, 2
      // Predicated region
      $region49: #{basic_block_forward.4} parent=47 // pred_check
        %p2291 = pneg %p130
      $region50: #{basic_block_forward.4} parent=47 // pred_check_branch
        %2293 = sbr.rel (%p2291) target = $region52
      $region51: #{basic_block_forward.4} parent=47 // pred_region
        %p2294 = scmp.lt.s32.totalorder %s18, 1
        %s2295 = scalar_select %p2294, %s18, 1
        %s2296 = smul.addr %s2295, 32
        %s2297 = smul.addr %s2296, 8
        %s2298 = scalar_lea.vmem %s4, %s2297
      $region52: #{basic_block_forward.4} parent=47 // pred_fallthru
        _
      // Predicated region
      $region53: #{basic_block_forward.4} parent=47 // pred_check
        %p2299 = pneg %p156
      $region54: #{basic_block_forward.4} parent=47 // pred_check_branch
        %2301 = sbr.rel (%p2299) target = $region56
      $region55: #{basic_block_forward.4} parent=47 // pred_region
        %p2302 = scmp.lt.s32.totalorder %s18, 1
        %s2303 = scalar_select %p2302, %s18, 1
        %s2304 = smul.addr %s2303, 2
        %s2305 = scalar_lea.vmem %s5, %s2304
      $region56: #{basic_block_forward.4} parent=47 // pred_fallthru
        _
    $region48: #{basic_block_forward.4} parent=5 // pred_fallthru
      _
  $region6: #{basic_block_forward.4} parent=0 // loop_footer
    %s16 = sadd.s32 1, %s12
  $region7: #{basic_block_forward.4} parent=0 // loop_footer_branch
    %11 = sbr.rel target = $region3
  $region8: #{basic_block_forward.4} parent=0 // loop_exit
    _

</llo_original>
